<compile_context>
chip_gen: v6e
topology: v6e:2x2x1
jax: 0.10.0
libtpu: 0.0.40
codegen_flags: <defaults>
</compile_context>

<pallas_src>
import functools

import jax
import jax.numpy as jnp
from jax import lax
from jax.experimental import pallas as pl
from jax.experimental.pallas import tpu as pltpu


# ----------------------------------------------------------------------------
# Kernel: one grid program = one encoder (stacked bi-LSTM -> attention pooling
# -> per-branch output projection).  grid=(G,): q on program 0, hs on 1.
# ----------------------------------------------------------------------------
def _encoder_kernel(*refs, hidden, num_layers):
    H = hidden
    G2 = 2 * H
    x_ref, len_ref = refs[0], refs[1]
    layer_refs = [tuple(refs[2 + 3 * l: 2 + 3 * l + 3]) for l in range(num_layers)]
    w_head_ref = refs[2 + 3 * num_layers]
    b_head_ref = refs[3 + 3 * num_layers]
    z_ref = refs[4 + 3 * num_layers]
    y_scr = refs[5 + 3 * num_layers]

    Bp = len_ref.shape[0]
    T = x_ref.shape[0] // Bp
    lens = len_ref[...]                                     # (Bp, 1) f32

    # ---- hoisted lane/validity masks (never rebuilt on the serial path) ----
    lane8 = lax.broadcasted_iota(jnp.int32, (1, 4 * G2), 1)
    fwd_lanes = (lane8 % G2) < H                 # gate lanes fed by fwd time idx
    g_lanes = (lane8 >= 2 * G2) & (lane8 < 3 * G2)   # "g" gate -> tanh, rest sigmoid
    lane2 = lax.broadcasted_iota(jnp.int32, (1, G2), 1)
    left_lanes = lane2 < H                       # fwd half of packed (Bp,2H) state

    tpos = lax.broadcasted_iota(jnp.int32, (Bp, T), 1).astype(jnp.float32)
    mask_bt = tpos < lens                        # (Bp, T) bool, valid timesteps
    mask_f = mask_bt.astype(jnp.float32)
    step_mask = [jnp.where(left_lanes, mask_f[:, s:s + 1],
                           mask_f[:, T - 1 - s:T - s]) for s in range(T)]

    # ---- stacked bidirectional LSTM ----------------------------------------
    x = x_ref[...]                               # (T*Bp, Din), time-major blocks
    for wih_ref, whh_ref, b_ref in layer_refs:
        # Hoisted input projection: all timesteps, both directions, one matmul.
        xp = (jnp.dot(x, wih_ref[...], preferred_element_type=jnp.float32)
              + b_ref[...])                      # (T*Bp, 8H), gate-interleaved
        whh = whh_ref[...]                       # (2H, 8H) block-diag, interleaved
        hc = jnp.zeros((Bp, G2), jnp.float32)    # [h_fwd | h_bwd]
        cc = jnp.zeros((Bp, G2), jnp.float32)    # [c_fwd | c_bwd]
        for s in range(T):
            tf, tb = s, T - 1 - s
            # fwd gate lanes read x(tf), bwd gate lanes read x(tb)
            x_t = jnp.where(fwd_lanes, xp[tf * Bp:(tf + 1) * Bp, :],
                            xp[tb * Bp:(tb + 1) * Bp, :])            # (Bp, 8H)
            gates = x_t + jnp.dot(hc, whh, preferred_element_type=jnp.float32)
            act = jnp.where(g_lanes, jnp.tanh(gates), jax.nn.sigmoid(gates))
            i_g = act[:, 0 * G2:1 * G2]
            f_g = act[:, 1 * G2:2 * G2]
            g_g = act[:, 2 * G2:3 * G2]
            o_g = act[:, 3 * G2:4 * G2]
            c_new = f_g * cc + i_g * g_g
            h_new = o_g * jnp.tanh(c_new)
            vm = step_mask[s]                    # (Bp, 2H) float {0,1}, hoisted
            cc = cc + vm * (c_new - cc)          # packed-seq: frozen past length
            hc = hc + vm * (h_new - hc)
            y = vm * h_new                       # padded outputs are zero
            y_scr[tf * Bp:(tf + 1) * Bp, 0:H] = y[:, 0:H]          # fwd out @ tf
            y_scr[tb * Bp:(tb + 1) * Bp, H:G2] = y[:, H:G2]        # bwd out @ tb
        x = y_scr[...]                           # next-layer input stays in VMEM

    # ---- attention pooling (softmax over the module's 1 / -100 logits) -----
    att = jnp.where(mask_bt, 1.0, -100.0)                    # (Bp, T)
    att = att - jnp.max(att, axis=-1, keepdims=True)
    e = jnp.exp(att)
    prob = e / jnp.sum(e, axis=-1, keepdims=True)            # (Bp, T)
    pooled = jnp.zeros((Bp, G2), jnp.float32)
    for t in range(T):
        pooled = pooled + prob[:, t:t + 1] * y_scr[t * Bp:(t + 1) * Bp, :]

    # ---- per-branch output projection (ao_out_q for g=0 / ao_out_hs for g=1)
    z_ref[...] = (jnp.dot(pooled, w_head_ref[...],
                          preferred_element_type=jnp.float32) + b_head_ref[...])


# ----------------------------------------------------------------------------
# Forward wrapper: host-side layout (transpose + pad to 8 sublanes), grid=(G,)
# pallas_call, then the tiny combined output head as a follow-up XLA op.
# ----------------------------------------------------------------------------
@functools.partial(jax.jit, static_argnames=("use_hs",))
def _andor_forward_impl(q_emb_var, q_len, hs_emb_var, hs_len,
                        lstm_params, head_w, head_b, out_w, out_b, *, use_hs):
    H = lstm_params[0][1].shape[1] // 2            # w_hh_pk: (2, 2H, 8H)
    nl = len(lstm_params)
    Nh = 2 * H
    B, Tq, _ = q_emb_var.shape
    Th = hs_emb_var.shape[1]
    T = max(Tq, Th) if use_hs else Tq
    Bp = ((B + 7) // 8) * 8                        # pad batch to 8 sublanes
    G = 2 if use_hs else 1

    def prep_x(x):
        b, t, d = x.shape
        x = jnp.transpose(x, (1, 0, 2))                               # time-major
        x = jnp.pad(x, ((0, T - t), (0, Bp - b), (0, 0)))
        return x.reshape(T * Bp, d)

    def prep_len(l):
        l = l.astype(jnp.float32)
        return jnp.pad(l, (0, Bp - B))[:, None]                       # pads -> 0

    if use_hs:
        x_stk = jnp.stack([prep_x(q_emb_var), prep_x(hs_emb_var)])    # (2,T*Bp,D)
        len_stk = jnp.stack([prep_len(q_len), prep_len(hs_len)])      # (2,Bp,1)
        lstm_in = [w for layer in lstm_params for w in layer]
        hw, hb = head_w, head_b
    else:
        x_stk = prep_x(q_emb_var)[None]
        len_stk = prep_len(q_len)[None]
        lstm_in = [w[:1] for layer in lstm_params for w in layer]
        hw, hb = head_w[:1], head_b[:1]

    flat_inputs = [x_stk, len_stk] + lstm_in + [hw, hb]

    def stacked_spec(a):
        nd = a.ndim
        return pl.BlockSpec((None,) + a.shape[1:],
                            lambda g, nd=nd: (g,) + (0,) * (nd - 1))

    z_parts = pl.pallas_call(
        functools.partial(_encoder_kernel, hidden=H, num_layers=nl),
        out_shape=jax.ShapeDtypeStruct((G, Bp, Nh), jnp.float32),
        grid=(G,),
        in_specs=[stacked_spec(a) for a in flat_inputs],
        out_specs=pl.BlockSpec((None, Bp, Nh), lambda g: (g, 0, 0)),
        scratch_shapes=[pltpu.VMEM((T * Bp, Nh), jnp.float32)],
        compiler_params=pltpu.CompilerParams(
            dimension_semantics=("parallel",)),
    )(*flat_inputs)

    z = z_parts[0]
    if use_hs:
        z = z + z_parts[1]
    score = jnp.dot(jnp.tanh(z), out_w) + out_b
    return score[:B]


def andor_predictor_forward(params, q_emb_var, q_len, hs_emb_var, hs_len,
                            *, use_hs=True):
    return _andor_forward_impl(
        q_emb_var, q_len, hs_emb_var, hs_len,
        tuple(params["lstm"]), params["head_w"], params["head_b"],
        params["out_w"], params["out_b"], use_hs=bool(use_hs))


# ----------------------------------------------------------------------------
# Parameter init (deterministic, PyTorch-style uniform) + packing
# ----------------------------------------------------------------------------
def _uniform(key, shape, scale):
    return jax.random.uniform(key, shape, jnp.float32, -scale, scale)


def init_bilstm_raw(key, input_size, hidden, num_layers):
    """Per-layer, per-direction raw weights (already transposed vs PyTorch)."""
    layers = []
    scale = 1.0 / float(hidden) ** 0.5
    for layer_idx in range(num_layers):
        d_in = input_size if layer_idx == 0 else 2 * hidden
        dirs = {}
        for direction in ("fwd", "bwd"):
            key, k1, k2, k3, k4 = jax.random.split(key, 5)
            w_ih = _uniform(k1, (d_in, 4 * hidden), scale)        # (Din, 4H)
            w_hh = _uniform(k2, (hidden, 4 * hidden), scale)      # (H, 4H)
            b = (_uniform(k3, (4 * hidden,), scale)
                 + _uniform(k4, (4 * hidden,), scale)).reshape(1, -1)
            dirs[direction] = (w_ih, w_hh, b)
        layers.append(dirs)
    return key, layers


def _interleave_gates(a_f, a_b, H):
    """[i|f|g|o]_fwd , [i|f|g|o]_bwd  ->  [i_f|i_b|f_f|f_b|g_f|g_b|o_f|o_b]."""
    parts = []
    for k in range(4):
        parts.append(a_f[..., k * H:(k + 1) * H])
        parts.append(a_b[..., k * H:(k + 1) * H])
    return jnp.concatenate(parts, axis=-1)


def pack_bilstm_layer(layer, H):
    w_ih_f, w_hh_f, b_f = layer["fwd"]
    w_ih_b, w_hh_b, b_b = layer["bwd"]
    w_ih_pk = _interleave_gates(w_ih_f, w_ih_b, H)                # (Din, 8H)
    z = jnp.zeros_like(w_hh_f)
    w_hh_pk = jnp.concatenate([_interleave_gates(w_hh_f, z, H),
                               _interleave_gates(z, w_hh_b, H)],
                              axis=0)                             # (2H, 8H)
    b_pk = _interleave_gates(b_f, b_b, H)                         # (1, 8H)
    return w_ih_pk, w_hh_pk, b_pk


def stack_encoders(q_layers, hs_layers, H):
    """Stack q / hs packed layer weights along a leading axis of size 2."""
    stacked = []
    for lq, lh in zip(q_layers, hs_layers):
        pq = pack_bilstm_layer(lq, H)
        ph = pack_bilstm_layer(lh, H)
        stacked.append(tuple(jnp.stack([a, b]) for a, b in zip(pq, ph)))
    return stacked


def init_linear(key, d_in, d_out):
    key, kw, kb = jax.random.split(key, 3)
    scale = 1.0 / float(d_in) ** 0.5
    w = _uniform(kw, (d_in, d_out), scale)    # stored transposed vs PyTorch
    b = _uniform(kb, (1, d_out), scale)
    return key, w, b


if __name__ == "__main__":
    # Small hyper-params consistent with the module's __init__ (no BERT path).
    N_WORD, N_H, N_DEPTH = 32, 32, 2
    B, TQ, TH = 2, 8, 6
    USE_HS = True
    H = N_H // 2

    key = jax.random.PRNGKey(0)
    key, q_raw = init_bilstm_raw(key, N_WORD, H, N_DEPTH)    # q_lstm
    key, hs_raw = init_bilstm_raw(key, N_WORD, H, N_DEPTH)   # hs_lstm
    key, wq, bq = init_linear(key, N_H, N_H)                 # ao_out_q
    key, whs, bhs = init_linear(key, N_H, N_H)               # ao_out_hs
    key, wout, bout = init_linear(key, N_H, 2)               # ao_out: Tanh->Linear
    # (q_att / hs_att Linear layers exist in __init__ but are unused in forward.)

    params = {
        "lstm": stack_encoders(q_raw, hs_raw, H),            # stacked q/hs layers
        "head_w": jnp.stack([wq, whs]),                      # (2, N_h, N_h)
        "head_b": jnp.stack([bq, bhs]),                      # (2, 1, N_h)
        "out_w": wout,                                       # (N_h, 2)
        "out_b": bout,                                       # (1, 2)
    }

    key, kq, kh = jax.random.split(key, 3)
    q_emb_var = jax.random.normal(kq, (B, TQ, N_WORD), jnp.float32)
    hs_emb_var = jax.random.normal(kh, (B, TH, N_WORD), jnp.float32)
    q_len = jnp.array([TQ, 5], dtype=jnp.int32)
    hs_len = jnp.array([4, TH], dtype=jnp.int32)

    score = andor_predictor_forward(params, q_emb_var, q_len,
                                    hs_emb_var, hs_len, use_hs=USE_HS)
    score = jax.block_until_ready(score)
    assert score.shape == (B, 2) and score.dtype == jnp.float32
    assert bool(jnp.all(jnp.isfinite(score)))
    print("KERNEL_OK")
</pallas_src>

<mosaic_0001>
module attributes {stable_mosaic.version = 11 : i64} {
  func.func @_encoder_kernel(%arg0: i32, %arg1: memref<1x64x32xf32, #tpu.memory_space<vmem>>, %arg2: memref<1x8x1xf32, #tpu.memory_space<vmem>>, %arg3: memref<1x32x128xf32, #tpu.memory_space<vmem>>, %arg4: memref<1x32x128xf32, #tpu.memory_space<vmem>>, %arg5: memref<1x1x128xf32, #tpu.memory_space<vmem>>, %arg6: memref<1x32x128xf32, #tpu.memory_space<vmem>>, %arg7: memref<1x32x128xf32, #tpu.memory_space<vmem>>, %arg8: memref<1x1x128xf32, #tpu.memory_space<vmem>>, %arg9: memref<1x32x32xf32, #tpu.memory_space<vmem>>, %arg10: memref<1x1x32xf32, #tpu.memory_space<vmem>>, %arg11: memref<1x8x32xf32, #tpu.memory_space<vmem>>, %arg12: memref<64x32xf32, #tpu.memory_space<vmem>>) attributes {dimension_semantics = [#tpu.dimension_semantics<parallel>], iteration_bounds = array<i64: 2>, scalar_prefetch = 0 : i64, scratch_operands = 1 : i64, tpu.core_type = #tpu.core_type<tc>, window_params = [{transform_indices = @transform_0, window_bounds = array<i64: 1, 64, 32>}, {transform_indices = @transform_1, window_bounds = array<i64: 1, 8, 1>}, {transform_indices = @transform_2, window_bounds = array<i64: 1, 32, 128>}, {transform_indices = @transform_3, window_bounds = array<i64: 1, 32, 128>}, {transform_indices = @transform_4, window_bounds = array<i64: 1, 1, 128>}, {transform_indices = @transform_5, window_bounds = array<i64: 1, 32, 128>}, {transform_indices = @transform_6, window_bounds = array<i64: 1, 32, 128>}, {transform_indices = @transform_7, window_bounds = array<i64: 1, 1, 128>}, {transform_indices = @transform_8, window_bounds = array<i64: 1, 32, 32>}, {transform_indices = @transform_9, window_bounds = array<i64: 1, 1, 32>}, {transform_indices = @transform_10, window_bounds = array<i64: 1, 8, 32>}]} {
    %c0 = arith.constant 0 : index
    %c0_0 = arith.constant 0 : index
    %c0_1 = arith.constant 0 : index
    %0 = vector.load %arg2[%c0, %c0_0, %c0_1] : memref<1x8x1xf32, #tpu.memory_space<vmem>>, vector<1x8x1xf32>
    %1 = vector.shape_cast %0 : vector<1x8x1xf32> to vector<8x1xf32>
    %2 = tpu.iota {dimensions = array<i32: 1>} : vector<1x128xi32>
    %c32_i32 = arith.constant 32 : i32
    %c0_i32 = arith.constant 0 : i32
    %3 = arith.cmpi eq, %c32_i32, %c0_i32 : i32
    %c1_i32 = arith.constant 1 : i32
    %4 = arith.select %3, %c1_i32, %c32_i32 : i32
    %5 = vector.broadcast %4 : i32 to vector<1x128xi32>
    %6 = arith.remsi %2, %5 : vector<1x128xi32>
    %c0_i32_2 = arith.constant 0 : i32
    %7 = vector.broadcast %c0_i32_2 : i32 to vector<1x128xi32>
    %8 = arith.cmpi ne, %6, %7 : vector<1x128xi32>
    %c0_i32_3 = arith.constant 0 : i32
    %9 = vector.broadcast %c0_i32_3 : i32 to vector<1x128xi32>
    %10 = arith.cmpi slt, %6, %9 : vector<1x128xi32>
    %c0_i32_4 = arith.constant 0 : i32
    %11 = arith.cmpi slt, %4, %c0_i32_4 : i32
    %12 = vector.broadcast %11 : i1 to vector<1x128xi1>
    %13 = vector.broadcast %12 : vector<1x128xi1> to vector<1x128xi1>
    %14 = arith.xori %10, %13 : vector<1x128xi1>
    %15 = arith.andi %14, %8 : vector<1x128xi1>
    %16 = vector.broadcast %4 : i32 to vector<1x128xi32>
    %17 = arith.addi %6, %16 : vector<1x128xi32>
    %18 = arith.select %15, %17, %6 : vector<1x128xi1>, vector<1x128xi32>
    %c16_i32 = arith.constant 16 : i32
    %19 = vector.broadcast %c16_i32 : i32 to vector<1x128xi32>
    %20 = arith.cmpi slt, %18, %19 : vector<1x128xi32>
    %c64_i32 = arith.constant 64 : i32
    %21 = vector.broadcast %c64_i32 : i32 to vector<1x128xi32>
    %22 = arith.cmpi sge, %2, %21 : vector<1x128xi32>
    %c96_i32 = arith.constant 96 : i32
    %23 = vector.broadcast %c96_i32 : i32 to vector<1x128xi32>
    %24 = arith.cmpi slt, %2, %23 : vector<1x128xi32>
    %25 = arith.andi %22, %24 : vector<1x128xi1>
    %26 = tpu.iota {dimensions = array<i32: 1>} : vector<1x32xi32>
    %c16_i32_5 = arith.constant 16 : i32
    %27 = vector.broadcast %c16_i32_5 : i32 to vector<1x32xi32>
    %28 = arith.cmpi slt, %26, %27 : vector<1x32xi32>
    %29 = tpu.iota {dimensions = array<i32: 1>} : vector<8x8xi32>
    %30 = arith.sitofp %29 : vector<8x8xi32> to vector<8x8xf32>
    %31 = vector.broadcast %1 : vector<8x1xf32> to vector<8x8xf32>
    %32 = arith.cmpf olt, %30, %31 : vector<8x8xf32>
    %33 = arith.extui %32 : vector<8x8xi1> to vector<8x8xi32>
    %34 = arith.sitofp %33 : vector<8x8xi32> to vector<8x8xf32>
    %35 = vector.extract_strided_slice %34 {offsets = [0, 0], sizes = [8, 1], strides = [1, 1]} : vector<8x8xf32> to vector<8x1xf32>
    %36 = vector.extract_strided_slice %34 {offsets = [0, 7], sizes = [8, 1], strides = [1, 1]} : vector<8x8xf32> to vector<8x1xf32>
    %37 = vector.shape_cast %28 : vector<1x32xi1> to vector<1x32xi1>
    %38 = vector.broadcast %37 : vector<1x32xi1> to vector<8x32xi1>
    %39 = vector.shape_cast %35 : vector<8x1xf32> to vector<8x1xf32>
    %40 = vector.broadcast %39 : vector<8x1xf32> to vector<8x32xf32>
    %41 = vector.shape_cast %36 : vector<8x1xf32> to vector<8x1xf32>
    %42 = vector.broadcast %41 : vector<8x1xf32> to vector<8x32xf32>
    %43 = arith.select %38, %40, %42 : vector<8x32xi1>, vector<8x32xf32>
    %44 = vector.extract_strided_slice %34 {offsets = [0, 1], sizes = [8, 1], strides = [1, 1]} : vector<8x8xf32> to vector<8x1xf32>
    %45 = vector.extract_strided_slice %34 {offsets = [0, 6], sizes = [8, 1], strides = [1, 1]} : vector<8x8xf32> to vector<8x1xf32>
    %46 = vector.shape_cast %28 : vector<1x32xi1> to vector<1x32xi1>
    %47 = vector.broadcast %46 : vector<1x32xi1> to vector<8x32xi1>
    %48 = vector.shape_cast %44 : vector<8x1xf32> to vector<8x1xf32>
    %49 = vector.broadcast %48 : vector<8x1xf32> to vector<8x32xf32>
    %50 = vector.shape_cast %45 : vector<8x1xf32> to vector<8x1xf32>
    %51 = vector.broadcast %50 : vector<8x1xf32> to vector<8x32xf32>
    %52 = arith.select %47, %49, %51 : vector<8x32xi1>, vector<8x32xf32>
    %53 = vector.extract_strided_slice %34 {offsets = [0, 2], sizes = [8, 1], strides = [1, 1]} : vector<8x8xf32> to vector<8x1xf32>
    %54 = vector.extract_strided_slice %34 {offsets = [0, 5], sizes = [8, 1], strides = [1, 1]} : vector<8x8xf32> to vector<8x1xf32>
    %55 = vector.shape_cast %28 : vector<1x32xi1> to vector<1x32xi1>
    %56 = vector.broadcast %55 : vector<1x32xi1> to vector<8x32xi1>
    %57 = vector.shape_cast %53 : vector<8x1xf32> to vector<8x1xf32>
    %58 = vector.broadcast %57 : vector<8x1xf32> to vector<8x32xf32>
    %59 = vector.shape_cast %54 : vector<8x1xf32> to vector<8x1xf32>
    %60 = vector.broadcast %59 : vector<8x1xf32> to vector<8x32xf32>
    %61 = arith.select %56, %58, %60 : vector<8x32xi1>, vector<8x32xf32>
    %62 = vector.extract_strided_slice %34 {offsets = [0, 3], sizes = [8, 1], strides = [1, 1]} : vector<8x8xf32> to vector<8x1xf32>
    %63 = vector.extract_strided_slice %34 {offsets = [0, 4], sizes = [8, 1], strides = [1, 1]} : vector<8x8xf32> to vector<8x1xf32>
    %64 = vector.shape_cast %28 : vector<1x32xi1> to vector<1x32xi1>
    %65 = vector.broadcast %64 : vector<1x32xi1> to vector<8x32xi1>
    %66 = vector.shape_cast %62 : vector<8x1xf32> to vector<8x1xf32>
    %67 = vector.broadcast %66 : vector<8x1xf32> to vector<8x32xf32>
    %68 = vector.shape_cast %63 : vector<8x1xf32> to vector<8x1xf32>
    %69 = vector.broadcast %68 : vector<8x1xf32> to vector<8x32xf32>
    %70 = arith.select %65, %67, %69 : vector<8x32xi1>, vector<8x32xf32>
    %71 = vector.extract_strided_slice %34 {offsets = [0, 4], sizes = [8, 1], strides = [1, 1]} : vector<8x8xf32> to vector<8x1xf32>
    %72 = vector.extract_strided_slice %34 {offsets = [0, 3], sizes = [8, 1], strides = [1, 1]} : vector<8x8xf32> to vector<8x1xf32>
    %73 = vector.shape_cast %28 : vector<1x32xi1> to vector<1x32xi1>
    %74 = vector.broadcast %73 : vector<1x32xi1> to vector<8x32xi1>
    %75 = vector.shape_cast %71 : vector<8x1xf32> to vector<8x1xf32>
    %76 = vector.broadcast %75 : vector<8x1xf32> to vector<8x32xf32>
    %77 = vector.shape_cast %72 : vector<8x1xf32> to vector<8x1xf32>
    %78 = vector.broadcast %77 : vector<8x1xf32> to vector<8x32xf32>
    %79 = arith.select %74, %76, %78 : vector<8x32xi1>, vector<8x32xf32>
    %80 = vector.extract_strided_slice %34 {offsets = [0, 5], sizes = [8, 1], strides = [1, 1]} : vector<8x8xf32> to vector<8x1xf32>
    %81 = vector.extract_strided_slice %34 {offsets = [0, 2], sizes = [8, 1], strides = [1, 1]} : vector<8x8xf32> to vector<8x1xf32>
    %82 = vector.shape_cast %28 : vector<1x32xi1> to vector<1x32xi1>
    %83 = vector.broadcast %82 : vector<1x32xi1> to vector<8x32xi1>
    %84 = vector.shape_cast %80 : vector<8x1xf32> to vector<8x1xf32>
    %85 = vector.broadcast %84 : vector<8x1xf32> to vector<8x32xf32>
    %86 = vector.shape_cast %81 : vector<8x1xf32> to vector<8x1xf32>
    %87 = vector.broadcast %86 : vector<8x1xf32> to vector<8x32xf32>
    %88 = arith.select %83, %85, %87 : vector<8x32xi1>, vector<8x32xf32>
    %89 = vector.extract_strided_slice %34 {offsets = [0, 6], sizes = [8, 1], strides = [1, 1]} : vector<8x8xf32> to vector<8x1xf32>
    %90 = vector.extract_strided_slice %34 {offsets = [0, 1], sizes = [8, 1], strides = [1, 1]} : vector<8x8xf32> to vector<8x1xf32>
    %91 = vector.shape_cast %28 : vector<1x32xi1> to vector<1x32xi1>
    %92 = vector.broadcast %91 : vector<1x32xi1> to vector<8x32xi1>
    %93 = vector.shape_cast %89 : vector<8x1xf32> to vector<8x1xf32>
    %94 = vector.broadcast %93 : vector<8x1xf32> to vector<8x32xf32>
    %95 = vector.shape_cast %90 : vector<8x1xf32> to vector<8x1xf32>
    %96 = vector.broadcast %95 : vector<8x1xf32> to vector<8x32xf32>
    %97 = arith.select %92, %94, %96 : vector<8x32xi1>, vector<8x32xf32>
    %98 = vector.extract_strided_slice %34 {offsets = [0, 7], sizes = [8, 1], strides = [1, 1]} : vector<8x8xf32> to vector<8x1xf32>
    %99 = vector.extract_strided_slice %34 {offsets = [0, 0], sizes = [8, 1], strides = [1, 1]} : vector<8x8xf32> to vector<8x1xf32>
    %100 = vector.shape_cast %28 : vector<1x32xi1> to vector<1x32xi1>
    %101 = vector.broadcast %100 : vector<1x32xi1> to vector<8x32xi1>
    %102 = vector.shape_cast %98 : vector<8x1xf32> to vector<8x1xf32>
    %103 = vector.broadcast %102 : vector<8x1xf32> to vector<8x32xf32>
    %104 = vector.shape_cast %99 : vector<8x1xf32> to vector<8x1xf32>
    %105 = vector.broadcast %104 : vector<8x1xf32> to vector<8x32xf32>
    %106 = arith.select %101, %103, %105 : vector<8x32xi1>, vector<8x32xf32>
    %c0_6 = arith.constant 0 : index
    %c0_7 = arith.constant 0 : index
    %c0_8 = arith.constant 0 : index
    %107 = vector.load %arg1[%c0_6, %c0_7, %c0_8] : memref<1x64x32xf32, #tpu.memory_space<vmem>>, vector<1x64x32xf32>
    %108 = vector.shape_cast %107 : vector<1x64x32xf32> to vector<64x32xf32>
    %c0_9 = arith.constant 0 : index
    %c0_10 = arith.constant 0 : index
    %c0_11 = arith.constant 0 : index
    %109 = vector.load %arg3[%c0_9, %c0_10, %c0_11] : memref<1x32x128xf32, #tpu.memory_space<vmem>>, vector<1x32x128xf32>
    %110 = vector.shape_cast %109 : vector<1x32x128xf32> to vector<32x128xf32>
    %cst = arith.constant dense<0.000000e+00> : vector<64x128xf32>
    %111 = tpu.matmul %108, %110, %cst {dimension_numbers = #tpu.dot_dimension_numbers<[1], [0], [0], [1], [0, 0, 1, 1], [], []>} : vector<64x32xf32>, vector<32x128xf32>, vector<64x128xf32> -> vector<64x128xf32>
    %c0_12 = arith.constant 0 : index
    %c0_13 = arith.constant 0 : index
    %c0_14 = arith.constant 0 : index
    %112 = vector.load %arg5[%c0_12, %c0_13, %c0_14] : memref<1x1x128xf32, #tpu.memory_space<vmem>>, vector<1x1x128xf32>
    %113 = vector.shape_cast %112 : vector<1x1x128xf32> to vector<1x128xf32>
    %114 = vector.broadcast %113 : vector<1x128xf32> to vector<64x128xf32>
    %115 = arith.addf %111, %114 : vector<64x128xf32>
    %c0_15 = arith.constant 0 : index
    %c0_16 = arith.constant 0 : index
    %c0_17 = arith.constant 0 : index
    %116 = vector.load %arg4[%c0_15, %c0_16, %c0_17] : memref<1x32x128xf32, #tpu.memory_space<vmem>>, vector<1x32x128xf32>
    %117 = vector.shape_cast %116 : vector<1x32x128xf32> to vector<32x128xf32>
    %cst_18 = arith.constant 0.000000e+00 : f32
    %118 = vector.broadcast %cst_18 : f32 to vector<8x32xf32>
    %cst_19 = arith.constant 0.000000e+00 : f32
    %119 = vector.broadcast %cst_19 : f32 to vector<8x32xf32>
    %120 = vector.extract_strided_slice %115 {offsets = [0, 0], sizes = [8, 128], strides = [1, 1]} : vector<64x128xf32> to vector<8x128xf32>
    %121 = vector.extract_strided_slice %115 {offsets = [56, 0], sizes = [8, 128], strides = [1, 1]} : vector<64x128xf32> to vector<8x128xf32>
    %122 = vector.shape_cast %20 : vector<1x128xi1> to vector<1x128xi1>
    %123 = vector.broadcast %122 : vector<1x128xi1> to vector<8x128xi1>
    %124 = arith.select %123, %120, %121 : vector<8x128xi1>, vector<8x128xf32>
    %cst_20 = arith.constant dense<0.000000e+00> : vector<8x128xf32>
    %125 = tpu.matmul %118, %117, %cst_20 {dimension_numbers = #tpu.dot_dimension_numbers<[1], [0], [0], [1], [0, 0, 1, 1], [], []>} : vector<8x32xf32>, vector<32x128xf32>, vector<8x128xf32> -> vector<8x128xf32>
    %126 = arith.addf %124, %125 : vector<8x128xf32>
    %127 = math.tanh %126 : vector<8x128xf32>
    %128 = arith.negf %126 : vector<8x128xf32>
    %129 = math.exp %128 : vector<8x128xf32>
    %cst_21 = arith.constant 1.000000e+00 : f32
    %130 = vector.broadcast %cst_21 : f32 to vector<8x128xf32>
    %131 = arith.addf %130, %129 : vector<8x128xf32>
    %132 = arith.divf %130, %131 : vector<8x128xf32>
    %133 = vector.shape_cast %25 : vector<1x128xi1> to vector<1x128xi1>
    %134 = vector.broadcast %133 : vector<1x128xi1> to vector<8x128xi1>
    %135 = arith.select %134, %127, %132 : vector<8x128xi1>, vector<8x128xf32>
    %136 = vector.extract_strided_slice %135 {offsets = [0, 0], sizes = [8, 32], strides = [1, 1]} : vector<8x128xf32> to vector<8x32xf32>
    %137 = vector.extract_strided_slice %135 {offsets = [0, 32], sizes = [8, 32], strides = [1, 1]} : vector<8x128xf32> to vector<8x32xf32>
    %138 = vector.extract_strided_slice %135 {offsets = [0, 64], sizes = [8, 32], strides = [1, 1]} : vector<8x128xf32> to vector<8x32xf32>
    %139 = vector.extract_strided_slice %135 {offsets = [0, 96], sizes = [8, 32], strides = [1, 1]} : vector<8x128xf32> to vector<8x32xf32>
    %140 = arith.mulf %137, %119 : vector<8x32xf32>
    %141 = arith.mulf %136, %138 : vector<8x32xf32>
    %142 = arith.addf %140, %141 : vector<8x32xf32>
    %143 = math.tanh %142 : vector<8x32xf32>
    %144 = arith.mulf %139, %143 : vector<8x32xf32>
    %145 = arith.subf %142, %119 : vector<8x32xf32>
    %146 = arith.mulf %43, %145 : vector<8x32xf32>
    %147 = arith.addf %119, %146 : vector<8x32xf32>
    %148 = arith.subf %144, %118 : vector<8x32xf32>
    %149 = arith.mulf %43, %148 : vector<8x32xf32>
    %150 = arith.addf %118, %149 : vector<8x32xf32>
    %151 = arith.mulf %43, %144 : vector<8x32xf32>
    %152 = vector.extract_strided_slice %151 {offsets = [0, 0], sizes = [8, 16], strides = [1, 1]} : vector<8x32xf32> to vector<8x16xf32>
    %c0_22 = arith.constant 0 : index
    %c0_23 = arith.constant 0 : index
    %153 = vector.load %arg12[%c0_22, %c0_23] : memref<64x32xf32, #tpu.memory_space<vmem>>, vector<8x16xf32>
    tpu.vector_store %arg12[%c0_22, %c0_23], %152 {strides = array<i32>} : memref<64x32xf32, #tpu.memory_space<vmem>>, vector<8x16xf32>,
    %154 = vector.extract_strided_slice %151 {offsets = [0, 16], sizes = [8, 16], strides = [1, 1]} : vector<8x32xf32> to vector<8x16xf32>
    %c56 = arith.constant 56 : index
    %c16 = arith.constant 16 : index
    %155 = vector.load %arg12[%c56, %c16] : memref<64x32xf32, #tpu.memory_space<vmem>>, vector<8x16xf32>
    tpu.vector_store %arg12[%c56, %c16], %154 {strides = array<i32>} : memref<64x32xf32, #tpu.memory_space<vmem>>, vector<8x16xf32>,
    %156 = vector.extract_strided_slice %115 {offsets = [8, 0], sizes = [8, 128], strides = [1, 1]} : vector<64x128xf32> to vector<8x128xf32>
    %157 = vector.extract_strided_slice %115 {offsets = [48, 0], sizes = [8, 128], strides = [1, 1]} : vector<64x128xf32> to vector<8x128xf32>
    %158 = vector.shape_cast %20 : vector<1x128xi1> to vector<1x128xi1>
    %159 = vector.broadcast %158 : vector<1x128xi1> to vector<8x128xi1>
    %160 = arith.select %159, %156, %157 : vector<8x128xi1>, vector<8x128xf32>
    %cst_24 = arith.constant dense<0.000000e+00> : vector<8x128xf32>
    %161 = tpu.matmul %150, %117, %cst_24 {dimension_numbers = #tpu.dot_dimension_numbers<[1], [0], [0], [1], [0, 0, 1, 1], [], []>} : vector<8x32xf32>, vector<32x128xf32>, vector<8x128xf32> -> vector<8x128xf32>
    %162 = arith.addf %160, %161 : vector<8x128xf32>
    %163 = math.tanh %162 : vector<8x128xf32>
    %164 = arith.negf %162 : vector<8x128xf32>
    %165 = math.exp %164 : vector<8x128xf32>
    %cst_25 = arith.constant 1.000000e+00 : f32
    %166 = vector.broadcast %cst_25 : f32 to vector<8x128xf32>
    %167 = arith.addf %166, %165 : vector<8x128xf32>
    %168 = arith.divf %166, %167 : vector<8x128xf32>
    %169 = vector.shape_cast %25 : vector<1x128xi1> to vector<1x128xi1>
    %170 = vector.broadcast %169 : vector<1x128xi1> to vector<8x128xi1>
    %171 = arith.select %170, %163, %168 : vector<8x128xi1>, vector<8x128xf32>
    %172 = vector.extract_strided_slice %171 {offsets = [0, 0], sizes = [8, 32], strides = [1, 1]} : vector<8x128xf32> to vector<8x32xf32>
    %173 = vector.extract_strided_slice %171 {offsets = [0, 32], sizes = [8, 32], strides = [1, 1]} : vector<8x128xf32> to vector<8x32xf32>
    %174 = vector.extract_strided_slice %171 {offsets = [0, 64], sizes = [8, 32], strides = [1, 1]} : vector<8x128xf32> to vector<8x32xf32>
    %175 = vector.extract_strided_slice %171 {offsets = [0, 96], sizes = [8, 32], strides = [1, 1]} : vector<8x128xf32> to vector<8x32xf32>
    %176 = arith.mulf %173, %147 : vector<8x32xf32>
    %177 = arith.mulf %172, %174 : vector<8x32xf32>
    %178 = arith.addf %176, %177 : vector<8x32xf32>
    %179 = math.tanh %178 : vector<8x32xf32>
    %180 = arith.mulf %175, %179 : vector<8x32xf32>
    %181 = arith.subf %178, %147 : vector<8x32xf32>
    %182 = arith.mulf %52, %181 : vector<8x32xf32>
    %183 = arith.addf %147, %182 : vector<8x32xf32>
    %184 = arith.subf %180, %150 : vector<8x32xf32>
    %185 = arith.mulf %52, %184 : vector<8x32xf32>
    %186 = arith.addf %150, %185 : vector<8x32xf32>
    %187 = arith.mulf %52, %180 : vector<8x32xf32>
    %188 = vector.extract_strided_slice %187 {offsets = [0, 0], sizes = [8, 16], strides = [1, 1]} : vector<8x32xf32> to vector<8x16xf32>
    %c8 = arith.constant 8 : index
    %c0_26 = arith.constant 0 : index
    %189 = vector.load %arg12[%c8, %c0_26] : memref<64x32xf32, #tpu.memory_space<vmem>>, vector<8x16xf32>
    tpu.vector_store %arg12[%c8, %c0_26], %188 {strides = array<i32>} : memref<64x32xf32, #tpu.memory_space<vmem>>, vector<8x16xf32>,
    %190 = vector.extract_strided_slice %187 {offsets = [0, 16], sizes = [8, 16], strides = [1, 1]} : vector<8x32xf32> to vector<8x16xf32>
    %c48 = arith.constant 48 : index
    %c16_27 = arith.constant 16 : index
    %191 = vector.load %arg12[%c48, %c16_27] : memref<64x32xf32, #tpu.memory_space<vmem>>, vector<8x16xf32>
    tpu.vector_store %arg12[%c48, %c16_27], %190 {strides = array<i32>} : memref<64x32xf32, #tpu.memory_space<vmem>>, vector<8x16xf32>,
    %192 = vector.extract_strided_slice %115 {offsets = [16, 0], sizes = [8, 128], strides = [1, 1]} : vector<64x128xf32> to vector<8x128xf32>
    %193 = vector.extract_strided_slice %115 {offsets = [40, 0], sizes = [8, 128], strides = [1, 1]} : vector<64x128xf32> to vector<8x128xf32>
    %194 = vector.shape_cast %20 : vector<1x128xi1> to vector<1x128xi1>
    %195 = vector.broadcast %194 : vector<1x128xi1> to vector<8x128xi1>
    %196 = arith.select %195, %192, %193 : vector<8x128xi1>, vector<8x128xf32>
    %cst_28 = arith.constant dense<0.000000e+00> : vector<8x128xf32>
    %197 = tpu.matmul %186, %117, %cst_28 {dimension_numbers = #tpu.dot_dimension_numbers<[1], [0], [0], [1], [0, 0, 1, 1], [], []>} : vector<8x32xf32>, vector<32x128xf32>, vector<8x128xf32> -> vector<8x128xf32>
    %198 = arith.addf %196, %197 : vector<8x128xf32>
    %199 = math.tanh %198 : vector<8x128xf32>
    %200 = arith.negf %198 : vector<8x128xf32>
    %201 = math.exp %200 : vector<8x128xf32>
    %cst_29 = arith.constant 1.000000e+00 : f32
    %202 = vector.broadcast %cst_29 : f32 to vector<8x128xf32>
    %203 = arith.addf %202, %201 : vector<8x128xf32>
    %204 = arith.divf %202, %203 : vector<8x128xf32>
    %205 = vector.shape_cast %25 : vector<1x128xi1> to vector<1x128xi1>
    %206 = vector.broadcast %205 : vector<1x128xi1> to vector<8x128xi1>
    %207 = arith.select %206, %199, %204 : vector<8x128xi1>, vector<8x128xf32>
    %208 = vector.extract_strided_slice %207 {offsets = [0, 0], sizes = [8, 32], strides = [1, 1]} : vector<8x128xf32> to vector<8x32xf32>
    %209 = vector.extract_strided_slice %207 {offsets = [0, 32], sizes = [8, 32], strides = [1, 1]} : vector<8x128xf32> to vector<8x32xf32>
    %210 = vector.extract_strided_slice %207 {offsets = [0, 64], sizes = [8, 32], strides = [1, 1]} : vector<8x128xf32> to vector<8x32xf32>
    %211 = vector.extract_strided_slice %207 {offsets = [0, 96], sizes = [8, 32], strides = [1, 1]} : vector<8x128xf32> to vector<8x32xf32>
    %212 = arith.mulf %209, %183 : vector<8x32xf32>
    %213 = arith.mulf %208, %210 : vector<8x32xf32>
    %214 = arith.addf %212, %213 : vector<8x32xf32>
    %215 = math.tanh %214 : vector<8x32xf32>
    %216 = arith.mulf %211, %215 : vector<8x32xf32>
    %217 = arith.subf %214, %183 : vector<8x32xf32>
    %218 = arith.mulf %61, %217 : vector<8x32xf32>
    %219 = arith.addf %183, %218 : vector<8x32xf32>
    %220 = arith.subf %216, %186 : vector<8x32xf32>
    %221 = arith.mulf %61, %220 : vector<8x32xf32>
    %222 = arith.addf %186, %221 : vector<8x32xf32>
    %223 = arith.mulf %61, %216 : vector<8x32xf32>
    %224 = vector.extract_strided_slice %223 {offsets = [0, 0], sizes = [8, 16], strides = [1, 1]} : vector<8x32xf32> to vector<8x16xf32>
    %c16_30 = arith.constant 16 : index
    %c0_31 = arith.constant 0 : index
    %225 = vector.load %arg12[%c16_30, %c0_31] : memref<64x32xf32, #tpu.memory_space<vmem>>, vector<8x16xf32>
    tpu.vector_store %arg12[%c16_30, %c0_31], %224 {strides = array<i32>} : memref<64x32xf32, #tpu.memory_space<vmem>>, vector<8x16xf32>,
    %226 = vector.extract_strided_slice %223 {offsets = [0, 16], sizes = [8, 16], strides = [1, 1]} : vector<8x32xf32> to vector<8x16xf32>
    %c40 = arith.constant 40 : index
    %c16_32 = arith.constant 16 : index
    %227 = vector.load %arg12[%c40, %c16_32] : memref<64x32xf32, #tpu.memory_space<vmem>>, vector<8x16xf32>
    tpu.vector_store %arg12[%c40, %c16_32], %226 {strides = array<i32>} : memref<64x32xf32, #tpu.memory_space<vmem>>, vector<8x16xf32>,
    %228 = vector.extract_strided_slice %115 {offsets = [24, 0], sizes = [8, 128], strides = [1, 1]} : vector<64x128xf32> to vector<8x128xf32>
    %229 = vector.extract_strided_slice %115 {offsets = [32, 0], sizes = [8, 128], strides = [1, 1]} : vector<64x128xf32> to vector<8x128xf32>
    %230 = vector.shape_cast %20 : vector<1x128xi1> to vector<1x128xi1>
    %231 = vector.broadcast %230 : vector<1x128xi1> to vector<8x128xi1>
    %232 = arith.select %231, %228, %229 : vector<8x128xi1>, vector<8x128xf32>
    %cst_33 = arith.constant dense<0.000000e+00> : vector<8x128xf32>
    %233 = tpu.matmul %222, %117, %cst_33 {dimension_numbers = #tpu.dot_dimension_numbers<[1], [0], [0], [1], [0, 0, 1, 1], [], []>} : vector<8x32xf32>, vector<32x128xf32>, vector<8x128xf32> -> vector<8x128xf32>
    %234 = arith.addf %232, %233 : vector<8x128xf32>
    %235 = math.tanh %234 : vector<8x128xf32>
    %236 = arith.negf %234 : vector<8x128xf32>
    %237 = math.exp %236 : vector<8x128xf32>
    %cst_34 = arith.constant 1.000000e+00 : f32
    %238 = vector.broadcast %cst_34 : f32 to vector<8x128xf32>
    %239 = arith.addf %238, %237 : vector<8x128xf32>
    %240 = arith.divf %238, %239 : vector<8x128xf32>
    %241 = vector.shape_cast %25 : vector<1x128xi1> to vector<1x128xi1>
    %242 = vector.broadcast %241 : vector<1x128xi1> to vector<8x128xi1>
    %243 = arith.select %242, %235, %240 : vector<8x128xi1>, vector<8x128xf32>
    %244 = vector.extract_strided_slice %243 {offsets = [0, 0], sizes = [8, 32], strides = [1, 1]} : vector<8x128xf32> to vector<8x32xf32>
    %245 = vector.extract_strided_slice %243 {offsets = [0, 32], sizes = [8, 32], strides = [1, 1]} : vector<8x128xf32> to vector<8x32xf32>
    %246 = vector.extract_strided_slice %243 {offsets = [0, 64], sizes = [8, 32], strides = [1, 1]} : vector<8x128xf32> to vector<8x32xf32>
    %247 = vector.extract_strided_slice %243 {offsets = [0, 96], sizes = [8, 32], strides = [1, 1]} : vector<8x128xf32> to vector<8x32xf32>
    %248 = arith.mulf %245, %219 : vector<8x32xf32>
    %249 = arith.mulf %244, %246 : vector<8x32xf32>
    %250 = arith.addf %248, %249 : vector<8x32xf32>
    %251 = math.tanh %250 : vector<8x32xf32>
    %252 = arith.mulf %247, %251 : vector<8x32xf32>
    %253 = arith.subf %250, %219 : vector<8x32xf32>
    %254 = arith.mulf %70, %253 : vector<8x32xf32>
    %255 = arith.addf %219, %254 : vector<8x32xf32>
    %256 = arith.subf %252, %222 : vector<8x32xf32>
    %257 = arith.mulf %70, %256 : vector<8x32xf32>
    %258 = arith.addf %222, %257 : vector<8x32xf32>
    %259 = arith.mulf %70, %252 : vector<8x32xf32>
    %260 = vector.extract_strided_slice %259 {offsets = [0, 0], sizes = [8, 16], strides = [1, 1]} : vector<8x32xf32> to vector<8x16xf32>
    %c24 = arith.constant 24 : index
    %c0_35 = arith.constant 0 : index
    %261 = vector.load %arg12[%c24, %c0_35] : memref<64x32xf32, #tpu.memory_space<vmem>>, vector<8x16xf32>
    tpu.vector_store %arg12[%c24, %c0_35], %260 {strides = array<i32>} : memref<64x32xf32, #tpu.memory_space<vmem>>, vector<8x16xf32>,
    %262 = vector.extract_strided_slice %259 {offsets = [0, 16], sizes = [8, 16], strides = [1, 1]} : vector<8x32xf32> to vector<8x16xf32>
    %c32 = arith.constant 32 : index
    %c16_36 = arith.constant 16 : index
    %263 = vector.load %arg12[%c32, %c16_36] : memref<64x32xf32, #tpu.memory_space<vmem>>, vector<8x16xf32>
    tpu.vector_store %arg12[%c32, %c16_36], %262 {strides = array<i32>} : memref<64x32xf32, #tpu.memory_space<vmem>>, vector<8x16xf32>,
    %264 = vector.extract_strided_slice %115 {offsets = [32, 0], sizes = [8, 128], strides = [1, 1]} : vector<64x128xf32> to vector<8x128xf32>
    %265 = vector.extract_strided_slice %115 {offsets = [24, 0], sizes = [8, 128], strides = [1, 1]} : vector<64x128xf32> to vector<8x128xf32>
    %266 = vector.shape_cast %20 : vector<1x128xi1> to vector<1x128xi1>
    %267 = vector.broadcast %266 : vector<1x128xi1> to vector<8x128xi1>
    %268 = arith.select %267, %264, %265 : vector<8x128xi1>, vector<8x128xf32>
    %cst_37 = arith.constant dense<0.000000e+00> : vector<8x128xf32>
    %269 = tpu.matmul %258, %117, %cst_37 {dimension_numbers = #tpu.dot_dimension_numbers<[1], [0], [0], [1], [0, 0, 1, 1], [], []>} : vector<8x32xf32>, vector<32x128xf32>, vector<8x128xf32> -> vector<8x128xf32>
    %270 = arith.addf %268, %269 : vector<8x128xf32>
    %271 = math.tanh %270 : vector<8x128xf32>
    %272 = arith.negf %270 : vector<8x128xf32>
    %273 = math.exp %272 : vector<8x128xf32>
    %cst_38 = arith.constant 1.000000e+00 : f32
    %274 = vector.broadcast %cst_38 : f32 to vector<8x128xf32>
    %275 = arith.addf %274, %273 : vector<8x128xf32>
    %276 = arith.divf %274, %275 : vector<8x128xf32>
    %277 = vector.shape_cast %25 : vector<1x128xi1> to vector<1x128xi1>
    %278 = vector.broadcast %277 : vector<1x128xi1> to vector<8x128xi1>
    %279 = arith.select %278, %271, %276 : vector<8x128xi1>, vector<8x128xf32>
    %280 = vector.extract_strided_slice %279 {offsets = [0, 0], sizes = [8, 32], strides = [1, 1]} : vector<8x128xf32> to vector<8x32xf32>
    %281 = vector.extract_strided_slice %279 {offsets = [0, 32], sizes = [8, 32], strides = [1, 1]} : vector<8x128xf32> to vector<8x32xf32>
    %282 = vector.extract_strided_slice %279 {offsets = [0, 64], sizes = [8, 32], strides = [1, 1]} : vector<8x128xf32> to vector<8x32xf32>
    %283 = vector.extract_strided_slice %279 {offsets = [0, 96], sizes = [8, 32], strides = [1, 1]} : vector<8x128xf32> to vector<8x32xf32>
    %284 = arith.mulf %281, %255 : vector<8x32xf32>
    %285 = arith.mulf %280, %282 : vector<8x32xf32>
    %286 = arith.addf %284, %285 : vector<8x32xf32>
    %287 = math.tanh %286 : vector<8x32xf32>
    %288 = arith.mulf %283, %287 : vector<8x32xf32>
    %289 = arith.subf %286, %255 : vector<8x32xf32>
    %290 = arith.mulf %79, %289 : vector<8x32xf32>
    %291 = arith.addf %255, %290 : vector<8x32xf32>
    %292 = arith.subf %288, %258 : vector<8x32xf32>
    %293 = arith.mulf %79, %292 : vector<8x32xf32>
    %294 = arith.addf %258, %293 : vector<8x32xf32>
    %295 = arith.mulf %79, %288 : vector<8x32xf32>
    %296 = vector.extract_strided_slice %295 {offsets = [0, 0], sizes = [8, 16], strides = [1, 1]} : vector<8x32xf32> to vector<8x16xf32>
    %c32_39 = arith.constant 32 : index
    %c0_40 = arith.constant 0 : index
    %297 = vector.load %arg12[%c32_39, %c0_40] : memref<64x32xf32, #tpu.memory_space<vmem>>, vector<8x16xf32>
    tpu.vector_store %arg12[%c32_39, %c0_40], %296 {strides = array<i32>} : memref<64x32xf32, #tpu.memory_space<vmem>>, vector<8x16xf32>,
    %298 = vector.extract_strided_slice %295 {offsets = [0, 16], sizes = [8, 16], strides = [1, 1]} : vector<8x32xf32> to vector<8x16xf32>
    %c24_41 = arith.constant 24 : index
    %c16_42 = arith.constant 16 : index
    %299 = vector.load %arg12[%c24_41, %c16_42] : memref<64x32xf32, #tpu.memory_space<vmem>>, vector<8x16xf32>
    tpu.vector_store %arg12[%c24_41, %c16_42], %298 {strides = array<i32>} : memref<64x32xf32, #tpu.memory_space<vmem>>, vector<8x16xf32>,
    %300 = vector.extract_strided_slice %115 {offsets = [40, 0], sizes = [8, 128], strides = [1, 1]} : vector<64x128xf32> to vector<8x128xf32>
    %301 = vector.extract_strided_slice %115 {offsets = [16, 0], sizes = [8, 128], strides = [1, 1]} : vector<64x128xf32> to vector<8x128xf32>
    %302 = vector.shape_cast %20 : vector<1x128xi1> to vector<1x128xi1>
    %303 = vector.broadcast %302 : vector<1x128xi1> to vector<8x128xi1>
    %304 = arith.select %303, %300, %301 : vector<8x128xi1>, vector<8x128xf32>
    %cst_43 = arith.constant dense<0.000000e+00> : vector<8x128xf32>
    %305 = tpu.matmul %294, %117, %cst_43 {dimension_numbers = #tpu.dot_dimension_numbers<[1], [0], [0], [1], [0, 0, 1, 1], [], []>} : vector<8x32xf32>, vector<32x128xf32>, vector<8x128xf32> -> vector<8x128xf32>
    %306 = arith.addf %304, %305 : vector<8x128xf32>
    %307 = math.tanh %306 : vector<8x128xf32>
    %308 = arith.negf %306 : vector<8x128xf32>
    %309 = math.exp %308 : vector<8x128xf32>
    %cst_44 = arith.constant 1.000000e+00 : f32
    %310 = vector.broadcast %cst_44 : f32 to vector<8x128xf32>
    %311 = arith.addf %310, %309 : vector<8x128xf32>
    %312 = arith.divf %310, %311 : vector<8x128xf32>
    %313 = vector.shape_cast %25 : vector<1x128xi1> to vector<1x128xi1>
    %314 = vector.broadcast %313 : vector<1x128xi1> to vector<8x128xi1>
    %315 = arith.select %314, %307, %312 : vector<8x128xi1>, vector<8x128xf32>
    %316 = vector.extract_strided_slice %315 {offsets = [0, 0], sizes = [8, 32], strides = [1, 1]} : vector<8x128xf32> to vector<8x32xf32>
    %317 = vector.extract_strided_slice %315 {offsets = [0, 32], sizes = [8, 32], strides = [1, 1]} : vector<8x128xf32> to vector<8x32xf32>
    %318 = vector.extract_strided_slice %315 {offsets = [0, 64], sizes = [8, 32], strides = [1, 1]} : vector<8x128xf32> to vector<8x32xf32>
    %319 = vector.extract_strided_slice %315 {offsets = [0, 96], sizes = [8, 32], strides = [1, 1]} : vector<8x128xf32> to vector<8x32xf32>
    %320 = arith.mulf %317, %291 : vector<8x32xf32>
    %321 = arith.mulf %316, %318 : vector<8x32xf32>
    %322 = arith.addf %320, %321 : vector<8x32xf32>
    %323 = math.tanh %322 : vector<8x32xf32>
    %324 = arith.mulf %319, %323 : vector<8x32xf32>
    %325 = arith.subf %322, %291 : vector<8x32xf32>
    %326 = arith.mulf %88, %325 : vector<8x32xf32>
    %327 = arith.addf %291, %326 : vector<8x32xf32>
    %328 = arith.subf %324, %294 : vector<8x32xf32>
    %329 = arith.mulf %88, %328 : vector<8x32xf32>
    %330 = arith.addf %294, %329 : vector<8x32xf32>
    %331 = arith.mulf %88, %324 : vector<8x32xf32>
    %332 = vector.extract_strided_slice %331 {offsets = [0, 0], sizes = [8, 16], strides = [1, 1]} : vector<8x32xf32> to vector<8x16xf32>
    %c40_45 = arith.constant 40 : index
    %c0_46 = arith.constant 0 : index
    %333 = vector.load %arg12[%c40_45, %c0_46] : memref<64x32xf32, #tpu.memory_space<vmem>>, vector<8x16xf32>
    tpu.vector_store %arg12[%c40_45, %c0_46], %332 {strides = array<i32>} : memref<64x32xf32, #tpu.memory_space<vmem>>, vector<8x16xf32>,
    %334 = vector.extract_strided_slice %331 {offsets = [0, 16], sizes = [8, 16], strides = [1, 1]} : vector<8x32xf32> to vector<8x16xf32>
    %c16_47 = arith.constant 16 : index
    %c16_48 = arith.constant 16 : index
    %335 = vector.load %arg12[%c16_47, %c16_48] : memref<64x32xf32, #tpu.memory_space<vmem>>, vector<8x16xf32>
    tpu.vector_store %arg12[%c16_47, %c16_48], %334 {strides = array<i32>} : memref<64x32xf32, #tpu.memory_space<vmem>>, vector<8x16xf32>,
    %336 = vector.extract_strided_slice %115 {offsets = [48, 0], sizes = [8, 128], strides = [1, 1]} : vector<64x128xf32> to vector<8x128xf32>
    %337 = vector.extract_strided_slice %115 {offsets = [8, 0], sizes = [8, 128], strides = [1, 1]} : vector<64x128xf32> to vector<8x128xf32>
    %338 = vector.shape_cast %20 : vector<1x128xi1> to vector<1x128xi1>
    %339 = vector.broadcast %338 : vector<1x128xi1> to vector<8x128xi1>
    %340 = arith.select %339, %336, %337 : vector<8x128xi1>, vector<8x128xf32>
    %cst_49 = arith.constant dense<0.000000e+00> : vector<8x128xf32>
    %341 = tpu.matmul %330, %117, %cst_49 {dimension_numbers = #tpu.dot_dimension_numbers<[1], [0], [0], [1], [0, 0, 1, 1], [], []>} : vector<8x32xf32>, vector<32x128xf32>, vector<8x128xf32> -> vector<8x128xf32>
    %342 = arith.addf %340, %341 : vector<8x128xf32>
    %343 = math.tanh %342 : vector<8x128xf32>
    %344 = arith.negf %342 : vector<8x128xf32>
    %345 = math.exp %344 : vector<8x128xf32>
    %cst_50 = arith.constant 1.000000e+00 : f32
    %346 = vector.broadcast %cst_50 : f32 to vector<8x128xf32>
    %347 = arith.addf %346, %345 : vector<8x128xf32>
    %348 = arith.divf %346, %347 : vector<8x128xf32>
    %349 = vector.shape_cast %25 : vector<1x128xi1> to vector<1x128xi1>
    %350 = vector.broadcast %349 : vector<1x128xi1> to vector<8x128xi1>
    %351 = arith.select %350, %343, %348 : vector<8x128xi1>, vector<8x128xf32>
    %352 = vector.extract_strided_slice %351 {offsets = [0, 0], sizes = [8, 32], strides = [1, 1]} : vector<8x128xf32> to vector<8x32xf32>
    %353 = vector.extract_strided_slice %351 {offsets = [0, 32], sizes = [8, 32], strides = [1, 1]} : vector<8x128xf32> to vector<8x32xf32>
    %354 = vector.extract_strided_slice %351 {offsets = [0, 64], sizes = [8, 32], strides = [1, 1]} : vector<8x128xf32> to vector<8x32xf32>
    %355 = vector.extract_strided_slice %351 {offsets = [0, 96], sizes = [8, 32], strides = [1, 1]} : vector<8x128xf32> to vector<8x32xf32>
    %356 = arith.mulf %353, %327 : vector<8x32xf32>
    %357 = arith.mulf %352, %354 : vector<8x32xf32>
    %358 = arith.addf %356, %357 : vector<8x32xf32>
    %359 = math.tanh %358 : vector<8x32xf32>
    %360 = arith.mulf %355, %359 : vector<8x32xf32>
    %361 = arith.subf %358, %327 : vector<8x32xf32>
    %362 = arith.mulf %97, %361 : vector<8x32xf32>
    %363 = arith.addf %327, %362 : vector<8x32xf32>
    %364 = arith.subf %360, %330 : vector<8x32xf32>
    %365 = arith.mulf %97, %364 : vector<8x32xf32>
    %366 = arith.addf %330, %365 : vector<8x32xf32>
    %367 = arith.mulf %97, %360 : vector<8x32xf32>
    %368 = vector.extract_strided_slice %367 {offsets = [0, 0], sizes = [8, 16], strides = [1, 1]} : vector<8x32xf32> to vector<8x16xf32>
    %c48_51 = arith.constant 48 : index
    %c0_52 = arith.constant 0 : index
    %369 = vector.load %arg12[%c48_51, %c0_52] : memref<64x32xf32, #tpu.memory_space<vmem>>, vector<8x16xf32>
    tpu.vector_store %arg12[%c48_51, %c0_52], %368 {strides = array<i32>} : memref<64x32xf32, #tpu.memory_space<vmem>>, vector<8x16xf32>,
    %370 = vector.extract_strided_slice %367 {offsets = [0, 16], sizes = [8, 16], strides = [1, 1]} : vector<8x32xf32> to vector<8x16xf32>
    %c8_53 = arith.constant 8 : index
    %c16_54 = arith.constant 16 : index
    %371 = vector.load %arg12[%c8_53, %c16_54] : memref<64x32xf32, #tpu.memory_space<vmem>>, vector<8x16xf32>
    tpu.vector_store %arg12[%c8_53, %c16_54], %370 {strides = array<i32>} : memref<64x32xf32, #tpu.memory_space<vmem>>, vector<8x16xf32>,
    %372 = vector.extract_strided_slice %115 {offsets = [56, 0], sizes = [8, 128], strides = [1, 1]} : vector<64x128xf32> to vector<8x128xf32>
    %373 = vector.extract_strided_slice %115 {offsets = [0, 0], sizes = [8, 128], strides = [1, 1]} : vector<64x128xf32> to vector<8x128xf32>
    %374 = vector.shape_cast %20 : vector<1x128xi1> to vector<1x128xi1>
    %375 = vector.broadcast %374 : vector<1x128xi1> to vector<8x128xi1>
    %376 = arith.select %375, %372, %373 : vector<8x128xi1>, vector<8x128xf32>
    %cst_55 = arith.constant dense<0.000000e+00> : vector<8x128xf32>
    %377 = tpu.matmul %366, %117, %cst_55 {dimension_numbers = #tpu.dot_dimension_numbers<[1], [0], [0], [1], [0, 0, 1, 1], [], []>} : vector<8x32xf32>, vector<32x128xf32>, vector<8x128xf32> -> vector<8x128xf32>
    %378 = arith.addf %376, %377 : vector<8x128xf32>
    %379 = math.tanh %378 : vector<8x128xf32>
    %380 = arith.negf %378 : vector<8x128xf32>
    %381 = math.exp %380 : vector<8x128xf32>
    %cst_56 = arith.constant 1.000000e+00 : f32
    %382 = vector.broadcast %cst_56 : f32 to vector<8x128xf32>
    %383 = arith.addf %382, %381 : vector<8x128xf32>
    %384 = arith.divf %382, %383 : vector<8x128xf32>
    %385 = vector.shape_cast %25 : vector<1x128xi1> to vector<1x128xi1>
    %386 = vector.broadcast %385 : vector<1x128xi1> to vector<8x128xi1>
    %387 = arith.select %386, %379, %384 : vector<8x128xi1>, vector<8x128xf32>
    %388 = vector.extract_strided_slice %387 {offsets = [0, 0], sizes = [8, 32], strides = [1, 1]} : vector<8x128xf32> to vector<8x32xf32>
    %389 = vector.extract_strided_slice %387 {offsets = [0, 32], sizes = [8, 32], strides = [1, 1]} : vector<8x128xf32> to vector<8x32xf32>
    %390 = vector.extract_strided_slice %387 {offsets = [0, 64], sizes = [8, 32], strides = [1, 1]} : vector<8x128xf32> to vector<8x32xf32>
    %391 = vector.extract_strided_slice %387 {offsets = [0, 96], sizes = [8, 32], strides = [1, 1]} : vector<8x128xf32> to vector<8x32xf32>
    %392 = arith.mulf %389, %363 : vector<8x32xf32>
    %393 = arith.mulf %388, %390 : vector<8x32xf32>
    %394 = arith.addf %392, %393 : vector<8x32xf32>
    %395 = math.tanh %394 : vector<8x32xf32>
    %396 = arith.mulf %391, %395 : vector<8x32xf32>
    %397 = arith.mulf %106, %396 : vector<8x32xf32>
    %398 = vector.extract_strided_slice %397 {offsets = [0, 0], sizes = [8, 16], strides = [1, 1]} : vector<8x32xf32> to vector<8x16xf32>
    %c56_57 = arith.constant 56 : index
    %c0_58 = arith.constant 0 : index
    %399 = vector.load %arg12[%c56_57, %c0_58] : memref<64x32xf32, #tpu.memory_space<vmem>>, vector<8x16xf32>
    tpu.vector_store %arg12[%c56_57, %c0_58], %398 {strides = array<i32>} : memref<64x32xf32, #tpu.memory_space<vmem>>, vector<8x16xf32>,
    %400 = vector.extract_strided_slice %397 {offsets = [0, 16], sizes = [8, 16], strides = [1, 1]} : vector<8x32xf32> to vector<8x16xf32>
    %c0_59 = arith.constant 0 : index
    %c16_60 = arith.constant 16 : index
    %401 = vector.load %arg12[%c0_59, %c16_60] : memref<64x32xf32, #tpu.memory_space<vmem>>, vector<8x16xf32>
    tpu.vector_store %arg12[%c0_59, %c16_60], %400 {strides = array<i32>} : memref<64x32xf32, #tpu.memory_space<vmem>>, vector<8x16xf32>,
    %c0_61 = arith.constant 0 : index
    %c0_62 = arith.constant 0 : index
    %402 = vector.load %arg12[%c0_61, %c0_62] : memref<64x32xf32, #tpu.memory_space<vmem>>, vector<64x32xf32>
    %c0_63 = arith.constant 0 : index
    %c0_64 = arith.constant 0 : index
    %c0_65 = arith.constant 0 : index
    %403 = vector.load %arg6[%c0_63, %c0_64, %c0_65] : memref<1x32x128xf32, #tpu.memory_space<vmem>>, vector<1x32x128xf32>
    %404 = vector.shape_cast %403 : vector<1x32x128xf32> to vector<32x128xf32>
    %cst_66 = arith.constant dense<0.000000e+00> : vector<64x128xf32>
    %405 = tpu.matmul %402, %404, %cst_66 {dimension_numbers = #tpu.dot_dimension_numbers<[1], [0], [0], [1], [0, 0, 1, 1], [], []>} : vector<64x32xf32>, vector<32x128xf32>, vector<64x128xf32> -> vector<64x128xf32>
    %c0_67 = arith.constant 0 : index
    %c0_68 = arith.constant 0 : index
    %c0_69 = arith.constant 0 : index
    %406 = vector.load %arg8[%c0_67, %c0_68, %c0_69] : memref<1x1x128xf32, #tpu.memory_space<vmem>>, vector<1x1x128xf32>
    %407 = vector.shape_cast %406 : vector<1x1x128xf32> to vector<1x128xf32>
    %408 = vector.broadcast %407 : vector<1x128xf32> to vector<64x128xf32>
    %409 = arith.addf %405, %408 : vector<64x128xf32>
    %c0_70 = arith.constant 0 : index
    %c0_71 = arith.constant 0 : index
    %c0_72 = arith.constant 0 : index
    %410 = vector.load %arg7[%c0_70, %c0_71, %c0_72] : memref<1x32x128xf32, #tpu.memory_space<vmem>>, vector<1x32x128xf32>
    %411 = vector.shape_cast %410 : vector<1x32x128xf32> to vector<32x128xf32>
    %cst_73 = arith.constant 0.000000e+00 : f32
    %412 = vector.broadcast %cst_73 : f32 to vector<8x32xf32>
    %cst_74 = arith.constant 0.000000e+00 : f32
    %413 = vector.broadcast %cst_74 : f32 to vector<8x32xf32>
    %414 = vector.extract_strided_slice %409 {offsets = [0, 0], sizes = [8, 128], strides = [1, 1]} : vector<64x128xf32> to vector<8x128xf32>
    %415 = vector.extract_strided_slice %409 {offsets = [56, 0], sizes = [8, 128], strides = [1, 1]} : vector<64x128xf32> to vector<8x128xf32>
    %416 = vector.shape_cast %20 : vector<1x128xi1> to vector<1x128xi1>
    %417 = vector.broadcast %416 : vector<1x128xi1> to vector<8x128xi1>
    %418 = arith.select %417, %414, %415 : vector<8x128xi1>, vector<8x128xf32>
    %cst_75 = arith.constant dense<0.000000e+00> : vector<8x128xf32>
    %419 = tpu.matmul %412, %411, %cst_75 {dimension_numbers = #tpu.dot_dimension_numbers<[1], [0], [0], [1], [0, 0, 1, 1], [], []>} : vector<8x32xf32>, vector<32x128xf32>, vector<8x128xf32> -> vector<8x128xf32>
    %420 = arith.addf %418, %419 : vector<8x128xf32>
    %421 = math.tanh %420 : vector<8x128xf32>
    %422 = arith.negf %420 : vector<8x128xf32>
    %423 = math.exp %422 : vector<8x128xf32>
    %cst_76 = arith.constant 1.000000e+00 : f32
    %424 = vector.broadcast %cst_76 : f32 to vector<8x128xf32>
    %425 = arith.addf %424, %423 : vector<8x128xf32>
    %426 = arith.divf %424, %425 : vector<8x128xf32>
    %427 = vector.shape_cast %25 : vector<1x128xi1> to vector<1x128xi1>
    %428 = vector.broadcast %427 : vector<1x128xi1> to vector<8x128xi1>
    %429 = arith.select %428, %421, %426 : vector<8x128xi1>, vector<8x128xf32>
    %430 = vector.extract_strided_slice %429 {offsets = [0, 0], sizes = [8, 32], strides = [1, 1]} : vector<8x128xf32> to vector<8x32xf32>
    %431 = vector.extract_strided_slice %429 {offsets = [0, 32], sizes = [8, 32], strides = [1, 1]} : vector<8x128xf32> to vector<8x32xf32>
    %432 = vector.extract_strided_slice %429 {offsets = [0, 64], sizes = [8, 32], strides = [1, 1]} : vector<8x128xf32> to vector<8x32xf32>
    %433 = vector.extract_strided_slice %429 {offsets = [0, 96], sizes = [8, 32], strides = [1, 1]} : vector<8x128xf32> to vector<8x32xf32>
    %434 = arith.mulf %431, %413 : vector<8x32xf32>
    %435 = arith.mulf %430, %432 : vector<8x32xf32>
    %436 = arith.addf %434, %435 : vector<8x32xf32>
    %437 = math.tanh %436 : vector<8x32xf32>
    %438 = arith.mulf %433, %437 : vector<8x32xf32>
    %439 = arith.subf %436, %413 : vector<8x32xf32>
    %440 = arith.mulf %43, %439 : vector<8x32xf32>
    %441 = arith.addf %413, %440 : vector<8x32xf32>
    %442 = arith.subf %438, %412 : vector<8x32xf32>
    %443 = arith.mulf %43, %442 : vector<8x32xf32>
    %444 = arith.addf %412, %443 : vector<8x32xf32>
    %445 = arith.mulf %43, %438 : vector<8x32xf32>
    %446 = vector.extract_strided_slice %445 {offsets = [0, 0], sizes = [8, 16], strides = [1, 1]} : vector<8x32xf32> to vector<8x16xf32>
    %c0_77 = arith.constant 0 : index
    %c0_78 = arith.constant 0 : index
    %447 = vector.load %arg12[%c0_77, %c0_78] : memref<64x32xf32, #tpu.memory_space<vmem>>, vector<8x16xf32>
    tpu.vector_store %arg12[%c0_77, %c0_78], %446 {strides = array<i32>} : memref<64x32xf32, #tpu.memory_space<vmem>>, vector<8x16xf32>,
    %448 = vector.extract_strided_slice %445 {offsets = [0, 16], sizes = [8, 16], strides = [1, 1]} : vector<8x32xf32> to vector<8x16xf32>
    %c56_79 = arith.constant 56 : index
    %c16_80 = arith.constant 16 : index
    %449 = vector.load %arg12[%c56_79, %c16_80] : memref<64x32xf32, #tpu.memory_space<vmem>>, vector<8x16xf32>
    tpu.vector_store %arg12[%c56_79, %c16_80], %448 {strides = array<i32>} : memref<64x32xf32, #tpu.memory_space<vmem>>, vector<8x16xf32>,
    %450 = vector.extract_strided_slice %409 {offsets = [8, 0], sizes = [8, 128], strides = [1, 1]} : vector<64x128xf32> to vector<8x128xf32>
    %451 = vector.extract_strided_slice %409 {offsets = [48, 0], sizes = [8, 128], strides = [1, 1]} : vector<64x128xf32> to vector<8x128xf32>
    %452 = vector.shape_cast %20 : vector<1x128xi1> to vector<1x128xi1>
    %453 = vector.broadcast %452 : vector<1x128xi1> to vector<8x128xi1>
    %454 = arith.select %453, %450, %451 : vector<8x128xi1>, vector<8x128xf32>
    %cst_81 = arith.constant dense<0.000000e+00> : vector<8x128xf32>
    %455 = tpu.matmul %444, %411, %cst_81 {dimension_numbers = #tpu.dot_dimension_numbers<[1], [0], [0], [1], [0, 0, 1, 1], [], []>} : vector<8x32xf32>, vector<32x128xf32>, vector<8x128xf32> -> vector<8x128xf32>
    %456 = arith.addf %454, %455 : vector<8x128xf32>
    %457 = math.tanh %456 : vector<8x128xf32>
    %458 = arith.negf %456 : vector<8x128xf32>
    %459 = math.exp %458 : vector<8x128xf32>
    %cst_82 = arith.constant 1.000000e+00 : f32
    %460 = vector.broadcast %cst_82 : f32 to vector<8x128xf32>
    %461 = arith.addf %460, %459 : vector<8x128xf32>
    %462 = arith.divf %460, %461 : vector<8x128xf32>
    %463 = vector.shape_cast %25 : vector<1x128xi1> to vector<1x128xi1>
    %464 = vector.broadcast %463 : vector<1x128xi1> to vector<8x128xi1>
    %465 = arith.select %464, %457, %462 : vector<8x128xi1>, vector<8x128xf32>
    %466 = vector.extract_strided_slice %465 {offsets = [0, 0], sizes = [8, 32], strides = [1, 1]} : vector<8x128xf32> to vector<8x32xf32>
    %467 = vector.extract_strided_slice %465 {offsets = [0, 32], sizes = [8, 32], strides = [1, 1]} : vector<8x128xf32> to vector<8x32xf32>
    %468 = vector.extract_strided_slice %465 {offsets = [0, 64], sizes = [8, 32], strides = [1, 1]} : vector<8x128xf32> to vector<8x32xf32>
    %469 = vector.extract_strided_slice %465 {offsets = [0, 96], sizes = [8, 32], strides = [1, 1]} : vector<8x128xf32> to vector<8x32xf32>
    %470 = arith.mulf %467, %441 : vector<8x32xf32>
    %471 = arith.mulf %466, %468 : vector<8x32xf32>
    %472 = arith.addf %470, %471 : vector<8x32xf32>
    %473 = math.tanh %472 : vector<8x32xf32>
    %474 = arith.mulf %469, %473 : vector<8x32xf32>
    %475 = arith.subf %472, %441 : vector<8x32xf32>
    %476 = arith.mulf %52, %475 : vector<8x32xf32>
    %477 = arith.addf %441, %476 : vector<8x32xf32>
    %478 = arith.subf %474, %444 : vector<8x32xf32>
    %479 = arith.mulf %52, %478 : vector<8x32xf32>
    %480 = arith.addf %444, %479 : vector<8x32xf32>
    %481 = arith.mulf %52, %474 : vector<8x32xf32>
    %482 = vector.extract_strided_slice %481 {offsets = [0, 0], sizes = [8, 16], strides = [1, 1]} : vector<8x32xf32> to vector<8x16xf32>
    %c8_83 = arith.constant 8 : index
    %c0_84 = arith.constant 0 : index
    %483 = vector.load %arg12[%c8_83, %c0_84] : memref<64x32xf32, #tpu.memory_space<vmem>>, vector<8x16xf32>
    tpu.vector_store %arg12[%c8_83, %c0_84], %482 {strides = array<i32>} : memref<64x32xf32, #tpu.memory_space<vmem>>, vector<8x16xf32>,
    %484 = vector.extract_strided_slice %481 {offsets = [0, 16], sizes = [8, 16], strides = [1, 1]} : vector<8x32xf32> to vector<8x16xf32>
    %c48_85 = arith.constant 48 : index
    %c16_86 = arith.constant 16 : index
    %485 = vector.load %arg12[%c48_85, %c16_86] : memref<64x32xf32, #tpu.memory_space<vmem>>, vector<8x16xf32>
    tpu.vector_store %arg12[%c48_85, %c16_86], %484 {strides = array<i32>} : memref<64x32xf32, #tpu.memory_space<vmem>>, vector<8x16xf32>,
    %486 = vector.extract_strided_slice %409 {offsets = [16, 0], sizes = [8, 128], strides = [1, 1]} : vector<64x128xf32> to vector<8x128xf32>
    %487 = vector.extract_strided_slice %409 {offsets = [40, 0], sizes = [8, 128], strides = [1, 1]} : vector<64x128xf32> to vector<8x128xf32>
    %488 = vector.shape_cast %20 : vector<1x128xi1> to vector<1x128xi1>
    %489 = vector.broadcast %488 : vector<1x128xi1> to vector<8x128xi1>
    %490 = arith.select %489, %486, %487 : vector<8x128xi1>, vector<8x128xf32>
    %cst_87 = arith.constant dense<0.000000e+00> : vector<8x128xf32>
    %491 = tpu.matmul %480, %411, %cst_87 {dimension_numbers = #tpu.dot_dimension_numbers<[1], [0], [0], [1], [0, 0, 1, 1], [], []>} : vector<8x32xf32>, vector<32x128xf32>, vector<8x128xf32> -> vector<8x128xf32>
    %492 = arith.addf %490, %491 : vector<8x128xf32>
    %493 = math.tanh %492 : vector<8x128xf32>
    %494 = arith.negf %492 : vector<8x128xf32>
    %495 = math.exp %494 : vector<8x128xf32>
    %cst_88 = arith.constant 1.000000e+00 : f32
    %496 = vector.broadcast %cst_88 : f32 to vector<8x128xf32>
    %497 = arith.addf %496, %495 : vector<8x128xf32>
    %498 = arith.divf %496, %497 : vector<8x128xf32>
    %499 = vector.shape_cast %25 : vector<1x128xi1> to vector<1x128xi1>
    %500 = vector.broadcast %499 : vector<1x128xi1> to vector<8x128xi1>
    %501 = arith.select %500, %493, %498 : vector<8x128xi1>, vector<8x128xf32>
    %502 = vector.extract_strided_slice %501 {offsets = [0, 0], sizes = [8, 32], strides = [1, 1]} : vector<8x128xf32> to vector<8x32xf32>
    %503 = vector.extract_strided_slice %501 {offsets = [0, 32], sizes = [8, 32], strides = [1, 1]} : vector<8x128xf32> to vector<8x32xf32>
    %504 = vector.extract_strided_slice %501 {offsets = [0, 64], sizes = [8, 32], strides = [1, 1]} : vector<8x128xf32> to vector<8x32xf32>
    %505 = vector.extract_strided_slice %501 {offsets = [0, 96], sizes = [8, 32], strides = [1, 1]} : vector<8x128xf32> to vector<8x32xf32>
    %506 = arith.mulf %503, %477 : vector<8x32xf32>
    %507 = arith.mulf %502, %504 : vector<8x32xf32>
    %508 = arith.addf %506, %507 : vector<8x32xf32>
    %509 = math.tanh %508 : vector<8x32xf32>
    %510 = arith.mulf %505, %509 : vector<8x32xf32>
    %511 = arith.subf %508, %477 : vector<8x32xf32>
    %512 = arith.mulf %61, %511 : vector<8x32xf32>
    %513 = arith.addf %477, %512 : vector<8x32xf32>
    %514 = arith.subf %510, %480 : vector<8x32xf32>
    %515 = arith.mulf %61, %514 : vector<8x32xf32>
    %516 = arith.addf %480, %515 : vector<8x32xf32>
    %517 = arith.mulf %61, %510 : vector<8x32xf32>
    %518 = vector.extract_strided_slice %517 {offsets = [0, 0], sizes = [8, 16], strides = [1, 1]} : vector<8x32xf32> to vector<8x16xf32>
    %c16_89 = arith.constant 16 : index
    %c0_90 = arith.constant 0 : index
    %519 = vector.load %arg12[%c16_89, %c0_90] : memref<64x32xf32, #tpu.memory_space<vmem>>, vector<8x16xf32>
    tpu.vector_store %arg12[%c16_89, %c0_90], %518 {strides = array<i32>} : memref<64x32xf32, #tpu.memory_space<vmem>>, vector<8x16xf32>,
    %520 = vector.extract_strided_slice %517 {offsets = [0, 16], sizes = [8, 16], strides = [1, 1]} : vector<8x32xf32> to vector<8x16xf32>
    %c40_91 = arith.constant 40 : index
    %c16_92 = arith.constant 16 : index
    %521 = vector.load %arg12[%c40_91, %c16_92] : memref<64x32xf32, #tpu.memory_space<vmem>>, vector<8x16xf32>
    tpu.vector_store %arg12[%c40_91, %c16_92], %520 {strides = array<i32>} : memref<64x32xf32, #tpu.memory_space<vmem>>, vector<8x16xf32>,
    %522 = vector.extract_strided_slice %409 {offsets = [24, 0], sizes = [8, 128], strides = [1, 1]} : vector<64x128xf32> to vector<8x128xf32>
    %523 = vector.extract_strided_slice %409 {offsets = [32, 0], sizes = [8, 128], strides = [1, 1]} : vector<64x128xf32> to vector<8x128xf32>
    %524 = vector.shape_cast %20 : vector<1x128xi1> to vector<1x128xi1>
    %525 = vector.broadcast %524 : vector<1x128xi1> to vector<8x128xi1>
    %526 = arith.select %525, %522, %523 : vector<8x128xi1>, vector<8x128xf32>
    %cst_93 = arith.constant dense<0.000000e+00> : vector<8x128xf32>
    %527 = tpu.matmul %516, %411, %cst_93 {dimension_numbers = #tpu.dot_dimension_numbers<[1], [0], [0], [1], [0, 0, 1, 1], [], []>} : vector<8x32xf32>, vector<32x128xf32>, vector<8x128xf32> -> vector<8x128xf32>
    %528 = arith.addf %526, %527 : vector<8x128xf32>
    %529 = math.tanh %528 : vector<8x128xf32>
    %530 = arith.negf %528 : vector<8x128xf32>
    %531 = math.exp %530 : vector<8x128xf32>
    %cst_94 = arith.constant 1.000000e+00 : f32
    %532 = vector.broadcast %cst_94 : f32 to vector<8x128xf32>
    %533 = arith.addf %532, %531 : vector<8x128xf32>
    %534 = arith.divf %532, %533 : vector<8x128xf32>
    %535 = vector.shape_cast %25 : vector<1x128xi1> to vector<1x128xi1>
    %536 = vector.broadcast %535 : vector<1x128xi1> to vector<8x128xi1>
    %537 = arith.select %536, %529, %534 : vector<8x128xi1>, vector<8x128xf32>
    %538 = vector.extract_strided_slice %537 {offsets = [0, 0], sizes = [8, 32], strides = [1, 1]} : vector<8x128xf32> to vector<8x32xf32>
    %539 = vector.extract_strided_slice %537 {offsets = [0, 32], sizes = [8, 32], strides = [1, 1]} : vector<8x128xf32> to vector<8x32xf32>
    %540 = vector.extract_strided_slice %537 {offsets = [0, 64], sizes = [8, 32], strides = [1, 1]} : vector<8x128xf32> to vector<8x32xf32>
    %541 = vector.extract_strided_slice %537 {offsets = [0, 96], sizes = [8, 32], strides = [1, 1]} : vector<8x128xf32> to vector<8x32xf32>
    %542 = arith.mulf %539, %513 : vector<8x32xf32>
    %543 = arith.mulf %538, %540 : vector<8x32xf32>
    %544 = arith.addf %542, %543 : vector<8x32xf32>
    %545 = math.tanh %544 : vector<8x32xf32>
    %546 = arith.mulf %541, %545 : vector<8x32xf32>
    %547 = arith.subf %544, %513 : vector<8x32xf32>
    %548 = arith.mulf %70, %547 : vector<8x32xf32>
    %549 = arith.addf %513, %548 : vector<8x32xf32>
    %550 = arith.subf %546, %516 : vector<8x32xf32>
    %551 = arith.mulf %70, %550 : vector<8x32xf32>
    %552 = arith.addf %516, %551 : vector<8x32xf32>
    %553 = arith.mulf %70, %546 : vector<8x32xf32>
    %554 = vector.extract_strided_slice %553 {offsets = [0, 0], sizes = [8, 16], strides = [1, 1]} : vector<8x32xf32> to vector<8x16xf32>
    %c24_95 = arith.constant 24 : index
    %c0_96 = arith.constant 0 : index
    %555 = vector.load %arg12[%c24_95, %c0_96] : memref<64x32xf32, #tpu.memory_space<vmem>>, vector<8x16xf32>
    tpu.vector_store %arg12[%c24_95, %c0_96], %554 {strides = array<i32>} : memref<64x32xf32, #tpu.memory_space<vmem>>, vector<8x16xf32>,
    %556 = vector.extract_strided_slice %553 {offsets = [0, 16], sizes = [8, 16], strides = [1, 1]} : vector<8x32xf32> to vector<8x16xf32>
    %c32_97 = arith.constant 32 : index
    %c16_98 = arith.constant 16 : index
    %557 = vector.load %arg12[%c32_97, %c16_98] : memref<64x32xf32, #tpu.memory_space<vmem>>, vector<8x16xf32>
    tpu.vector_store %arg12[%c32_97, %c16_98], %556 {strides = array<i32>} : memref<64x32xf32, #tpu.memory_space<vmem>>, vector<8x16xf32>,
    %558 = vector.extract_strided_slice %409 {offsets = [32, 0], sizes = [8, 128], strides = [1, 1]} : vector<64x128xf32> to vector<8x128xf32>
    %559 = vector.extract_strided_slice %409 {offsets = [24, 0], sizes = [8, 128], strides = [1, 1]} : vector<64x128xf32> to vector<8x128xf32>
    %560 = vector.shape_cast %20 : vector<1x128xi1> to vector<1x128xi1>
    %561 = vector.broadcast %560 : vector<1x128xi1> to vector<8x128xi1>
    %562 = arith.select %561, %558, %559 : vector<8x128xi1>, vector<8x128xf32>
    %cst_99 = arith.constant dense<0.000000e+00> : vector<8x128xf32>
    %563 = tpu.matmul %552, %411, %cst_99 {dimension_numbers = #tpu.dot_dimension_numbers<[1], [0], [0], [1], [0, 0, 1, 1], [], []>} : vector<8x32xf32>, vector<32x128xf32>, vector<8x128xf32> -> vector<8x128xf32>
    %564 = arith.addf %562, %563 : vector<8x128xf32>
    %565 = math.tanh %564 : vector<8x128xf32>
    %566 = arith.negf %564 : vector<8x128xf32>
    %567 = math.exp %566 : vector<8x128xf32>
    %cst_100 = arith.constant 1.000000e+00 : f32
    %568 = vector.broadcast %cst_100 : f32 to vector<8x128xf32>
    %569 = arith.addf %568, %567 : vector<8x128xf32>
    %570 = arith.divf %568, %569 : vector<8x128xf32>
    %571 = vector.shape_cast %25 : vector<1x128xi1> to vector<1x128xi1>
    %572 = vector.broadcast %571 : vector<1x128xi1> to vector<8x128xi1>
    %573 = arith.select %572, %565, %570 : vector<8x128xi1>, vector<8x128xf32>
    %574 = vector.extract_strided_slice %573 {offsets = [0, 0], sizes = [8, 32], strides = [1, 1]} : vector<8x128xf32> to vector<8x32xf32>
    %575 = vector.extract_strided_slice %573 {offsets = [0, 32], sizes = [8, 32], strides = [1, 1]} : vector<8x128xf32> to vector<8x32xf32>
    %576 = vector.extract_strided_slice %573 {offsets = [0, 64], sizes = [8, 32], strides = [1, 1]} : vector<8x128xf32> to vector<8x32xf32>
    %577 = vector.extract_strided_slice %573 {offsets = [0, 96], sizes = [8, 32], strides = [1, 1]} : vector<8x128xf32> to vector<8x32xf32>
    %578 = arith.mulf %575, %549 : vector<8x32xf32>
    %579 = arith.mulf %574, %576 : vector<8x32xf32>
    %580 = arith.addf %578, %579 : vector<8x32xf32>
    %581 = math.tanh %580 : vector<8x32xf32>
    %582 = arith.mulf %577, %581 : vector<8x32xf32>
    %583 = arith.subf %580, %549 : vector<8x32xf32>
    %584 = arith.mulf %79, %583 : vector<8x32xf32>
    %585 = arith.addf %549, %584 : vector<8x32xf32>
    %586 = arith.subf %582, %552 : vector<8x32xf32>
    %587 = arith.mulf %79, %586 : vector<8x32xf32>
    %588 = arith.addf %552, %587 : vector<8x32xf32>
    %589 = arith.mulf %79, %582 : vector<8x32xf32>
    %590 = vector.extract_strided_slice %589 {offsets = [0, 0], sizes = [8, 16], strides = [1, 1]} : vector<8x32xf32> to vector<8x16xf32>
    %c32_101 = arith.constant 32 : index
    %c0_102 = arith.constant 0 : index
    %591 = vector.load %arg12[%c32_101, %c0_102] : memref<64x32xf32, #tpu.memory_space<vmem>>, vector<8x16xf32>
    tpu.vector_store %arg12[%c32_101, %c0_102], %590 {strides = array<i32>} : memref<64x32xf32, #tpu.memory_space<vmem>>, vector<8x16xf32>,
    %592 = vector.extract_strided_slice %589 {offsets = [0, 16], sizes = [8, 16], strides = [1, 1]} : vector<8x32xf32> to vector<8x16xf32>
    %c24_103 = arith.constant 24 : index
    %c16_104 = arith.constant 16 : index
    %593 = vector.load %arg12[%c24_103, %c16_104] : memref<64x32xf32, #tpu.memory_space<vmem>>, vector<8x16xf32>
    tpu.vector_store %arg12[%c24_103, %c16_104], %592 {strides = array<i32>} : memref<64x32xf32, #tpu.memory_space<vmem>>, vector<8x16xf32>,
    %594 = vector.extract_strided_slice %409 {offsets = [40, 0], sizes = [8, 128], strides = [1, 1]} : vector<64x128xf32> to vector<8x128xf32>
    %595 = vector.extract_strided_slice %409 {offsets = [16, 0], sizes = [8, 128], strides = [1, 1]} : vector<64x128xf32> to vector<8x128xf32>
    %596 = vector.shape_cast %20 : vector<1x128xi1> to vector<1x128xi1>
    %597 = vector.broadcast %596 : vector<1x128xi1> to vector<8x128xi1>
    %598 = arith.select %597, %594, %595 : vector<8x128xi1>, vector<8x128xf32>
    %cst_105 = arith.constant dense<0.000000e+00> : vector<8x128xf32>
    %599 = tpu.matmul %588, %411, %cst_105 {dimension_numbers = #tpu.dot_dimension_numbers<[1], [0], [0], [1], [0, 0, 1, 1], [], []>} : vector<8x32xf32>, vector<32x128xf32>, vector<8x128xf32> -> vector<8x128xf32>
    %600 = arith.addf %598, %599 : vector<8x128xf32>
    %601 = math.tanh %600 : vector<8x128xf32>
    %602 = arith.negf %600 : vector<8x128xf32>
    %603 = math.exp %602 : vector<8x128xf32>
    %cst_106 = arith.constant 1.000000e+00 : f32
    %604 = vector.broadcast %cst_106 : f32 to vector<8x128xf32>
    %605 = arith.addf %604, %603 : vector<8x128xf32>
    %606 = arith.divf %604, %605 : vector<8x128xf32>
    %607 = vector.shape_cast %25 : vector<1x128xi1> to vector<1x128xi1>
    %608 = vector.broadcast %607 : vector<1x128xi1> to vector<8x128xi1>
    %609 = arith.select %608, %601, %606 : vector<8x128xi1>, vector<8x128xf32>
    %610 = vector.extract_strided_slice %609 {offsets = [0, 0], sizes = [8, 32], strides = [1, 1]} : vector<8x128xf32> to vector<8x32xf32>
    %611 = vector.extract_strided_slice %609 {offsets = [0, 32], sizes = [8, 32], strides = [1, 1]} : vector<8x128xf32> to vector<8x32xf32>
    %612 = vector.extract_strided_slice %609 {offsets = [0, 64], sizes = [8, 32], strides = [1, 1]} : vector<8x128xf32> to vector<8x32xf32>
    %613 = vector.extract_strided_slice %609 {offsets = [0, 96], sizes = [8, 32], strides = [1, 1]} : vector<8x128xf32> to vector<8x32xf32>
    %614 = arith.mulf %611, %585 : vector<8x32xf32>
    %615 = arith.mulf %610, %612 : vector<8x32xf32>
    %616 = arith.addf %614, %615 : vector<8x32xf32>
    %617 = math.tanh %616 : vector<8x32xf32>
    %618 = arith.mulf %613, %617 : vector<8x32xf32>
    %619 = arith.subf %616, %585 : vector<8x32xf32>
    %620 = arith.mulf %88, %619 : vector<8x32xf32>
    %621 = arith.addf %585, %620 : vector<8x32xf32>
    %622 = arith.subf %618, %588 : vector<8x32xf32>
    %623 = arith.mulf %88, %622 : vector<8x32xf32>
    %624 = arith.addf %588, %623 : vector<8x32xf32>
    %625 = arith.mulf %88, %618 : vector<8x32xf32>
    %626 = vector.extract_strided_slice %625 {offsets = [0, 0], sizes = [8, 16], strides = [1, 1]} : vector<8x32xf32> to vector<8x16xf32>
    %c40_107 = arith.constant 40 : index
    %c0_108 = arith.constant 0 : index
    %627 = vector.load %arg12[%c40_107, %c0_108] : memref<64x32xf32, #tpu.memory_space<vmem>>, vector<8x16xf32>
    tpu.vector_store %arg12[%c40_107, %c0_108], %626 {strides = array<i32>} : memref<64x32xf32, #tpu.memory_space<vmem>>, vector<8x16xf32>,
    %628 = vector.extract_strided_slice %625 {offsets = [0, 16], sizes = [8, 16], strides = [1, 1]} : vector<8x32xf32> to vector<8x16xf32>
    %c16_109 = arith.constant 16 : index
    %c16_110 = arith.constant 16 : index
    %629 = vector.load %arg12[%c16_109, %c16_110] : memref<64x32xf32, #tpu.memory_space<vmem>>, vector<8x16xf32>
    tpu.vector_store %arg12[%c16_109, %c16_110], %628 {strides = array<i32>} : memref<64x32xf32, #tpu.memory_space<vmem>>, vector<8x16xf32>,
    %630 = vector.extract_strided_slice %409 {offsets = [48, 0], sizes = [8, 128], strides = [1, 1]} : vector<64x128xf32> to vector<8x128xf32>
    %631 = vector.extract_strided_slice %409 {offsets = [8, 0], sizes = [8, 128], strides = [1, 1]} : vector<64x128xf32> to vector<8x128xf32>
    %632 = vector.shape_cast %20 : vector<1x128xi1> to vector<1x128xi1>
    %633 = vector.broadcast %632 : vector<1x128xi1> to vector<8x128xi1>
    %634 = arith.select %633, %630, %631 : vector<8x128xi1>, vector<8x128xf32>
    %cst_111 = arith.constant dense<0.000000e+00> : vector<8x128xf32>
    %635 = tpu.matmul %624, %411, %cst_111 {dimension_numbers = #tpu.dot_dimension_numbers<[1], [0], [0], [1], [0, 0, 1, 1], [], []>} : vector<8x32xf32>, vector<32x128xf32>, vector<8x128xf32> -> vector<8x128xf32>
    %636 = arith.addf %634, %635 : vector<8x128xf32>
    %637 = math.tanh %636 : vector<8x128xf32>
    %638 = arith.negf %636 : vector<8x128xf32>
    %639 = math.exp %638 : vector<8x128xf32>
    %cst_112 = arith.constant 1.000000e+00 : f32
    %640 = vector.broadcast %cst_112 : f32 to vector<8x128xf32>
    %641 = arith.addf %640, %639 : vector<8x128xf32>
    %642 = arith.divf %640, %641 : vector<8x128xf32>
    %643 = vector.shape_cast %25 : vector<1x128xi1> to vector<1x128xi1>
    %644 = vector.broadcast %643 : vector<1x128xi1> to vector<8x128xi1>
    %645 = arith.select %644, %637, %642 : vector<8x128xi1>, vector<8x128xf32>
    %646 = vector.extract_strided_slice %645 {offsets = [0, 0], sizes = [8, 32], strides = [1, 1]} : vector<8x128xf32> to vector<8x32xf32>
    %647 = vector.extract_strided_slice %645 {offsets = [0, 32], sizes = [8, 32], strides = [1, 1]} : vector<8x128xf32> to vector<8x32xf32>
    %648 = vector.extract_strided_slice %645 {offsets = [0, 64], sizes = [8, 32], strides = [1, 1]} : vector<8x128xf32> to vector<8x32xf32>
    %649 = vector.extract_strided_slice %645 {offsets = [0, 96], sizes = [8, 32], strides = [1, 1]} : vector<8x128xf32> to vector<8x32xf32>
    %650 = arith.mulf %647, %621 : vector<8x32xf32>
    %651 = arith.mulf %646, %648 : vector<8x32xf32>
    %652 = arith.addf %650, %651 : vector<8x32xf32>
    %653 = math.tanh %652 : vector<8x32xf32>
    %654 = arith.mulf %649, %653 : vector<8x32xf32>
    %655 = arith.subf %652, %621 : vector<8x32xf32>
    %656 = arith.mulf %97, %655 : vector<8x32xf32>
    %657 = arith.addf %621, %656 : vector<8x32xf32>
    %658 = arith.subf %654, %624 : vector<8x32xf32>
    %659 = arith.mulf %97, %658 : vector<8x32xf32>
    %660 = arith.addf %624, %659 : vector<8x32xf32>
    %661 = arith.mulf %97, %654 : vector<8x32xf32>
    %662 = vector.extract_strided_slice %661 {offsets = [0, 0], sizes = [8, 16], strides = [1, 1]} : vector<8x32xf32> to vector<8x16xf32>
    %c48_113 = arith.constant 48 : index
    %c0_114 = arith.constant 0 : index
    %663 = vector.load %arg12[%c48_113, %c0_114] : memref<64x32xf32, #tpu.memory_space<vmem>>, vector<8x16xf32>
    tpu.vector_store %arg12[%c48_113, %c0_114], %662 {strides = array<i32>} : memref<64x32xf32, #tpu.memory_space<vmem>>, vector<8x16xf32>,
    %664 = vector.extract_strided_slice %661 {offsets = [0, 16], sizes = [8, 16], strides = [1, 1]} : vector<8x32xf32> to vector<8x16xf32>
    %c8_115 = arith.constant 8 : index
    %c16_116 = arith.constant 16 : index
    %665 = vector.load %arg12[%c8_115, %c16_116] : memref<64x32xf32, #tpu.memory_space<vmem>>, vector<8x16xf32>
    tpu.vector_store %arg12[%c8_115, %c16_116], %664 {strides = array<i32>} : memref<64x32xf32, #tpu.memory_space<vmem>>, vector<8x16xf32>,
    %666 = vector.extract_strided_slice %409 {offsets = [56, 0], sizes = [8, 128], strides = [1, 1]} : vector<64x128xf32> to vector<8x128xf32>
    %667 = vector.extract_strided_slice %409 {offsets = [0, 0], sizes = [8, 128], strides = [1, 1]} : vector<64x128xf32> to vector<8x128xf32>
    %668 = vector.shape_cast %20 : vector<1x128xi1> to vector<1x128xi1>
    %669 = vector.broadcast %668 : vector<1x128xi1> to vector<8x128xi1>
    %670 = arith.select %669, %666, %667 : vector<8x128xi1>, vector<8x128xf32>
    %cst_117 = arith.constant dense<0.000000e+00> : vector<8x128xf32>
    %671 = tpu.matmul %660, %411, %cst_117 {dimension_numbers = #tpu.dot_dimension_numbers<[1], [0], [0], [1], [0, 0, 1, 1], [], []>} : vector<8x32xf32>, vector<32x128xf32>, vector<8x128xf32> -> vector<8x128xf32>
    %672 = arith.addf %670, %671 : vector<8x128xf32>
    %673 = math.tanh %672 : vector<8x128xf32>
    %674 = arith.negf %672 : vector<8x128xf32>
    %675 = math.exp %674 : vector<8x128xf32>
    %cst_118 = arith.constant 1.000000e+00 : f32
    %676 = vector.broadcast %cst_118 : f32 to vector<8x128xf32>
    %677 = arith.addf %676, %675 : vector<8x128xf32>
    %678 = arith.divf %676, %677 : vector<8x128xf32>
    %679 = vector.shape_cast %25 : vector<1x128xi1> to vector<1x128xi1>
    %680 = vector.broadcast %679 : vector<1x128xi1> to vector<8x128xi1>
    %681 = arith.select %680, %673, %678 : vector<8x128xi1>, vector<8x128xf32>
    %682 = vector.extract_strided_slice %681 {offsets = [0, 0], sizes = [8, 32], strides = [1, 1]} : vector<8x128xf32> to vector<8x32xf32>
    %683 = vector.extract_strided_slice %681 {offsets = [0, 32], sizes = [8, 32], strides = [1, 1]} : vector<8x128xf32> to vector<8x32xf32>
    %684 = vector.extract_strided_slice %681 {offsets = [0, 64], sizes = [8, 32], strides = [1, 1]} : vector<8x128xf32> to vector<8x32xf32>
    %685 = vector.extract_strided_slice %681 {offsets = [0, 96], sizes = [8, 32], strides = [1, 1]} : vector<8x128xf32> to vector<8x32xf32>
    %686 = arith.mulf %683, %657 : vector<8x32xf32>
    %687 = arith.mulf %682, %684 : vector<8x32xf32>
    %688 = arith.addf %686, %687 : vector<8x32xf32>
    %689 = math.tanh %688 : vector<8x32xf32>
    %690 = arith.mulf %685, %689 : vector<8x32xf32>
    %691 = arith.mulf %106, %690 : vector<8x32xf32>
    %692 = vector.extract_strided_slice %691 {offsets = [0, 0], sizes = [8, 16], strides = [1, 1]} : vector<8x32xf32> to vector<8x16xf32>
    %c56_119 = arith.constant 56 : index
    %c0_120 = arith.constant 0 : index
    %693 = vector.load %arg12[%c56_119, %c0_120] : memref<64x32xf32, #tpu.memory_space<vmem>>, vector<8x16xf32>
    tpu.vector_store %arg12[%c56_119, %c0_120], %692 {strides = array<i32>} : memref<64x32xf32, #tpu.memory_space<vmem>>, vector<8x16xf32>,
    %694 = vector.extract_strided_slice %691 {offsets = [0, 16], sizes = [8, 16], strides = [1, 1]} : vector<8x32xf32> to vector<8x16xf32>
    %c0_121 = arith.constant 0 : index
    %c16_122 = arith.constant 16 : index
    %695 = vector.load %arg12[%c0_121, %c16_122] : memref<64x32xf32, #tpu.memory_space<vmem>>, vector<8x16xf32>
    tpu.vector_store %arg12[%c0_121, %c16_122], %694 {strides = array<i32>} : memref<64x32xf32, #tpu.memory_space<vmem>>, vector<8x16xf32>,
    %cst_123 = arith.constant 1.000000e+00 : f32
    %cst_124 = arith.constant -1.000000e+02 : f32
    %696 = vector.broadcast %cst_123 : f32 to vector<8x8xf32>
    %697 = vector.broadcast %cst_124 : f32 to vector<8x8xf32>
    %698 = arith.select %32, %696, %697 : vector<8x8xi1>, vector<8x8xf32>
    %cst_125 = arith.constant dense<0xFF800000> : vector<8xf32>
    %699 = vector.multi_reduction <maximumf>, %698, %cst_125 [1] : vector<8x8xf32> to vector<8xf32>
    %700 = vector.shape_cast %699 : vector<8xf32> to vector<8x1xf32>
    %701 = vector.broadcast %700 : vector<8x1xf32> to vector<8x8xf32>
    %702 = arith.subf %698, %701 : vector<8x8xf32>
    %703 = math.exp %702 : vector<8x8xf32>
    %cst_126 = arith.constant dense<0.000000e+00> : vector<8xf32>
    %704 = vector.multi_reduction <add>, %703, %cst_126 [1] : vector<8x8xf32> to vector<8xf32>
    %705 = vector.shape_cast %704 : vector<8xf32> to vector<8x1xf32>
    %706 = vector.broadcast %705 : vector<8x1xf32> to vector<8x8xf32>
    %707 = arith.divf %703, %706 : vector<8x8xf32>
    %cst_127 = arith.constant 0.000000e+00 : f32
    %708 = vector.broadcast %cst_127 : f32 to vector<8x32xf32>
    %709 = vector.extract_strided_slice %707 {offsets = [0, 0], sizes = [8, 1], strides = [1, 1]} : vector<8x8xf32> to vector<8x1xf32>
    %c0_128 = arith.constant 0 : index
    %c0_129 = arith.constant 0 : index
    %710 = vector.load %arg12[%c0_128, %c0_129] : memref<64x32xf32, #tpu.memory_space<vmem>>, vector<8x32xf32>
    %711 = vector.broadcast %709 : vector<8x1xf32> to vector<8x32xf32>
    %712 = arith.mulf %711, %710 : vector<8x32xf32>
    %713 = arith.addf %708, %712 : vector<8x32xf32>
    %714 = vector.extract_strided_slice %707 {offsets = [0, 1], sizes = [8, 1], strides = [1, 1]} : vector<8x8xf32> to vector<8x1xf32>
    %c8_130 = arith.constant 8 : index
    %c0_131 = arith.constant 0 : index
    %715 = vector.load %arg12[%c8_130, %c0_131] : memref<64x32xf32, #tpu.memory_space<vmem>>, vector<8x32xf32>
    %716 = vector.broadcast %714 : vector<8x1xf32> to vector<8x32xf32>
    %717 = arith.mulf %716, %715 : vector<8x32xf32>
    %718 = arith.addf %713, %717 : vector<8x32xf32>
    %719 = vector.extract_strided_slice %707 {offsets = [0, 2], sizes = [8, 1], strides = [1, 1]} : vector<8x8xf32> to vector<8x1xf32>
    %c16_132 = arith.constant 16 : index
    %c0_133 = arith.constant 0 : index
    %720 = vector.load %arg12[%c16_132, %c0_133] : memref<64x32xf32, #tpu.memory_space<vmem>>, vector<8x32xf32>
    %721 = vector.broadcast %719 : vector<8x1xf32> to vector<8x32xf32>
    %722 = arith.mulf %721, %720 : vector<8x32xf32>
    %723 = arith.addf %718, %722 : vector<8x32xf32>
    %724 = vector.extract_strided_slice %707 {offsets = [0, 3], sizes = [8, 1], strides = [1, 1]} : vector<8x8xf32> to vector<8x1xf32>
    %c24_134 = arith.constant 24 : index
    %c0_135 = arith.constant 0 : index
    %725 = vector.load %arg12[%c24_134, %c0_135] : memref<64x32xf32, #tpu.memory_space<vmem>>, vector<8x32xf32>
    %726 = vector.broadcast %724 : vector<8x1xf32> to vector<8x32xf32>
    %727 = arith.mulf %726, %725 : vector<8x32xf32>
    %728 = arith.addf %723, %727 : vector<8x32xf32>
    %729 = vector.extract_strided_slice %707 {offsets = [0, 4], sizes = [8, 1], strides = [1, 1]} : vector<8x8xf32> to vector<8x1xf32>
    %c32_136 = arith.constant 32 : index
    %c0_137 = arith.constant 0 : index
    %730 = vector.load %arg12[%c32_136, %c0_137] : memref<64x32xf32, #tpu.memory_space<vmem>>, vector<8x32xf32>
    %731 = vector.broadcast %729 : vector<8x1xf32> to vector<8x32xf32>
    %732 = arith.mulf %731, %730 : vector<8x32xf32>
    %733 = arith.addf %728, %732 : vector<8x32xf32>
    %734 = vector.extract_strided_slice %707 {offsets = [0, 5], sizes = [8, 1], strides = [1, 1]} : vector<8x8xf32> to vector<8x1xf32>
    %c40_138 = arith.constant 40 : index
    %c0_139 = arith.constant 0 : index
    %735 = vector.load %arg12[%c40_138, %c0_139] : memref<64x32xf32, #tpu.memory_space<vmem>>, vector<8x32xf32>
    %736 = vector.broadcast %734 : vector<8x1xf32> to vector<8x32xf32>
    %737 = arith.mulf %736, %735 : vector<8x32xf32>
    %738 = arith.addf %733, %737 : vector<8x32xf32>
    %739 = vector.extract_strided_slice %707 {offsets = [0, 6], sizes = [8, 1], strides = [1, 1]} : vector<8x8xf32> to vector<8x1xf32>
    %c48_140 = arith.constant 48 : index
    %c0_141 = arith.constant 0 : index
    %740 = vector.load %arg12[%c48_140, %c0_141] : memref<64x32xf32, #tpu.memory_space<vmem>>, vector<8x32xf32>
    %741 = vector.broadcast %739 : vector<8x1xf32> to vector<8x32xf32>
    %742 = arith.mulf %741, %740 : vector<8x32xf32>
    %743 = arith.addf %738, %742 : vector<8x32xf32>
    %744 = vector.extract_strided_slice %707 {offsets = [0, 7], sizes = [8, 1], strides = [1, 1]} : vector<8x8xf32> to vector<8x1xf32>
    %c56_142 = arith.constant 56 : index
    %c0_143 = arith.constant 0 : index
    %745 = vector.load %arg12[%c56_142, %c0_143] : memref<64x32xf32, #tpu.memory_space<vmem>>, vector<8x32xf32>
    %746 = vector.broadcast %744 : vector<8x1xf32> to vector<8x32xf32>
    %747 = arith.mulf %746, %745 : vector<8x32xf32>
    %748 = arith.addf %743, %747 : vector<8x32xf32>
    %c0_144 = arith.constant 0 : index
    %c0_145 = arith.constant 0 : index
    %c0_146 = arith.constant 0 : index
    %749 = vector.load %arg9[%c0_144, %c0_145, %c0_146] : memref<1x32x32xf32, #tpu.memory_space<vmem>>, vector<1x32x32xf32>
    %750 = vector.shape_cast %749 : vector<1x32x32xf32> to vector<32x32xf32>
    %cst_147 = arith.constant dense<0.000000e+00> : vector<8x32xf32>
    %751 = tpu.matmul %748, %750, %cst_147 {dimension_numbers = #tpu.dot_dimension_numbers<[1], [0], [0], [1], [0, 0, 1, 1], [], []>} : vector<8x32xf32>, vector<32x32xf32>, vector<8x32xf32> -> vector<8x32xf32>
    %c0_148 = arith.constant 0 : index
    %c0_149 = arith.constant 0 : index
    %c0_150 = arith.constant 0 : index
    %752 = vector.load %arg10[%c0_148, %c0_149, %c0_150] : memref<1x1x32xf32, #tpu.memory_space<vmem>>, vector<1x1x32xf32>
    %753 = vector.shape_cast %752 : vector<1x1x32xf32> to vector<1x32xf32>
    %754 = vector.broadcast %753 : vector<1x32xf32> to vector<8x32xf32>
    %755 = arith.addf %751, %754 : vector<8x32xf32>
    %c0_151 = arith.constant 0 : index
    %c0_152 = arith.constant 0 : index
    %c0_153 = arith.constant 0 : index
    %756 = vector.load %arg11[%c0_151, %c0_152, %c0_153] : memref<1x8x32xf32, #tpu.memory_space<vmem>>, vector<1x8x32xf32>
    %757 = vector.shape_cast %756 : vector<1x8x32xf32> to vector<8x32xf32>
    %758 = vector.shape_cast %755 : vector<8x32xf32> to vector<1x8x32xf32>
    tpu.vector_store %arg11[%c0_151, %c0_152, %c0_153], %758 {strides = array<i32>} : memref<1x8x32xf32, #tpu.memory_space<vmem>>, vector<1x8x32xf32>,
    return
  }
  func.func @transform_0(%arg0: i32) -> (i32, i32, i32) {
    %c0_i32 = arith.constant 0 : i32
    %c0_i32_0 = arith.constant 0 : i32
    %c0_i32_1 = arith.constant 0 : i32
    return %arg0, %c0_i32, %c0_i32_0 : i32, i32, i32
  }
  func.func @transform_1(%arg0: i32) -> (i32, i32, i32) {
    %c0_i32 = arith.constant 0 : i32
    %c0_i32_0 = arith.constant 0 : i32
    %c0_i32_1 = arith.constant 0 : i32
    return %arg0, %c0_i32, %c0_i32_0 : i32, i32, i32
  }
  func.func @transform_2(%arg0: i32) -> (i32, i32, i32) {
    %c0_i32 = arith.constant 0 : i32
    %c0_i32_0 = arith.constant 0 : i32
    %c0_i32_1 = arith.constant 0 : i32
    return %arg0, %c0_i32, %c0_i32_0 : i32, i32, i32
  }
  func.func @transform_3(%arg0: i32) -> (i32, i32, i32) {
    %c0_i32 = arith.constant 0 : i32
    %c0_i32_0 = arith.constant 0 : i32
    %c0_i32_1 = arith.constant 0 : i32
    return %arg0, %c0_i32, %c0_i32_0 : i32, i32, i32
  }
  func.func @transform_4(%arg0: i32) -> (i32, i32, i32) {
    %c0_i32 = arith.constant 0 : i32
    %c0_i32_0 = arith.constant 0 : i32
    %c0_i32_1 = arith.constant 0 : i32
    return %arg0, %c0_i32, %c0_i32_0 : i32, i32, i32
  }
  func.func @transform_5(%arg0: i32) -> (i32, i32, i32) {
    %c0_i32 = arith.constant 0 : i32
    %c0_i32_0 = arith.constant 0 : i32
    %c0_i32_1 = arith.constant 0 : i32
    return %arg0, %c0_i32, %c0_i32_0 : i32, i32, i32
  }
  func.func @transform_6(%arg0: i32) -> (i32, i32, i32) {
    %c0_i32 = arith.constant 0 : i32
    %c0_i32_0 = arith.constant 0 : i32
    %c0_i32_1 = arith.constant 0 : i32
    return %arg0, %c0_i32, %c0_i32_0 : i32, i32, i32
  }
  func.func @transform_7(%arg0: i32) -> (i32, i32, i32) {
    %c0_i32 = arith.constant 0 : i32
    %c0_i32_0 = arith.constant 0 : i32
    %c0_i32_1 = arith.constant 0 : i32
    return %arg0, %c0_i32, %c0_i32_0 : i32, i32, i32
  }
  func.func @transform_8(%arg0: i32) -> (i32, i32, i32) {
    %c0_i32 = arith.constant 0 : i32
    %c0_i32_0 = arith.constant 0 : i32
    %c0_i32_1 = arith.constant 0 : i32
    return %arg0, %c0_i32, %c0_i32_0 : i32, i32, i32
  }
  func.func @transform_9(%arg0: i32) -> (i32, i32, i32) {
    %c0_i32 = arith.constant 0 : i32
    %c0_i32_0 = arith.constant 0 : i32
    %c0_i32_1 = arith.constant 0 : i32
    return %arg0, %c0_i32, %c0_i32_0 : i32, i32, i32
  }
  func.func @transform_10(%arg0: i32) -> (i32, i32, i32) {
    %c0_i32 = arith.constant 0 : i32
    %c0_i32_0 = arith.constant 0 : i32
    %c0_i32_1 = arith.constant 0 : i32
    return %arg0, %c0_i32, %c0_i32_0 : i32, i32, i32
  }
}

</mosaic_0001>

<llo_original>
// kernel: _andor_forward_impl.1
$region0: #{_andor_forward_impl.1}
  #allocation0 [shape = 'u32[]', space=smem, size = 0x4, offset = 0x4, fixed_abs, tag = 'smem constant byte address 0x4 - core index']
  #allocation1 [shape = 'u32[144,128]{1,0:T(1,128)}', space=vmem, size = 0x12000, scoped, tag = 'internal scratch']
  #allocation2 [shape = 'f32[64,32]{1,0:T(8,128)}', space=vmem, size = 0x8000, scoped, tag = 'scratch operand']
  %s0 = inlined_call_operand.vmem [shape: f32[2,64,32], index: 0, kind: input, shape index: {}]
  %s1 = inlined_call_operand.vmem [shape: f32[2,8,1], index: 1, kind: input, shape index: {}]
  %s2 = inlined_call_operand.vmem [shape: f32[2,32,128], index: 2, kind: input, shape index: {}]
  %s3 = inlined_call_operand.vmem [shape: f32[2,32,128], index: 3, kind: input, shape index: {}]
  %s4 = inlined_call_operand.vmem [shape: f32[2,1,128], index: 4, kind: input, shape index: {}]
  %s5 = inlined_call_operand.vmem [shape: f32[2,32,128], index: 5, kind: input, shape index: {}]
  %s6 = inlined_call_operand.vmem [shape: f32[2,32,128], index: 6, kind: input, shape index: {}]
  %s7 = inlined_call_operand.vmem [shape: f32[2,1,128], index: 7, kind: input, shape index: {}]
  %s8 = inlined_call_operand.vmem [shape: f32[2,32,32], index: 8, kind: input, shape index: {}]
  %s9 = inlined_call_operand.vmem [shape: f32[2,1,32], index: 9, kind: input, shape index: {}]
  %s10 = inlined_call_operand.vmem [shape: f32[2,8,32], index: 10, kind: output, shape index: {}]
  %s11 = sld [smem:[#allocation0]]
  $region73: #{_andor_forward_impl.1} parent=0
    _
  %s13 = ssub.s32 1, %s11
  %s14 = scalar_select 0, %s13, %s11
  loop: start=0, step=1, limit=4
  $region2: #{_andor_forward_impl.1} parent=0 // loop_pre_header
    _
  $region3: #{_andor_forward_impl.1} parent=0 // loop_header
    %s16 = sphi 0, %s20
    %p17 = scmp.ge.s32.totalorder %s16, 4
    %s26 = sphi 0, %s28
    %s29 = sphi 0, %s26
    %s30 = sphi 0, %s29
    %s46 = sphi 0, %s30
    %s52 = sphi 0, %s54
    %s55 = sphi 0, %s52
    %s56 = sphi 0, %s55
    %s72 = sphi 0, %s56
    %s78 = sphi 0, %s80
    %s81 = sphi 0, %s78
    %s82 = sphi 0, %s81
    %s98 = sphi 0, %s82
    %s104 = sphi 0, %s106
    %s107 = sphi 0, %s104
    %s108 = sphi 0, %s107
    %s124 = sphi 0, %s108
    %s130 = sphi 0, %s132
    %s133 = sphi 0, %s130
    %s134 = sphi 0, %s133
    %s150 = sphi 0, %s134
    %s156 = sphi 0, %s158
    %s159 = sphi 0, %s156
    %s160 = sphi 0, %s159
    %s176 = sphi 0, %s160
    %s182 = sphi 0, %s184
    %s185 = sphi 0, %s182
    %s186 = sphi 0, %s185
    %s202 = sphi 0, %s186
    %s208 = sphi 0, %s210
    %s211 = sphi 0, %s208
    %s212 = sphi 0, %s211
    %s228 = sphi 0, %s212
    %s234 = sphi 0, %s236
    %s237 = sphi 0, %s234
    %s238 = sphi 0, %s237
    %s254 = sphi 0, %s238
    %s260 = sphi 0, %s262
    %s263 = sphi 0, %s260
    %s264 = sphi 0, %s263
    %s280 = sphi 0, %s264
    %s286 = sphi 0, %s288
    %s289 = sphi 0, %s286
    %s290 = sphi 0, %s289
    %s306 = sphi 0, %s290
  $region4: #{_andor_forward_impl.1} parent=0 // loop_header_branch
    %19 = sbr.rel (%p17) target = $region8
  $region5: #{_andor_forward_impl.1} parent=0 // loop_body
    %s21 = ssub.s32 %s16, 1
    %s22 = ssub.s32 %s16, 2
    %s23 = sadd.s32 %s16, 1
    %s24 = ssub.s32 %s16, %s23
    %p25 = scmp.eq.s32.totalorder %s24, 0
    %s27 = sadd.s32 %s26, 1
    %s28 = scalar_select %p25, %s26, %s27
    %p31 = pneg %p25
    %p32 = scmp.eq.s32.totalorder %s16, 1
    %p33 = por %p31, %p32
    %p34 = scmp.ne.s32.totalorder %s26, %s29
    %p35 = scmp.eq.s32.totalorder %s16, 0
    %p36 = por %p34, %p35
    %p37 = scmp.ne.s32.totalorder %s26, %s29
    %p38 = scmp.eq.s32.totalorder %s21, 1
    %p39 = por %p37, %p38
    %p40 = scmp.ne.s32.totalorder %s29, %s30
    %p41 = scmp.eq.s32.totalorder %s21, 0
    %p42 = por %p40, %p41
    %p43 = scmp.ne.s32.totalorder %s29, %s30
    %p44 = scmp.eq.s32.totalorder %s22, 1
    %p45 = por %p43, %p44
    %p47 = scmp.ne.s32.totalorder %s30, %s46
    %p48 = scmp.eq.s32.totalorder %s22, 0
    %p49 = por %p47, %p48
    %s50 = ssub.s32 %s16, %s23
    %p51 = scmp.eq.s32.totalorder %s50, 0
    %s53 = sadd.s32 %s52, 1
    %s54 = scalar_select %p51, %s52, %s53
    %p57 = pneg %p51
    %p58 = scmp.eq.s32.totalorder %s16, 1
    %p59 = por %p57, %p58
    %p60 = scmp.ne.s32.totalorder %s52, %s55
    %p61 = scmp.eq.s32.totalorder %s16, 0
    %p62 = por %p60, %p61
    %p63 = scmp.ne.s32.totalorder %s52, %s55
    %p64 = scmp.eq.s32.totalorder %s21, 1
    %p65 = por %p63, %p64
    %p66 = scmp.ne.s32.totalorder %s55, %s56
    %p67 = scmp.eq.s32.totalorder %s21, 0
    %p68 = por %p66, %p67
    %p69 = scmp.ne.s32.totalorder %s55, %s56
    %p70 = scmp.eq.s32.totalorder %s22, 1
    %p71 = por %p69, %p70
    %p73 = scmp.ne.s32.totalorder %s56, %s72
    %p74 = scmp.eq.s32.totalorder %s22, 0
    %p75 = por %p73, %p74
    %s76 = ssub.s32 %s16, %s23
    %p77 = scmp.eq.s32.totalorder %s76, 0
    %s79 = sadd.s32 %s78, 1
    %s80 = scalar_select %p77, %s78, %s79
    %p83 = pneg %p77
    %p84 = scmp.eq.s32.totalorder %s16, 1
    %p85 = por %p83, %p84
    %p86 = scmp.ne.s32.totalorder %s78, %s81
    %p87 = scmp.eq.s32.totalorder %s16, 0
    %p88 = por %p86, %p87
    %p89 = scmp.ne.s32.totalorder %s78, %s81
    %p90 = scmp.eq.s32.totalorder %s21, 1
    %p91 = por %p89, %p90
    %p92 = scmp.ne.s32.totalorder %s81, %s82
    %p93 = scmp.eq.s32.totalorder %s21, 0
    %p94 = por %p92, %p93
    %p95 = scmp.ne.s32.totalorder %s81, %s82
    %p96 = scmp.eq.s32.totalorder %s22, 1
    %p97 = por %p95, %p96
    %p99 = scmp.ne.s32.totalorder %s82, %s98
    %p100 = scmp.eq.s32.totalorder %s22, 0
    %p101 = por %p99, %p100
    %s102 = ssub.s32 %s16, %s23
    %p103 = scmp.eq.s32.totalorder %s102, 0
    %s105 = sadd.s32 %s104, 1
    %s106 = scalar_select %p103, %s104, %s105
    %p109 = pneg %p103
    %p110 = scmp.eq.s32.totalorder %s16, 1
    %p111 = por %p109, %p110
    %p112 = scmp.ne.s32.totalorder %s104, %s107
    %p113 = scmp.eq.s32.totalorder %s16, 0
    %p114 = por %p112, %p113
    %p115 = scmp.ne.s32.totalorder %s104, %s107
    %p116 = scmp.eq.s32.totalorder %s21, 1
    %p117 = por %p115, %p116
    %p118 = scmp.ne.s32.totalorder %s107, %s108
    %p119 = scmp.eq.s32.totalorder %s21, 0
    %p120 = por %p118, %p119
    %p121 = scmp.ne.s32.totalorder %s107, %s108
    %p122 = scmp.eq.s32.totalorder %s22, 1
    %p123 = por %p121, %p122
    %p125 = scmp.ne.s32.totalorder %s108, %s124
    %p126 = scmp.eq.s32.totalorder %s22, 0
    %p127 = por %p125, %p126
    %s128 = ssub.s32 %s16, %s23
    %p129 = scmp.eq.s32.totalorder %s128, 0
    %s131 = sadd.s32 %s130, 1
    %s132 = scalar_select %p129, %s130, %s131
    %p135 = pneg %p129
    %p136 = scmp.eq.s32.totalorder %s16, 1
    %p137 = por %p135, %p136
    %p138 = scmp.ne.s32.totalorder %s130, %s133
    %p139 = scmp.eq.s32.totalorder %s16, 0
    %p140 = por %p138, %p139
    %p141 = scmp.ne.s32.totalorder %s130, %s133
    %p142 = scmp.eq.s32.totalorder %s21, 1
    %p143 = por %p141, %p142
    %p144 = scmp.ne.s32.totalorder %s133, %s134
    %p145 = scmp.eq.s32.totalorder %s21, 0
    %p146 = por %p144, %p145
    %p147 = scmp.ne.s32.totalorder %s133, %s134
    %p148 = scmp.eq.s32.totalorder %s22, 1
    %p149 = por %p147, %p148
    %p151 = scmp.ne.s32.totalorder %s134, %s150
    %p152 = scmp.eq.s32.totalorder %s22, 0
    %p153 = por %p151, %p152
    %s154 = ssub.s32 %s16, %s23
    %p155 = scmp.eq.s32.totalorder %s154, 0
    %s157 = sadd.s32 %s156, 1
    %s158 = scalar_select %p155, %s156, %s157
    %p161 = pneg %p155
    %p162 = scmp.eq.s32.totalorder %s16, 1
    %p163 = por %p161, %p162
    %p164 = scmp.ne.s32.totalorder %s156, %s159
    %p165 = scmp.eq.s32.totalorder %s16, 0
    %p166 = por %p164, %p165
    %p167 = scmp.ne.s32.totalorder %s156, %s159
    %p168 = scmp.eq.s32.totalorder %s21, 1
    %p169 = por %p167, %p168
    %p170 = scmp.ne.s32.totalorder %s159, %s160
    %p171 = scmp.eq.s32.totalorder %s21, 0
    %p172 = por %p170, %p171
    %p173 = scmp.ne.s32.totalorder %s159, %s160
    %p174 = scmp.eq.s32.totalorder %s22, 1
    %p175 = por %p173, %p174
    %p177 = scmp.ne.s32.totalorder %s160, %s176
    %p178 = scmp.eq.s32.totalorder %s22, 0
    %p179 = por %p177, %p178
    %s180 = ssub.s32 %s16, %s23
    %p181 = scmp.eq.s32.totalorder %s180, 0
    %s183 = sadd.s32 %s182, 1
    %s184 = scalar_select %p181, %s182, %s183
    %p187 = pneg %p181
    %p188 = scmp.eq.s32.totalorder %s16, 1
    %p189 = por %p187, %p188
    %p190 = scmp.ne.s32.totalorder %s182, %s185
    %p191 = scmp.eq.s32.totalorder %s16, 0
    %p192 = por %p190, %p191
    %p193 = scmp.ne.s32.totalorder %s182, %s185
    %p194 = scmp.eq.s32.totalorder %s21, 1
    %p195 = por %p193, %p194
    %p196 = scmp.ne.s32.totalorder %s185, %s186
    %p197 = scmp.eq.s32.totalorder %s21, 0
    %p198 = por %p196, %p197
    %p199 = scmp.ne.s32.totalorder %s185, %s186
    %p200 = scmp.eq.s32.totalorder %s22, 1
    %p201 = por %p199, %p200
    %p203 = scmp.ne.s32.totalorder %s186, %s202
    %p204 = scmp.eq.s32.totalorder %s22, 0
    %p205 = por %p203, %p204
    %s206 = ssub.s32 %s16, %s23
    %p207 = scmp.eq.s32.totalorder %s206, 0
    %s209 = sadd.s32 %s208, 1
    %s210 = scalar_select %p207, %s208, %s209
    %p213 = pneg %p207
    %p214 = scmp.eq.s32.totalorder %s16, 1
    %p215 = por %p213, %p214
    %p216 = scmp.ne.s32.totalorder %s208, %s211
    %p217 = scmp.eq.s32.totalorder %s16, 0
    %p218 = por %p216, %p217
    %p219 = scmp.ne.s32.totalorder %s208, %s211
    %p220 = scmp.eq.s32.totalorder %s21, 1
    %p221 = por %p219, %p220
    %p222 = scmp.ne.s32.totalorder %s211, %s212
    %p223 = scmp.eq.s32.totalorder %s21, 0
    %p224 = por %p222, %p223
    %p225 = scmp.ne.s32.totalorder %s211, %s212
    %p226 = scmp.eq.s32.totalorder %s22, 1
    %p227 = por %p225, %p226
    %p229 = scmp.ne.s32.totalorder %s212, %s228
    %p230 = scmp.eq.s32.totalorder %s22, 0
    %p231 = por %p229, %p230
    %s232 = ssub.s32 %s16, %s23
    %p233 = scmp.eq.s32.totalorder %s232, 0
    %s235 = sadd.s32 %s234, 1
    %s236 = scalar_select %p233, %s234, %s235
    %p239 = pneg %p233
    %p240 = scmp.eq.s32.totalorder %s16, 1
    %p241 = por %p239, %p240
    %p242 = scmp.ne.s32.totalorder %s234, %s237
    %p243 = scmp.eq.s32.totalorder %s16, 0
    %p244 = por %p242, %p243
    %p245 = scmp.ne.s32.totalorder %s234, %s237
    %p246 = scmp.eq.s32.totalorder %s21, 1
    %p247 = por %p245, %p246
    %p248 = scmp.ne.s32.totalorder %s237, %s238
    %p249 = scmp.eq.s32.totalorder %s21, 0
    %p250 = por %p248, %p249
    %p251 = scmp.ne.s32.totalorder %s237, %s238
    %p252 = scmp.eq.s32.totalorder %s22, 1
    %p253 = por %p251, %p252
    %p255 = scmp.ne.s32.totalorder %s238, %s254
    %p256 = scmp.eq.s32.totalorder %s22, 0
    %p257 = por %p255, %p256
    %s258 = ssub.s32 %s16, %s23
    %p259 = scmp.eq.s32.totalorder %s258, 0
    %s261 = sadd.s32 %s260, 1
    %s262 = scalar_select %p259, %s260, %s261
    %p265 = pneg %p259
    %p266 = scmp.eq.s32.totalorder %s16, 1
    %p267 = por %p265, %p266
    %p268 = scmp.ne.s32.totalorder %s260, %s263
    %p269 = scmp.eq.s32.totalorder %s16, 0
    %p270 = por %p268, %p269
    %p271 = scmp.ne.s32.totalorder %s260, %s263
    %p272 = scmp.eq.s32.totalorder %s21, 1
    %p273 = por %p271, %p272
    %p274 = scmp.ne.s32.totalorder %s263, %s264
    %p275 = scmp.eq.s32.totalorder %s21, 0
    %p276 = por %p274, %p275
    %p277 = scmp.ne.s32.totalorder %s263, %s264
    %p278 = scmp.eq.s32.totalorder %s22, 1
    %p279 = por %p277, %p278
    %p281 = scmp.ne.s32.totalorder %s264, %s280
    %p282 = scmp.eq.s32.totalorder %s22, 0
    %p283 = por %p281, %p282
    %s284 = ssub.s32 %s16, %s23
    %p285 = scmp.eq.s32.totalorder %s284, 0
    %s287 = sadd.s32 %s286, 1
    %s288 = scalar_select %p285, %s286, %s287
    %p291 = pneg %p285
    %p292 = scmp.eq.s32.totalorder %s16, 1
    %p293 = por %p291, %p292
    %p294 = scmp.ne.s32.totalorder %s286, %s289
    %p295 = scmp.eq.s32.totalorder %s16, 0
    %p296 = por %p294, %p295
    %p297 = scmp.ne.s32.totalorder %s286, %s289
    %p298 = scmp.eq.s32.totalorder %s21, 1
    %p299 = por %p297, %p298
    %p300 = scmp.ne.s32.totalorder %s289, %s290
    %p301 = scmp.eq.s32.totalorder %s21, 0
    %p302 = por %p300, %p301
    %p303 = scmp.ne.s32.totalorder %s289, %s290
    %p304 = scmp.eq.s32.totalorder %s22, 1
    %p305 = por %p303, %p304
    %p307 = scmp.ne.s32.totalorder %s290, %s306
    %p308 = scmp.eq.s32.totalorder %s22, 0
    %p309 = por %p307, %p308
    %p310 = scmp.le.s32.totalorder 1, %s16
    %p311 = scmp.lt.s32.totalorder %s16, 3
    %p312 = pnand %p310, %p311
    %p313 = pneg %p312
    // Predicated region
    $region9: #{_andor_forward_impl.1} parent=5 // pred_check
      _
    $region10: #{_andor_forward_impl.1} parent=5 // pred_check_branch
      %315 = sbr.rel (%p312) target = $region12
    $region11: #{_andor_forward_impl.1} parent=5 // pred_region
      %s316 = ssub.s32 %s16, 1
    $region12: #{_andor_forward_impl.1} parent=5 // pred_fallthru
      _
    %p317 = scmp.lt.s32.totalorder %s16, 2
    // Predicated region
    $region13: #{_andor_forward_impl.1} parent=5 // pred_check
      %p318 = pneg %p317
    $region14: #{_andor_forward_impl.1} parent=5 // pred_check_branch
      %320 = sbr.rel (%p318) target = $region16
    $region15: #{_andor_forward_impl.1} parent=5 // pred_region
      // Predicated region
      $region17: #{_andor_forward_impl.1} parent=15 // pred_check
        %p321 = pneg %p36
      $region18: #{_andor_forward_impl.1} parent=15 // pred_check_branch
        %323 = sbr.rel (%p321) target = $region20
      $region19: #{_andor_forward_impl.1} parent=15 // pred_region
        %p324 = scmp.lt.s32.totalorder %s16, 1
        %s325 = scalar_select %p324, %s16, 1
        %s326 = smul.addr %s325, 8
        %s327 = smul.addr %s326, 8
        %s328 = scalar_lea.vmem %s0, %s327
      $region20: #{_andor_forward_impl.1} parent=15 // pred_fallthru
        _
      // Predicated region
      $region21: #{_andor_forward_impl.1} parent=15 // pred_check
        %p329 = pneg %p62
      $region22: #{_andor_forward_impl.1} parent=15 // pred_check_branch
        %331 = sbr.rel (%p329) target = $region24
      $region23: #{_andor_forward_impl.1} parent=15 // pred_region
        %p332 = scmp.lt.s32.totalorder %s16, 1
        %s333 = scalar_select %p332, %s16, 1
        %s334 = smul.addr %s333, 8
        %s335 = scalar_lea.vmem %s1, %s334
      $region24: #{_andor_forward_impl.1} parent=15 // pred_fallthru
        _
      // Predicated region
      $region25: #{_andor_forward_impl.1} parent=15 // pred_check
        %p336 = pneg %p88
      $region26: #{_andor_forward_impl.1} parent=15 // pred_check_branch
        %338 = sbr.rel (%p336) target = $region28
      $region27: #{_andor_forward_impl.1} parent=15 // pred_region
        %p339 = scmp.lt.s32.totalorder %s16, 1
        %s340 = scalar_select %p339, %s16, 1
        %s341 = smul.addr %s340, 4
        %s342 = smul.addr %s341, 8
        %s343 = scalar_lea.vmem %s2, %s342
      $region28: #{_andor_forward_impl.1} parent=15 // pred_fallthru
        _
      // Predicated region
      $region29: #{_andor_forward_impl.1} parent=15 // pred_check
        %p344 = pneg %p114
      $region30: #{_andor_forward_impl.1} parent=15 // pred_check_branch
        %346 = sbr.rel (%p344) target = $region32
      $region31: #{_andor_forward_impl.1} parent=15 // pred_region
        %p347 = scmp.lt.s32.totalorder %s16, 1
        %s348 = scalar_select %p347, %s16, 1
        %s349 = smul.addr %s348, 4
        %s350 = smul.addr %s349, 8
        %s351 = scalar_lea.vmem %s3, %s350
      $region32: #{_andor_forward_impl.1} parent=15 // pred_fallthru
        _
      // Predicated region
      $region33: #{_andor_forward_impl.1} parent=15 // pred_check
        %p352 = pneg %p140
      $region34: #{_andor_forward_impl.1} parent=15 // pred_check_branch
        %354 = sbr.rel (%p352) target = $region36
      $region35: #{_andor_forward_impl.1} parent=15 // pred_region
        %p355 = scmp.lt.s32.totalorder %s16, 1
        %s356 = scalar_select %p355, %s16, 1
        %s357 = scalar_lea.vmem %s4, %s356
      $region36: #{_andor_forward_impl.1} parent=15 // pred_fallthru
        _
      // Predicated region
      $region37: #{_andor_forward_impl.1} parent=15 // pred_check
        %p358 = pneg %p166
      $region38: #{_andor_forward_impl.1} parent=15 // pred_check_branch
        %360 = sbr.rel (%p358) target = $region40
      $region39: #{_andor_forward_impl.1} parent=15 // pred_region
        %p361 = scmp.lt.s32.totalorder %s16, 1
        %s362 = scalar_select %p361, %s16, 1
        %s363 = smul.addr %s362, 4
        %s364 = smul.addr %s363, 8
        %s365 = scalar_lea.vmem %s5, %s364
      $region40: #{_andor_forward_impl.1} parent=15 // pred_fallthru
        _
      // Predicated region
      $region41: #{_andor_forward_impl.1} parent=15 // pred_check
        %p366 = pneg %p192
      $region42: #{_andor_forward_impl.1} parent=15 // pred_check_branch
        %368 = sbr.rel (%p366) target = $region44
      $region43: #{_andor_forward_impl.1} parent=15 // pred_region
        %p369 = scmp.lt.s32.totalorder %s16, 1
        %s370 = scalar_select %p369, %s16, 1
        %s371 = smul.addr %s370, 4
        %s372 = smul.addr %s371, 8
        %s373 = scalar_lea.vmem %s6, %s372
      $region44: #{_andor_forward_impl.1} parent=15 // pred_fallthru
        _
      // Predicated region
      $region45: #{_andor_forward_impl.1} parent=15 // pred_check
        %p374 = pneg %p218
      $region46: #{_andor_forward_impl.1} parent=15 // pred_check_branch
        %376 = sbr.rel (%p374) target = $region48
      $region47: #{_andor_forward_impl.1} parent=15 // pred_region
        %p377 = scmp.lt.s32.totalorder %s16, 1
        %s378 = scalar_select %p377, %s16, 1
        %s379 = scalar_lea.vmem %s7, %s378
      $region48: #{_andor_forward_impl.1} parent=15 // pred_fallthru
        _
      // Predicated region
      $region49: #{_andor_forward_impl.1} parent=15 // pred_check
        %p380 = pneg %p244
      $region50: #{_andor_forward_impl.1} parent=15 // pred_check_branch
        %382 = sbr.rel (%p380) target = $region52
      $region51: #{_andor_forward_impl.1} parent=15 // pred_region
        %p383 = scmp.lt.s32.totalorder %s16, 1
        %s384 = scalar_select %p383, %s16, 1
        %s385 = smul.addr %s384, 4
        %s386 = smul.addr %s385, 8
        %s387 = scalar_lea.vmem %s8, %s386
      $region52: #{_andor_forward_impl.1} parent=15 // pred_fallthru
        _
      // Predicated region
      $region53: #{_andor_forward_impl.1} parent=15 // pred_check
        %p388 = pneg %p270
      $region54: #{_andor_forward_impl.1} parent=15 // pred_check_branch
        %390 = sbr.rel (%p388) target = $region56
      $region55: #{_andor_forward_impl.1} parent=15 // pred_region
        %p391 = scmp.lt.s32.totalorder %s16, 1
        %s392 = scalar_select %p391, %s16, 1
        %s393 = scalar_lea.vmem %s9, %s392
      $region56: #{_andor_forward_impl.1} parent=15 // pred_fallthru
        _
    $region16: #{_andor_forward_impl.1} parent=5 // pred_fallthru
      _
    %p394 = scmp.le.s32.totalorder 1, %s16
    %p395 = scmp.lt.s32.totalorder %s16, 3
    %p396 = pnand %p394, %p395
    %p397 = pneg %p396
    // Predicated region
    $region57: #{_andor_forward_impl.1} parent=5 // pred_check
      _
    $region58: #{_andor_forward_impl.1} parent=5 // pred_check_branch
      %399 = sbr.rel (%p396) target = $region60
    $region59: #{_andor_forward_impl.1} parent=5 // pred_region
      %s400 = ssub.s32 %s16, 1
      %p401 = scmp.lt.s32.totalorder %s21, 1
      %s402 = scalar_select %p401, %s21, 1
      %s403 = smul.addr %s402, 8
      %s404 = smul.addr %s403, 8
      %s405 = scalar_lea.vmem %s0, %s404
      %p406 = pneg %p42
      %p407 = pneg %p39
      %p408 = scmp.lt.s32.totalorder %s21, 1
      %s409 = scalar_select %p408, %s21, 1
      %s410 = smul.addr %s409, 8
      %s411 = scalar_lea.vmem %s1, %s410
      %p412 = pneg %p68
      %p413 = pneg %p65
      %p414 = scmp.lt.s32.totalorder %s21, 1
      %s415 = scalar_select %p414, %s21, 1
      %s416 = smul.addr %s415, 4
      %s417 = smul.addr %s416, 8
      %s418 = scalar_lea.vmem %s2, %s417
      %p419 = pneg %p94
      %p420 = pneg %p91
      %p421 = scmp.lt.s32.totalorder %s21, 1
      %s422 = scalar_select %p421, %s21, 1
      %s423 = smul.addr %s422, 4
      %s424 = smul.addr %s423, 8
      %s425 = scalar_lea.vmem %s3, %s424
      %p426 = pneg %p120
      %p427 = pneg %p117
      %p428 = scmp.lt.s32.totalorder %s21, 1
      %s429 = scalar_select %p428, %s21, 1
      %s430 = scalar_lea.vmem %s4, %s429
      %p431 = pneg %p146
      %p432 = pneg %p143
      %p433 = scmp.lt.s32.totalorder %s21, 1
      %s434 = scalar_select %p433, %s21, 1
      %s435 = smul.addr %s434, 4
      %s436 = smul.addr %s435, 8
      %s437 = scalar_lea.vmem %s5, %s436
      %p438 = pneg %p172
      %p439 = pneg %p169
      %p440 = scmp.lt.s32.totalorder %s21, 1
      %s441 = scalar_select %p440, %s21, 1
      %s442 = smul.addr %s441, 4
      %s443 = smul.addr %s442, 8
      %s444 = scalar_lea.vmem %s6, %s443
      %p445 = pneg %p198
      %p446 = pneg %p195
      %p447 = scmp.lt.s32.totalorder %s21, 1
      %s448 = scalar_select %p447, %s21, 1
      %s449 = scalar_lea.vmem %s7, %s448
      %p450 = pneg %p224
      %p451 = pneg %p221
      %p452 = scmp.lt.s32.totalorder %s21, 1
      %s453 = scalar_select %p452, %s21, 1
      %s454 = smul.addr %s453, 4
      %s455 = smul.addr %s454, 8
      %s456 = scalar_lea.vmem %s8, %s455
      %p457 = pneg %p250
      %p458 = pneg %p247
      %p459 = scmp.lt.s32.totalorder %s21, 1
      %s460 = scalar_select %p459, %s21, 1
      %s461 = scalar_lea.vmem %s9, %s460
      %p462 = pneg %p276
      %p463 = pneg %p273
      %p464 = pneg %p302
      %p465 = pneg %p299
      %p466 = scmp.lt.s32.totalorder %s21, 1
      %s467 = scalar_select %p466, %s21, 1
      %s468 = smul.addr %s467, 8
      %s469 = scalar_lea.vmem %s10, %s468
      %p470 = scmp.lt.s32.totalorder %s21, 1
      %s471 = scalar_select %p470, %s21, 1
      %s472 = smul.addr %s471, 8
      %s473 = smul.addr %s472, 8
      %s474 = scalar_lea.vmem %s0, %s473
      %p475 = scmp.lt.s32.totalorder %s21, 1
      %s476 = scalar_select %p475, %s21, 1
      %s477 = smul.addr %s476, 8
      %s478 = scalar_lea.vmem %s1, %s477
      %p479 = scmp.lt.s32.totalorder %s21, 1
      %s480 = scalar_select %p479, %s21, 1
      %s481 = smul.addr %s480, 4
      %s482 = smul.addr %s481, 8
      %s483 = scalar_lea.vmem %s2, %s482
      %p484 = scmp.lt.s32.totalorder %s21, 1
      %s485 = scalar_select %p484, %s21, 1
      %s486 = smul.addr %s485, 4
      %s487 = smul.addr %s486, 8
      %s488 = scalar_lea.vmem %s3, %s487
      %p489 = scmp.lt.s32.totalorder %s21, 1
      %s490 = scalar_select %p489, %s21, 1
      %s491 = scalar_lea.vmem %s4, %s490
      %p492 = scmp.lt.s32.totalorder %s21, 1
      %s493 = scalar_select %p492, %s21, 1
      %s494 = smul.addr %s493, 4
      %s495 = smul.addr %s494, 8
      %s496 = scalar_lea.vmem %s5, %s495
      %p497 = scmp.lt.s32.totalorder %s21, 1
      %s498 = scalar_select %p497, %s21, 1
      %s499 = smul.addr %s498, 4
      %s500 = smul.addr %s499, 8
      %s501 = scalar_lea.vmem %s6, %s500
      %p502 = scmp.lt.s32.totalorder %s21, 1
      %s503 = scalar_select %p502, %s21, 1
      %s504 = scalar_lea.vmem %s7, %s503
      %p505 = scmp.lt.s32.totalorder %s21, 1
      %s506 = scalar_select %p505, %s21, 1
      %s507 = smul.addr %s506, 4
      %s508 = smul.addr %s507, 8
      %s509 = scalar_lea.vmem %s8, %s508
      %p510 = scmp.lt.s32.totalorder %s21, 1
      %s511 = scalar_select %p510, %s21, 1
      %s512 = scalar_lea.vmem %s9, %s511
      %p513 = scmp.lt.s32.totalorder %s21, 1
      %s514 = scalar_select %p513, %s21, 1
      %s515 = smul.addr %s514, 8
      %s516 = scalar_lea.vmem %s10, %s515
      %v517 = vld [vmem:[%s478] sm:$0xff]
      %v518 = vlaneseq
      %v519 = vand.u32 %v518, 127
      %vm520 = vcmp.lt.s32.totalorder %v519, 0
      %v521 = vsub.s32 0, %v519
      %v522 = vsel %vm520, %v521, %v519
      %v523 = vshrl.u32 %v522, 5
      %v524 = vand.u32 %v522, 31
      %v525 = vsub.s32 0, %v524
      %v526 = vsel %vm520, %v525, %v524
      %vm527 = vcmp.ne.s32.totalorder %v526, 0
      %vm528 = vcmp.lt.s32.totalorder %v526, 0
      %vm529 = vmand %vm528, %vm527
      %v530 = vadd.s32 %v526, 32
      %v531 = vsel %vm529, %v530, %v526
      %vm532 = vcmp.lt.s32.totalorder %v531, 16
      %vm533 = vcmp.ge.s32.totalorder %v519, 64
      %vm534 = vcmp.lt.s32.totalorder %v519, 96
      %vm535 = vmand %vm533, %vm534
      %vm536 = vcmp.lt.s32.totalorder %v519, 16
      %v537 = vcvt.s32.f32 %v519
      %539 = vset.pattern.permute.xlu0 0
      %540 = vperm.xlu0 %539, %v517
      %v541 = vpop.permute.xlu0 %540
      %vm543 = vcmp.lt.f32.partialorder %v537, %v541
      %v544 = vsel %vm543, 1, 0
      %v545 = vcvt.s32.f32 %v544
      %v546 = vsel %vm536, 1, 0
      %vm547 = vcmp.eq.s32.totalorder %v546, 1
      %549 = vset.pattern.permute.xlu0 0
      %550 = vperm.xlu0 %549, %v545
      %v551 = vpop.permute.xlu0 %550
      %553 = vset.pattern.permute.xlu0 7
      %554 = vperm.xlu0 %553, %v545
      %v555 = vpop.permute.xlu0 %554
      %v557 = vsel %vm547, %v551, %v555
      %558 = vset.pattern.permute.xlu0 1
      %559 = vperm.xlu0 %558, %v545
      %v560 = vpop.permute.xlu0 %559
      %562 = vset.pattern.permute.xlu0 6
      %563 = vperm.xlu0 %562, %v545
      %v564 = vpop.permute.xlu0 %563
      %v566 = vsel %vm547, %v560, %v564
      %567 = vset.pattern.permute.xlu0 2
      %568 = vperm.xlu0 %567, %v545
      %v569 = vpop.permute.xlu0 %568
      %571 = vset.pattern.permute.xlu0 5
      %572 = vperm.xlu0 %571, %v545
      %v573 = vpop.permute.xlu0 %572
      %v575 = vsel %vm547, %v569, %v573
      %576 = vset.pattern.permute.xlu0 3
      %577 = vperm.xlu0 %576, %v545
      %v578 = vpop.permute.xlu0 %577
      %580 = vset.pattern.permute.xlu0 4
      %581 = vperm.xlu0 %580, %v545
      %v582 = vpop.permute.xlu0 %581
      %v584 = vsel %vm547, %v578, %v582
      %v585 = vsel %vm547, %v582, %v578
      %v586 = vsel %vm547, %v573, %v569
      %v587 = vsel %vm547, %v564, %v560
      %v588 = vsel %vm547, %v555, %v551
      %v589 = vld [vmem:[%s474] sm:$0xff]
      %v590 = vld [vmem:[%s474 + $0x8] sm:$0xff]
      %v591 = vld [vmem:[%s474 + $0x10] sm:$0xff]
      %v592 = vld [vmem:[%s474 + $0x18] sm:$0xff]
      %v593 = vld [vmem:[%s474 + $0x20] sm:$0xff]
      %v594 = vld [vmem:[%s474 + $0x28] sm:$0xff]
      %v595 = vld [vmem:[%s474 + $0x30] sm:$0xff]
      %v596 = vld [vmem:[%s474 + $0x38] sm:$0xff]
      %v597 = vld [vmem:[%s483] sm:$0xff]
      %v598 = vld [vmem:[%s483 + $0x8] sm:$0xff]
      %v599 = vld [vmem:[%s483 + $0x10] sm:$0xff]
      %v600 = vld [vmem:[%s483 + $0x18] sm:$0xff]
      %v601 = vld [vmem:[%s491] sm:$0x1]
      %v603 = vlaneseq
      %v604 = vshrl.u32 %v603, 7
      %v605 = vsub.s32 0, %v604
      %v606 = vrot.slane %v601, %v605
      %vm608 = vcmask 261120
      %v610 = vsel %vm608, %v589, 0
      %v613 = vsel %vm608, %v590, 0
      %v616 = vsel %vm608, %v591, 0
      %v619 = vsel %vm608, %v592, 0
      %v622 = vsel %vm608, %v593, 0
      %v625 = vsel %vm608, %v594, 0
      %v628 = vsel %vm608, %v595, 0
      %v631 = vsel %vm608, %v596, 0
      %633 = vmatprep.subr.mxu0 0.0
      %634 = vmatpush1.msra.mxu0 0.0
      %635 = vmatprep.subr.mxu0 0.0
      %636 = vmatpush1.msra.mxu0 0.0
      %637 = vmatprep.subr.mxu0 0.0
      %638 = vmatpush1.msra.mxu0 0.0
      %639 = vmatprep.subr.mxu0 0.0
      %640 = vmatpush1.msra.mxu0 0.0
      %641 = vmatprep.subr.mxu0 0.0
      %642 = vmatpush1.msra.mxu0 0.0
      %643 = vmatprep.subr.mxu0 0.0
      %644 = vmatpush1.msra.mxu0 0.0
      %645 = vmatprep.subr.mxu0 0.0
      %646 = vmatpush1.msra.mxu0 0.0
      %647 = vmatprep.subr.mxu0 0.0
      %648 = vmatpush1.msra.mxu0 0.0
      %649 = vmatprep.subr.mxu0 0.0
      %650 = vmatpush1.msra.mxu0 0.0
      %651 = vmatprep.subr.mxu0 0.0
      %652 = vmatpush1.msra.mxu0 0.0
      %653 = vmatprep.subr.mxu0 0.0
      %654 = vmatpush1.msra.mxu0 0.0
      %655 = vmatprep.subr.mxu0 0.0
      %656 = vmatpush1.msra.mxu0 0.0
      %657 = vmatprep.subr.mxu0 0.0
      %658 = vmatpush1.msra.mxu0 %v600
      %659 = vmatprep.subr.mxu0 0.0
      %660 = vmatpush1.msra.mxu0 %v599
      %661 = vmatprep.subr.mxu0 0.0
      %662 = vmatpush1.msra.mxu0 %v598
      %663 = vmatprep.subr.mxu0 0.0
      %664 = vmatpush1.msra.mxu0 %v597
      %665 = vmatprep.subr.mxu0 0.0
      %666 = vmatpush2.msra.mxu0 0.0
      %667 = vmatprep.subr.mxu0 0.0
      %668 = vmatpush2.msra.mxu0 0.0
      %669 = vmatprep.subr.mxu0 0.0
      %670 = vmatpush2.msra.mxu0 0.0
      %671 = vmatprep.subr.mxu0 0.0
      %672 = vmatpush2.msra.mxu0 0.0
      %673 = vmatprep.subr.mxu0 0.0
      %674 = vmatpush2.msra.mxu0 0.0
      %675 = vmatprep.subr.mxu0 0.0
      %676 = vmatpush2.msra.mxu0 0.0
      %677 = vmatprep.subr.mxu0 0.0
      %678 = vmatpush2.msra.mxu0 0.0
      %679 = vmatprep.subr.mxu0 0.0
      %680 = vmatpush2.msra.mxu0 0.0
      %681 = vmatprep.subr.mxu0 0.0
      %682 = vmatpush2.msra.mxu0 0.0
      %683 = vmatprep.subr.mxu0 0.0
      %684 = vmatpush2.msra.mxu0 0.0
      %685 = vmatprep.subr.mxu0 0.0
      %686 = vmatpush2.msra.mxu0 0.0
      %687 = vmatprep.subr.mxu0 0.0
      %688 = vmatpush2.msra.mxu0 0.0
      %689 = vmatprep.subr.mxu0 0.0
      %690 = vmatpush2.msra.mxu0 0.0
      %691 = vmatprep.subr.mxu0 0.0
      %692 = vmatpush2.msra.mxu0 0.0
      %693 = vmatprep.subr.mxu0 0.0
      %694 = vmatpush2.msra.mxu0 0.0
      %695 = vmatprep.subr.mxu0 0.0
      %696 = vmatpush2.msra.mxu0 0.0
      %697 = vmatprep.mubr.f32.mxu0 0.0
      %698 = vmatmul.mubr.f32.gmra.mxu0 %v610
      %v699 = vpop.f32.mrf.mxu0
      %v700 = vadd.f32 %v606, %v699
      %v701 = vpop.f32.mrf.mxu0
      %702 = vmatprep.mubr.f32.mxu0 0.0
      %703 = vmatmul.mubr.f32.gmra.mxu0 %v613
      %v704 = vpop.f32.mrf.mxu0
      %v705 = vadd.f32 %v606, %v704
      %v706 = vpop.f32.mrf.mxu0
      %707 = vmatprep.mubr.f32.mxu0 0.0
      %708 = vmatmul.mubr.f32.gmra.mxu0 %v616
      %v709 = vpop.f32.mrf.mxu0
      %v710 = vadd.f32 %v606, %v709
      %v711 = vpop.f32.mrf.mxu0
      %712 = vmatprep.mubr.f32.mxu0 0.0
      %713 = vmatmul.mubr.f32.gmra.mxu0 %v619
      %v714 = vpop.f32.mrf.mxu0
      %v715 = vadd.f32 %v606, %v714
      %v716 = vpop.f32.mrf.mxu0
      %717 = vmatprep.mubr.f32.mxu0 0.0
      %718 = vmatmul.mubr.f32.gmra.mxu0 %v622
      %v719 = vpop.f32.mrf.mxu0
      %v720 = vadd.f32 %v606, %v719
      %v721 = vpop.f32.mrf.mxu0
      %722 = vmatprep.mubr.f32.mxu0 0.0
      %723 = vmatmul.mubr.f32.gmra.mxu0 %v625
      %v724 = vpop.f32.mrf.mxu0
      %v725 = vadd.f32 %v606, %v724
      %v726 = vpop.f32.mrf.mxu0
      %727 = vmatprep.mubr.f32.mxu0 0.0
      %728 = vmatmul.mubr.f32.gmra.mxu0 %v628
      %v729 = vpop.f32.mrf.mxu0
      %v730 = vadd.f32 %v606, %v729
      %v731 = vpop.f32.mrf.mxu0
      %732 = vmatprep.mubr.f32.mxu0 0.0
      %733 = vmatmul.mubr.f32.gmra.mxu0 %v631
      %v734 = vpop.f32.mrf.mxu0
      %v735 = vadd.f32 %v606, %v734
      %v736 = vpop.f32.mrf.mxu0
      %737 = vdwg.mxu0
      %v738 = vld [vmem:[%s488] sm:$0xff]
      %v739 = vld [vmem:[%s488 + $0x8] sm:$0xff]
      %v740 = vld [vmem:[%s488 + $0x10] sm:$0xff]
      %v741 = vld [vmem:[%s488 + $0x18] sm:$0xff]
      %v742 = vsel %vm532, 1, 0
      %vm743 = vcmp.eq.s32.totalorder %v742, 1
      %v744 = vsel %vm743, %v700, %v735
      %v746 = vsel %vm608, 0.0, 0
      %748 = vmatprep.subr.mxu0 0.0
      %749 = vmatpush1.msra.mxu0 0.0
      %750 = vmatprep.subr.mxu0 0.0
      %751 = vmatpush1.msra.mxu0 0.0
      %752 = vmatprep.subr.mxu0 0.0
      %753 = vmatpush1.msra.mxu0 0.0
      %754 = vmatprep.subr.mxu0 0.0
      %755 = vmatpush1.msra.mxu0 0.0
      %756 = vmatprep.subr.mxu0 0.0
      %757 = vmatpush1.msra.mxu0 0.0
      %758 = vmatprep.subr.mxu0 0.0
      %759 = vmatpush1.msra.mxu0 0.0
      %760 = vmatprep.subr.mxu0 0.0
      %761 = vmatpush1.msra.mxu0 0.0
      %762 = vmatprep.subr.mxu0 0.0
      %763 = vmatpush1.msra.mxu0 0.0
      %764 = vmatprep.subr.mxu0 0.0
      %765 = vmatpush1.msra.mxu0 0.0
      %766 = vmatprep.subr.mxu0 0.0
      %767 = vmatpush1.msra.mxu0 0.0
      %768 = vmatprep.subr.mxu0 0.0
      %769 = vmatpush1.msra.mxu0 0.0
      %770 = vmatprep.subr.mxu0 0.0
      %771 = vmatpush1.msra.mxu0 0.0
      %772 = vmatprep.subr.mxu0 0.0
      %773 = vmatpush1.msra.mxu0 %v741
      %774 = vmatprep.subr.mxu0 0.0
      %775 = vmatpush1.msra.mxu0 %v740
      %776 = vmatprep.subr.mxu0 0.0
      %777 = vmatpush1.msra.mxu0 %v739
      %778 = vmatprep.subr.mxu0 0.0
      %779 = vmatpush1.msra.mxu0 %v738
      %780 = vmatprep.subr.mxu0 0.0
      %781 = vmatpush2.msra.mxu0 0.0
      %782 = vmatprep.subr.mxu0 0.0
      %783 = vmatpush2.msra.mxu0 0.0
      %784 = vmatprep.subr.mxu0 0.0
      %785 = vmatpush2.msra.mxu0 0.0
      %786 = vmatprep.subr.mxu0 0.0
      %787 = vmatpush2.msra.mxu0 0.0
      %788 = vmatprep.subr.mxu0 0.0
      %789 = vmatpush2.msra.mxu0 0.0
      %790 = vmatprep.subr.mxu0 0.0
      %791 = vmatpush2.msra.mxu0 0.0
      %792 = vmatprep.subr.mxu0 0.0
      %793 = vmatpush2.msra.mxu0 0.0
      %794 = vmatprep.subr.mxu0 0.0
      %795 = vmatpush2.msra.mxu0 0.0
      %796 = vmatprep.subr.mxu0 0.0
      %797 = vmatpush2.msra.mxu0 0.0
      %798 = vmatprep.subr.mxu0 0.0
      %799 = vmatpush2.msra.mxu0 0.0
      %800 = vmatprep.subr.mxu0 0.0
      %801 = vmatpush2.msra.mxu0 0.0
      %802 = vmatprep.subr.mxu0 0.0
      %803 = vmatpush2.msra.mxu0 0.0
      %804 = vmatprep.subr.mxu0 0.0
      %805 = vmatpush2.msra.mxu0 0.0
      %806 = vmatprep.subr.mxu0 0.0
      %807 = vmatpush2.msra.mxu0 0.0
      %808 = vmatprep.subr.mxu0 0.0
      %809 = vmatpush2.msra.mxu0 0.0
      %810 = vmatprep.subr.mxu0 0.0
      %811 = vmatpush2.msra.mxu0 0.0
      %812 = vmatprep.mubr.f32.mxu0 0.0
      %813 = vmatmul.mubr.f32.gmra.mxu0 %v746
      %v814 = vpop.f32.mrf.mxu0
      %v815 = vadd.f32 0.0, %v814
      %v816 = vpop.f32.mrf.mxu0
      %817 = vdwg.mxu0
      %v818 = vadd.f32 %v744, %v815
      %v819 = vtanh.pop %v818
      %v820 = vxor.u32 %v818, 2147483648
      %v821 = vmul.f32 %v820, 1.442695
      %v822 = vpow.pop %v821
      %v823 = vadd.f32 %v822, 1.0
      %v824 = vrcp.pop %v823
      %v825 = vmul.f32 1.0, %v824
      %v826 = vsel %vm535, 1, 0
      %vm827 = vcmp.eq.s32.totalorder %v826, 1
      %v828 = vsel %vm827, %v819, %v825
      %v829 = vmul.f32 %v828, 0.0
      %831 = vrot.lane.b32.xlu0 %v828, 64
      %v832 = vpop.permute.xlu0 %831
      %v834 = vmul.f32 %v828, %v832
      %836 = vrot.lane.b32.xlu0 %v834, 32
      %v837 = vpop.permute.xlu0 %836
      %v839 = vadd.f32 %v829, %v837
      %v840 = vtanh.pop %v839
      %842 = vrot.lane.b32.xlu0 %v840, 64
      %v843 = vpop.permute.xlu0 %842
      %v845 = vmul.f32 %v828, %v843
      %847 = vrot.lane.b32.xlu0 %v839, 96
      %v848 = vpop.permute.xlu0 %847
      %v850 = vmul.f32 %v557, %v848
      %v851 = vadd.f32 %v850, 0.0
      %853 = vrot.lane.b32.xlu0 %v845, 32
      %v854 = vpop.permute.xlu0 %853
      %v856 = vmul.f32 %v557, %v854
      %v857 = vadd.f32 %v856, 0.0
      %vm858 = vcmask 130048
      %859 = vst.msk [vmem:[#allocation2] sm:$0xff] %vm858, %v856
      %vm860 = vcmask 261248
      %861 = vst.msk [vmem:[#allocation2 + $0x38] sm:$0xff] %vm860, %v856
      %v862 = vsel %vm743, %v705, %v730
      %v864 = vsel %vm608, %v857, 0
      %866 = vmatprep.subr.mxu0 0.0
      %867 = vmatpush1.msra.mxu0 0.0
      %868 = vmatprep.subr.mxu0 0.0
      %869 = vmatpush1.msra.mxu0 0.0
      %870 = vmatprep.subr.mxu0 0.0
      %871 = vmatpush1.msra.mxu0 0.0
      %872 = vmatprep.subr.mxu0 0.0
      %873 = vmatpush1.msra.mxu0 0.0
      %874 = vmatprep.subr.mxu0 0.0
      %875 = vmatpush1.msra.mxu0 0.0
      %876 = vmatprep.subr.mxu0 0.0
      %877 = vmatpush1.msra.mxu0 0.0
      %878 = vmatprep.subr.mxu0 0.0
      %879 = vmatpush1.msra.mxu0 0.0
      %880 = vmatprep.subr.mxu0 0.0
      %881 = vmatpush1.msra.mxu0 0.0
      %882 = vmatprep.subr.mxu0 0.0
      %883 = vmatpush1.msra.mxu0 0.0
      %884 = vmatprep.subr.mxu0 0.0
      %885 = vmatpush1.msra.mxu0 0.0
      %886 = vmatprep.subr.mxu0 0.0
      %887 = vmatpush1.msra.mxu0 0.0
      %888 = vmatprep.subr.mxu0 0.0
      %889 = vmatpush1.msra.mxu0 0.0
      %890 = vmatprep.subr.mxu0 0.0
      %891 = vmatpush1.msra.mxu0 %v741
      %892 = vmatprep.subr.mxu0 0.0
      %893 = vmatpush1.msra.mxu0 %v740
      %894 = vmatprep.subr.mxu0 0.0
      %895 = vmatpush1.msra.mxu0 %v739
      %896 = vmatprep.subr.mxu0 0.0
      %897 = vmatpush1.msra.mxu0 %v738
      %898 = vmatprep.subr.mxu0 0.0
      %899 = vmatpush2.msra.mxu0 0.0
      %900 = vmatprep.subr.mxu0 0.0
      %901 = vmatpush2.msra.mxu0 0.0
      %902 = vmatprep.subr.mxu0 0.0
      %903 = vmatpush2.msra.mxu0 0.0
      %904 = vmatprep.subr.mxu0 0.0
      %905 = vmatpush2.msra.mxu0 0.0
      %906 = vmatprep.subr.mxu0 0.0
      %907 = vmatpush2.msra.mxu0 0.0
      %908 = vmatprep.subr.mxu0 0.0
      %909 = vmatpush2.msra.mxu0 0.0
      %910 = vmatprep.subr.mxu0 0.0
      %911 = vmatpush2.msra.mxu0 0.0
      %912 = vmatprep.subr.mxu0 0.0
      %913 = vmatpush2.msra.mxu0 0.0
      %914 = vmatprep.subr.mxu0 0.0
      %915 = vmatpush2.msra.mxu0 0.0
      %916 = vmatprep.subr.mxu0 0.0
      %917 = vmatpush2.msra.mxu0 0.0
      %918 = vmatprep.subr.mxu0 0.0
      %919 = vmatpush2.msra.mxu0 0.0
      %920 = vmatprep.subr.mxu0 0.0
      %921 = vmatpush2.msra.mxu0 0.0
      %922 = vmatprep.subr.mxu0 0.0
      %923 = vmatpush2.msra.mxu0 0.0
      %924 = vmatprep.subr.mxu0 0.0
      %925 = vmatpush2.msra.mxu0 0.0
      %926 = vmatprep.subr.mxu0 0.0
      %927 = vmatpush2.msra.mxu0 0.0
      %928 = vmatprep.subr.mxu0 0.0
      %929 = vmatpush2.msra.mxu0 0.0
      %930 = vmatprep.mubr.f32.mxu0 0.0
      %931 = vmatmul.mubr.f32.gmra.mxu0 %v864
      %v932 = vpop.f32.mrf.mxu0
      %v933 = vadd.f32 0.0, %v932
      %v934 = vpop.f32.mrf.mxu0
      %935 = vdwg.mxu0
      %v936 = vadd.f32 %v862, %v933
      %v937 = vtanh.pop %v936
      %v938 = vxor.u32 %v936, 2147483648
      %v939 = vmul.f32 %v938, 1.442695
      %v940 = vpow.pop %v939
      %v941 = vadd.f32 %v940, 1.0
      %v942 = vrcp.pop %v941
      %v943 = vmul.f32 1.0, %v942
      %v944 = vsel %vm827, %v937, %v943
      %946 = vrot.lane.b32.xlu0 %v851, 32
      %v947 = vpop.permute.xlu0 %946
      %v949 = vmul.f32 %v944, %v947
      %951 = vrot.lane.b32.xlu0 %v944, 64
      %v952 = vpop.permute.xlu0 %951
      %v954 = vmul.f32 %v944, %v952
      %956 = vrot.lane.b32.xlu0 %v954, 32
      %v957 = vpop.permute.xlu0 %956
      %v959 = vadd.f32 %v949, %v957
      %v960 = vtanh.pop %v959
      %962 = vrot.lane.b32.xlu0 %v960, 64
      %v963 = vpop.permute.xlu0 %962
      %v965 = vmul.f32 %v944, %v963
      %v966 = vsub.f32 %v959, %v947
      %968 = vrot.lane.b32.xlu0 %v966, 96
      %v969 = vpop.permute.xlu0 %968
      %v971 = vmul.f32 %v566, %v969
      %v972 = vadd.f32 %v851, %v971
      %973 = vrot.lane.b32.xlu0 %v857, 96
      %v974 = vpop.permute.xlu0 %973
      %v976 = vsub.f32 %v965, %v974
      %978 = vrot.lane.b32.xlu0 %v976, 32
      %v979 = vpop.permute.xlu0 %978
      %v981 = vmul.f32 %v566, %v979
      %v982 = vadd.f32 %v857, %v981
      %984 = vrot.lane.b32.xlu0 %v965, 32
      %v985 = vpop.permute.xlu0 %984
      %v987 = vmul.f32 %v566, %v985
      %988 = vst.msk [vmem:[#allocation2 + $0x8] sm:$0xff] %vm858, %v987
      %989 = vst.msk [vmem:[#allocation2 + $0x30] sm:$0xff] %vm860, %v987
      %v990 = vsel %vm743, %v710, %v725
      %v992 = vsel %vm608, %v982, 0
      %994 = vmatprep.subr.mxu0 0.0
      %995 = vmatpush1.msra.mxu0 0.0
      %996 = vmatprep.subr.mxu0 0.0
      %997 = vmatpush1.msra.mxu0 0.0
      %998 = vmatprep.subr.mxu0 0.0
      %999 = vmatpush1.msra.mxu0 0.0
      %1000 = vmatprep.subr.mxu0 0.0
      %1001 = vmatpush1.msra.mxu0 0.0
      %1002 = vmatprep.subr.mxu0 0.0
      %1003 = vmatpush1.msra.mxu0 0.0
      %1004 = vmatprep.subr.mxu0 0.0
      %1005 = vmatpush1.msra.mxu0 0.0
      %1006 = vmatprep.subr.mxu0 0.0
      %1007 = vmatpush1.msra.mxu0 0.0
      %1008 = vmatprep.subr.mxu0 0.0
      %1009 = vmatpush1.msra.mxu0 0.0
      %1010 = vmatprep.subr.mxu0 0.0
      %1011 = vmatpush1.msra.mxu0 0.0
      %1012 = vmatprep.subr.mxu0 0.0
      %1013 = vmatpush1.msra.mxu0 0.0
      %1014 = vmatprep.subr.mxu0 0.0
      %1015 = vmatpush1.msra.mxu0 0.0
      %1016 = vmatprep.subr.mxu0 0.0
      %1017 = vmatpush1.msra.mxu0 0.0
      %1018 = vmatprep.subr.mxu0 0.0
      %1019 = vmatpush1.msra.mxu0 %v741
      %1020 = vmatprep.subr.mxu0 0.0
      %1021 = vmatpush1.msra.mxu0 %v740
      %1022 = vmatprep.subr.mxu0 0.0
      %1023 = vmatpush1.msra.mxu0 %v739
      %1024 = vmatprep.subr.mxu0 0.0
      %1025 = vmatpush1.msra.mxu0 %v738
      %1026 = vmatprep.subr.mxu0 0.0
      %1027 = vmatpush2.msra.mxu0 0.0
      %1028 = vmatprep.subr.mxu0 0.0
      %1029 = vmatpush2.msra.mxu0 0.0
      %1030 = vmatprep.subr.mxu0 0.0
      %1031 = vmatpush2.msra.mxu0 0.0
      %1032 = vmatprep.subr.mxu0 0.0
      %1033 = vmatpush2.msra.mxu0 0.0
      %1034 = vmatprep.subr.mxu0 0.0
      %1035 = vmatpush2.msra.mxu0 0.0
      %1036 = vmatprep.subr.mxu0 0.0
      %1037 = vmatpush2.msra.mxu0 0.0
      %1038 = vmatprep.subr.mxu0 0.0
      %1039 = vmatpush2.msra.mxu0 0.0
      %1040 = vmatprep.subr.mxu0 0.0
      %1041 = vmatpush2.msra.mxu0 0.0
      %1042 = vmatprep.subr.mxu0 0.0
      %1043 = vmatpush2.msra.mxu0 0.0
      %1044 = vmatprep.subr.mxu0 0.0
      %1045 = vmatpush2.msra.mxu0 0.0
      %1046 = vmatprep.subr.mxu0 0.0
      %1047 = vmatpush2.msra.mxu0 0.0
      %1048 = vmatprep.subr.mxu0 0.0
      %1049 = vmatpush2.msra.mxu0 0.0
      %1050 = vmatprep.subr.mxu0 0.0
      %1051 = vmatpush2.msra.mxu0 0.0
      %1052 = vmatprep.subr.mxu0 0.0
      %1053 = vmatpush2.msra.mxu0 0.0
      %1054 = vmatprep.subr.mxu0 0.0
      %1055 = vmatpush2.msra.mxu0 0.0
      %1056 = vmatprep.subr.mxu0 0.0
      %1057 = vmatpush2.msra.mxu0 0.0
      %1058 = vmatprep.mubr.f32.mxu0 0.0
      %1059 = vmatmul.mubr.f32.gmra.mxu0 %v992
      %v1060 = vpop.f32.mrf.mxu0
      %v1061 = vadd.f32 0.0, %v1060
      %v1062 = vpop.f32.mrf.mxu0
      %1063 = vdwg.mxu0
      %v1064 = vadd.f32 %v990, %v1061
      %v1065 = vtanh.pop %v1064
      %v1066 = vxor.u32 %v1064, 2147483648
      %v1067 = vmul.f32 %v1066, 1.442695
      %v1068 = vpow.pop %v1067
      %v1069 = vadd.f32 %v1068, 1.0
      %v1070 = vrcp.pop %v1069
      %v1071 = vmul.f32 1.0, %v1070
      %v1072 = vsel %vm827, %v1065, %v1071
      %1074 = vrot.lane.b32.xlu0 %v972, 32
      %v1075 = vpop.permute.xlu0 %1074
      %v1077 = vmul.f32 %v1072, %v1075
      %1079 = vrot.lane.b32.xlu0 %v1072, 64
      %v1080 = vpop.permute.xlu0 %1079
      %v1082 = vmul.f32 %v1072, %v1080
      %1084 = vrot.lane.b32.xlu0 %v1082, 32
      %v1085 = vpop.permute.xlu0 %1084
      %v1087 = vadd.f32 %v1077, %v1085
      %v1088 = vtanh.pop %v1087
      %1090 = vrot.lane.b32.xlu0 %v1088, 64
      %v1091 = vpop.permute.xlu0 %1090
      %v1093 = vmul.f32 %v1072, %v1091
      %v1094 = vsub.f32 %v1087, %v1075
      %1096 = vrot.lane.b32.xlu0 %v1094, 96
      %v1097 = vpop.permute.xlu0 %1096
      %v1099 = vmul.f32 %v575, %v1097
      %v1100 = vadd.f32 %v972, %v1099
      %1101 = vrot.lane.b32.xlu0 %v982, 96
      %v1102 = vpop.permute.xlu0 %1101
      %v1104 = vsub.f32 %v1093, %v1102
      %1106 = vrot.lane.b32.xlu0 %v1104, 32
      %v1107 = vpop.permute.xlu0 %1106
      %v1109 = vmul.f32 %v575, %v1107
      %v1110 = vadd.f32 %v982, %v1109
      %1112 = vrot.lane.b32.xlu0 %v1093, 32
      %v1113 = vpop.permute.xlu0 %1112
      %v1115 = vmul.f32 %v575, %v1113
      %1116 = vst.msk [vmem:[#allocation2 + $0x10] sm:$0xff] %vm858, %v1115
      %1117 = vst.msk [vmem:[#allocation2 + $0x28] sm:$0xff] %vm860, %v1115
      %v1118 = vsel %vm743, %v715, %v720
      %v1120 = vsel %vm608, %v1110, 0
      %1122 = vmatprep.subr.mxu0 0.0
      %1123 = vmatpush1.msra.mxu0 0.0
      %1124 = vmatprep.subr.mxu0 0.0
      %1125 = vmatpush1.msra.mxu0 0.0
      %1126 = vmatprep.subr.mxu0 0.0
      %1127 = vmatpush1.msra.mxu0 0.0
      %1128 = vmatprep.subr.mxu0 0.0
      %1129 = vmatpush1.msra.mxu0 0.0
      %1130 = vmatprep.subr.mxu0 0.0
      %1131 = vmatpush1.msra.mxu0 0.0
      %1132 = vmatprep.subr.mxu0 0.0
      %1133 = vmatpush1.msra.mxu0 0.0
      %1134 = vmatprep.subr.mxu0 0.0
      %1135 = vmatpush1.msra.mxu0 0.0
      %1136 = vmatprep.subr.mxu0 0.0
      %1137 = vmatpush1.msra.mxu0 0.0
      %1138 = vmatprep.subr.mxu0 0.0
      %1139 = vmatpush1.msra.mxu0 0.0
      %1140 = vmatprep.subr.mxu0 0.0
      %1141 = vmatpush1.msra.mxu0 0.0
      %1142 = vmatprep.subr.mxu0 0.0
      %1143 = vmatpush1.msra.mxu0 0.0
      %1144 = vmatprep.subr.mxu0 0.0
      %1145 = vmatpush1.msra.mxu0 0.0
      %1146 = vmatprep.subr.mxu0 0.0
      %1147 = vmatpush1.msra.mxu0 %v741
      %1148 = vmatprep.subr.mxu0 0.0
      %1149 = vmatpush1.msra.mxu0 %v740
      %1150 = vmatprep.subr.mxu0 0.0
      %1151 = vmatpush1.msra.mxu0 %v739
      %1152 = vmatprep.subr.mxu0 0.0
      %1153 = vmatpush1.msra.mxu0 %v738
      %1154 = vmatprep.subr.mxu0 0.0
      %1155 = vmatpush2.msra.mxu0 0.0
      %1156 = vmatprep.subr.mxu0 0.0
      %1157 = vmatpush2.msra.mxu0 0.0
      %1158 = vmatprep.subr.mxu0 0.0
      %1159 = vmatpush2.msra.mxu0 0.0
      %1160 = vmatprep.subr.mxu0 0.0
      %1161 = vmatpush2.msra.mxu0 0.0
      %1162 = vmatprep.subr.mxu0 0.0
      %1163 = vmatpush2.msra.mxu0 0.0
      %1164 = vmatprep.subr.mxu0 0.0
      %1165 = vmatpush2.msra.mxu0 0.0
      %1166 = vmatprep.subr.mxu0 0.0
      %1167 = vmatpush2.msra.mxu0 0.0
      %1168 = vmatprep.subr.mxu0 0.0
      %1169 = vmatpush2.msra.mxu0 0.0
      %1170 = vmatprep.subr.mxu0 0.0
      %1171 = vmatpush2.msra.mxu0 0.0
      %1172 = vmatprep.subr.mxu0 0.0
      %1173 = vmatpush2.msra.mxu0 0.0
      %1174 = vmatprep.subr.mxu0 0.0
      %1175 = vmatpush2.msra.mxu0 0.0
      %1176 = vmatprep.subr.mxu0 0.0
      %1177 = vmatpush2.msra.mxu0 0.0
      %1178 = vmatprep.subr.mxu0 0.0
      %1179 = vmatpush2.msra.mxu0 0.0
      %1180 = vmatprep.subr.mxu0 0.0
      %1181 = vmatpush2.msra.mxu0 0.0
      %1182 = vmatprep.subr.mxu0 0.0
      %1183 = vmatpush2.msra.mxu0 0.0
      %1184 = vmatprep.subr.mxu0 0.0
      %1185 = vmatpush2.msra.mxu0 0.0
      %1186 = vmatprep.mubr.f32.mxu0 0.0
      %1187 = vmatmul.mubr.f32.gmra.mxu0 %v1120
      %v1188 = vpop.f32.mrf.mxu0
      %v1189 = vadd.f32 0.0, %v1188
      %v1190 = vpop.f32.mrf.mxu0
      %1191 = vdwg.mxu0
      %v1192 = vadd.f32 %v1118, %v1189
      %v1193 = vtanh.pop %v1192
      %v1194 = vxor.u32 %v1192, 2147483648
      %v1195 = vmul.f32 %v1194, 1.442695
      %v1196 = vpow.pop %v1195
      %v1197 = vadd.f32 %v1196, 1.0
      %v1198 = vrcp.pop %v1197
      %v1199 = vmul.f32 1.0, %v1198
      %v1200 = vsel %vm827, %v1193, %v1199
      %1202 = vrot.lane.b32.xlu0 %v1100, 32
      %v1203 = vpop.permute.xlu0 %1202
      %v1205 = vmul.f32 %v1200, %v1203
      %1207 = vrot.lane.b32.xlu0 %v1200, 64
      %v1208 = vpop.permute.xlu0 %1207
      %v1210 = vmul.f32 %v1200, %v1208
      %1212 = vrot.lane.b32.xlu0 %v1210, 32
      %v1213 = vpop.permute.xlu0 %1212
      %v1215 = vadd.f32 %v1205, %v1213
      %v1216 = vtanh.pop %v1215
      %1218 = vrot.lane.b32.xlu0 %v1216, 64
      %v1219 = vpop.permute.xlu0 %1218
      %v1221 = vmul.f32 %v1200, %v1219
      %v1222 = vsub.f32 %v1215, %v1203
      %1224 = vrot.lane.b32.xlu0 %v1222, 96
      %v1225 = vpop.permute.xlu0 %1224
      %v1227 = vmul.f32 %v584, %v1225
      %v1228 = vadd.f32 %v1100, %v1227
      %1229 = vrot.lane.b32.xlu0 %v1110, 96
      %v1230 = vpop.permute.xlu0 %1229
      %v1232 = vsub.f32 %v1221, %v1230
      %1234 = vrot.lane.b32.xlu0 %v1232, 32
      %v1235 = vpop.permute.xlu0 %1234
      %v1237 = vmul.f32 %v584, %v1235
      %v1238 = vadd.f32 %v1110, %v1237
      %1240 = vrot.lane.b32.xlu0 %v1221, 32
      %v1241 = vpop.permute.xlu0 %1240
      %v1243 = vmul.f32 %v584, %v1241
      %1244 = vst.msk [vmem:[#allocation2 + $0x18] sm:$0xff] %vm858, %v1243
      %1245 = vst.msk [vmem:[#allocation2 + $0x20] sm:$0xff] %vm860, %v1243
      %v1246 = vsel %vm743, %v720, %v715
      %v1248 = vsel %vm608, %v1238, 0
      %1250 = vmatprep.subr.mxu0 0.0
      %1251 = vmatpush1.msra.mxu0 0.0
      %1252 = vmatprep.subr.mxu0 0.0
      %1253 = vmatpush1.msra.mxu0 0.0
      %1254 = vmatprep.subr.mxu0 0.0
      %1255 = vmatpush1.msra.mxu0 0.0
      %1256 = vmatprep.subr.mxu0 0.0
      %1257 = vmatpush1.msra.mxu0 0.0
      %1258 = vmatprep.subr.mxu0 0.0
      %1259 = vmatpush1.msra.mxu0 0.0
      %1260 = vmatprep.subr.mxu0 0.0
      %1261 = vmatpush1.msra.mxu0 0.0
      %1262 = vmatprep.subr.mxu0 0.0
      %1263 = vmatpush1.msra.mxu0 0.0
      %1264 = vmatprep.subr.mxu0 0.0
      %1265 = vmatpush1.msra.mxu0 0.0
      %1266 = vmatprep.subr.mxu0 0.0
      %1267 = vmatpush1.msra.mxu0 0.0
      %1268 = vmatprep.subr.mxu0 0.0
      %1269 = vmatpush1.msra.mxu0 0.0
      %1270 = vmatprep.subr.mxu0 0.0
      %1271 = vmatpush1.msra.mxu0 0.0
      %1272 = vmatprep.subr.mxu0 0.0
      %1273 = vmatpush1.msra.mxu0 0.0
      %1274 = vmatprep.subr.mxu0 0.0
      %1275 = vmatpush1.msra.mxu0 %v741
      %1276 = vmatprep.subr.mxu0 0.0
      %1277 = vmatpush1.msra.mxu0 %v740
      %1278 = vmatprep.subr.mxu0 0.0
      %1279 = vmatpush1.msra.mxu0 %v739
      %1280 = vmatprep.subr.mxu0 0.0
      %1281 = vmatpush1.msra.mxu0 %v738
      %1282 = vmatprep.subr.mxu0 0.0
      %1283 = vmatpush2.msra.mxu0 0.0
      %1284 = vmatprep.subr.mxu0 0.0
      %1285 = vmatpush2.msra.mxu0 0.0
      %1286 = vmatprep.subr.mxu0 0.0
      %1287 = vmatpush2.msra.mxu0 0.0
      %1288 = vmatprep.subr.mxu0 0.0
      %1289 = vmatpush2.msra.mxu0 0.0
      %1290 = vmatprep.subr.mxu0 0.0
      %1291 = vmatpush2.msra.mxu0 0.0
      %1292 = vmatprep.subr.mxu0 0.0
      %1293 = vmatpush2.msra.mxu0 0.0
      %1294 = vmatprep.subr.mxu0 0.0
      %1295 = vmatpush2.msra.mxu0 0.0
      %1296 = vmatprep.subr.mxu0 0.0
      %1297 = vmatpush2.msra.mxu0 0.0
      %1298 = vmatprep.subr.mxu0 0.0
      %1299 = vmatpush2.msra.mxu0 0.0
      %1300 = vmatprep.subr.mxu0 0.0
      %1301 = vmatpush2.msra.mxu0 0.0
      %1302 = vmatprep.subr.mxu0 0.0
      %1303 = vmatpush2.msra.mxu0 0.0
      %1304 = vmatprep.subr.mxu0 0.0
      %1305 = vmatpush2.msra.mxu0 0.0
      %1306 = vmatprep.subr.mxu0 0.0
      %1307 = vmatpush2.msra.mxu0 0.0
      %1308 = vmatprep.subr.mxu0 0.0
      %1309 = vmatpush2.msra.mxu0 0.0
      %1310 = vmatprep.subr.mxu0 0.0
      %1311 = vmatpush2.msra.mxu0 0.0
      %1312 = vmatprep.subr.mxu0 0.0
      %1313 = vmatpush2.msra.mxu0 0.0
      %1314 = vmatprep.mubr.f32.mxu0 0.0
      %1315 = vmatmul.mubr.f32.gmra.mxu0 %v1248
      %v1316 = vpop.f32.mrf.mxu0
      %v1317 = vadd.f32 0.0, %v1316
      %v1318 = vpop.f32.mrf.mxu0
      %1319 = vdwg.mxu0
      %v1320 = vadd.f32 %v1246, %v1317
      %v1321 = vtanh.pop %v1320
      %v1322 = vxor.u32 %v1320, 2147483648
      %v1323 = vmul.f32 %v1322, 1.442695
      %v1324 = vpow.pop %v1323
      %v1325 = vadd.f32 %v1324, 1.0
      %v1326 = vrcp.pop %v1325
      %v1327 = vmul.f32 1.0, %v1326
      %v1328 = vsel %vm827, %v1321, %v1327
      %1330 = vrot.lane.b32.xlu0 %v1228, 32
      %v1331 = vpop.permute.xlu0 %1330
      %v1333 = vmul.f32 %v1328, %v1331
      %1335 = vrot.lane.b32.xlu0 %v1328, 64
      %v1336 = vpop.permute.xlu0 %1335
      %v1338 = vmul.f32 %v1328, %v1336
      %1340 = vrot.lane.b32.xlu0 %v1338, 32
      %v1341 = vpop.permute.xlu0 %1340
      %v1343 = vadd.f32 %v1333, %v1341
      %v1344 = vtanh.pop %v1343
      %1346 = vrot.lane.b32.xlu0 %v1344, 64
      %v1347 = vpop.permute.xlu0 %1346
      %v1349 = vmul.f32 %v1328, %v1347
      %v1350 = vsub.f32 %v1343, %v1331
      %1352 = vrot.lane.b32.xlu0 %v1350, 96
      %v1353 = vpop.permute.xlu0 %1352
      %v1355 = vmul.f32 %v585, %v1353
      %v1356 = vadd.f32 %v1228, %v1355
      %1357 = vrot.lane.b32.xlu0 %v1238, 96
      %v1358 = vpop.permute.xlu0 %1357
      %v1360 = vsub.f32 %v1349, %v1358
      %1362 = vrot.lane.b32.xlu0 %v1360, 32
      %v1363 = vpop.permute.xlu0 %1362
      %v1365 = vmul.f32 %v585, %v1363
      %v1366 = vadd.f32 %v1238, %v1365
      %1368 = vrot.lane.b32.xlu0 %v1349, 32
      %v1369 = vpop.permute.xlu0 %1368
      %v1371 = vmul.f32 %v585, %v1369
      %1372 = vst.msk [vmem:[#allocation2 + $0x20] sm:$0xff] %vm858, %v1371
      %1373 = vst.msk [vmem:[#allocation2 + $0x18] sm:$0xff] %vm860, %v1371
      %v1374 = vsel %vm743, %v725, %v710
      %v1376 = vsel %vm608, %v1366, 0
      %1378 = vmatprep.subr.mxu0 0.0
      %1379 = vmatpush1.msra.mxu0 0.0
      %1380 = vmatprep.subr.mxu0 0.0
      %1381 = vmatpush1.msra.mxu0 0.0
      %1382 = vmatprep.subr.mxu0 0.0
      %1383 = vmatpush1.msra.mxu0 0.0
      %1384 = vmatprep.subr.mxu0 0.0
      %1385 = vmatpush1.msra.mxu0 0.0
      %1386 = vmatprep.subr.mxu0 0.0
      %1387 = vmatpush1.msra.mxu0 0.0
      %1388 = vmatprep.subr.mxu0 0.0
      %1389 = vmatpush1.msra.mxu0 0.0
      %1390 = vmatprep.subr.mxu0 0.0
      %1391 = vmatpush1.msra.mxu0 0.0
      %1392 = vmatprep.subr.mxu0 0.0
      %1393 = vmatpush1.msra.mxu0 0.0
      %1394 = vmatprep.subr.mxu0 0.0
      %1395 = vmatpush1.msra.mxu0 0.0
      %1396 = vmatprep.subr.mxu0 0.0
      %1397 = vmatpush1.msra.mxu0 0.0
      %1398 = vmatprep.subr.mxu0 0.0
      %1399 = vmatpush1.msra.mxu0 0.0
      %1400 = vmatprep.subr.mxu0 0.0
      %1401 = vmatpush1.msra.mxu0 0.0
      %1402 = vmatprep.subr.mxu0 0.0
      %1403 = vmatpush1.msra.mxu0 %v741
      %1404 = vmatprep.subr.mxu0 0.0
      %1405 = vmatpush1.msra.mxu0 %v740
      %1406 = vmatprep.subr.mxu0 0.0
      %1407 = vmatpush1.msra.mxu0 %v739
      %1408 = vmatprep.subr.mxu0 0.0
      %1409 = vmatpush1.msra.mxu0 %v738
      %1410 = vmatprep.subr.mxu0 0.0
      %1411 = vmatpush2.msra.mxu0 0.0
      %1412 = vmatprep.subr.mxu0 0.0
      %1413 = vmatpush2.msra.mxu0 0.0
      %1414 = vmatprep.subr.mxu0 0.0
      %1415 = vmatpush2.msra.mxu0 0.0
      %1416 = vmatprep.subr.mxu0 0.0
      %1417 = vmatpush2.msra.mxu0 0.0
      %1418 = vmatprep.subr.mxu0 0.0
      %1419 = vmatpush2.msra.mxu0 0.0
      %1420 = vmatprep.subr.mxu0 0.0
      %1421 = vmatpush2.msra.mxu0 0.0
      %1422 = vmatprep.subr.mxu0 0.0
      %1423 = vmatpush2.msra.mxu0 0.0
      %1424 = vmatprep.subr.mxu0 0.0
      %1425 = vmatpush2.msra.mxu0 0.0
      %1426 = vmatprep.subr.mxu0 0.0
      %1427 = vmatpush2.msra.mxu0 0.0
      %1428 = vmatprep.subr.mxu0 0.0
      %1429 = vmatpush2.msra.mxu0 0.0
      %1430 = vmatprep.subr.mxu0 0.0
      %1431 = vmatpush2.msra.mxu0 0.0
      %1432 = vmatprep.subr.mxu0 0.0
      %1433 = vmatpush2.msra.mxu0 0.0
      %1434 = vmatprep.subr.mxu0 0.0
      %1435 = vmatpush2.msra.mxu0 0.0
      %1436 = vmatprep.subr.mxu0 0.0
      %1437 = vmatpush2.msra.mxu0 0.0
      %1438 = vmatprep.subr.mxu0 0.0
      %1439 = vmatpush2.msra.mxu0 0.0
      %1440 = vmatprep.subr.mxu0 0.0
      %1441 = vmatpush2.msra.mxu0 0.0
      %1442 = vmatprep.mubr.f32.mxu0 0.0
      %1443 = vmatmul.mubr.f32.gmra.mxu0 %v1376
      %v1444 = vpop.f32.mrf.mxu0
      %v1445 = vadd.f32 0.0, %v1444
      %v1446 = vpop.f32.mrf.mxu0
      %1447 = vdwg.mxu0
      %v1448 = vadd.f32 %v1374, %v1445
      %v1449 = vtanh.pop %v1448
      %v1450 = vxor.u32 %v1448, 2147483648
      %v1451 = vmul.f32 %v1450, 1.442695
      %v1452 = vpow.pop %v1451
      %v1453 = vadd.f32 %v1452, 1.0
      %v1454 = vrcp.pop %v1453
      %v1455 = vmul.f32 1.0, %v1454
      %v1456 = vsel %vm827, %v1449, %v1455
      %1458 = vrot.lane.b32.xlu0 %v1356, 32
      %v1459 = vpop.permute.xlu0 %1458
      %v1461 = vmul.f32 %v1456, %v1459
      %1463 = vrot.lane.b32.xlu0 %v1456, 64
      %v1464 = vpop.permute.xlu0 %1463
      %v1466 = vmul.f32 %v1456, %v1464
      %1468 = vrot.lane.b32.xlu0 %v1466, 32
      %v1469 = vpop.permute.xlu0 %1468
      %v1471 = vadd.f32 %v1461, %v1469
      %v1472 = vtanh.pop %v1471
      %1474 = vrot.lane.b32.xlu0 %v1472, 64
      %v1475 = vpop.permute.xlu0 %1474
      %v1477 = vmul.f32 %v1456, %v1475
      %v1478 = vsub.f32 %v1471, %v1459
      %1480 = vrot.lane.b32.xlu0 %v1478, 96
      %v1481 = vpop.permute.xlu0 %1480
      %v1483 = vmul.f32 %v586, %v1481
      %v1484 = vadd.f32 %v1356, %v1483
      %1485 = vrot.lane.b32.xlu0 %v1366, 96
      %v1486 = vpop.permute.xlu0 %1485
      %v1488 = vsub.f32 %v1477, %v1486
      %1490 = vrot.lane.b32.xlu0 %v1488, 32
      %v1491 = vpop.permute.xlu0 %1490
      %v1493 = vmul.f32 %v586, %v1491
      %v1494 = vadd.f32 %v1366, %v1493
      %1496 = vrot.lane.b32.xlu0 %v1477, 32
      %v1497 = vpop.permute.xlu0 %1496
      %v1499 = vmul.f32 %v586, %v1497
      %1500 = vst.msk [vmem:[#allocation2 + $0x28] sm:$0xff] %vm858, %v1499
      %1501 = vst.msk [vmem:[#allocation2 + $0x10] sm:$0xff] %vm860, %v1499
      %v1502 = vsel %vm743, %v730, %v705
      %v1504 = vsel %vm608, %v1494, 0
      %1506 = vmatprep.subr.mxu0 0.0
      %1507 = vmatpush1.msra.mxu0 0.0
      %1508 = vmatprep.subr.mxu0 0.0
      %1509 = vmatpush1.msra.mxu0 0.0
      %1510 = vmatprep.subr.mxu0 0.0
      %1511 = vmatpush1.msra.mxu0 0.0
      %1512 = vmatprep.subr.mxu0 0.0
      %1513 = vmatpush1.msra.mxu0 0.0
      %1514 = vmatprep.subr.mxu0 0.0
      %1515 = vmatpush1.msra.mxu0 0.0
      %1516 = vmatprep.subr.mxu0 0.0
      %1517 = vmatpush1.msra.mxu0 0.0
      %1518 = vmatprep.subr.mxu0 0.0
      %1519 = vmatpush1.msra.mxu0 0.0
      %1520 = vmatprep.subr.mxu0 0.0
      %1521 = vmatpush1.msra.mxu0 0.0
      %1522 = vmatprep.subr.mxu0 0.0
      %1523 = vmatpush1.msra.mxu0 0.0
      %1524 = vmatprep.subr.mxu0 0.0
      %1525 = vmatpush1.msra.mxu0 0.0
      %1526 = vmatprep.subr.mxu0 0.0
      %1527 = vmatpush1.msra.mxu0 0.0
      %1528 = vmatprep.subr.mxu0 0.0
      %1529 = vmatpush1.msra.mxu0 0.0
      %1530 = vmatprep.subr.mxu0 0.0
      %1531 = vmatpush1.msra.mxu0 %v741
      %1532 = vmatprep.subr.mxu0 0.0
      %1533 = vmatpush1.msra.mxu0 %v740
      %1534 = vmatprep.subr.mxu0 0.0
      %1535 = vmatpush1.msra.mxu0 %v739
      %1536 = vmatprep.subr.mxu0 0.0
      %1537 = vmatpush1.msra.mxu0 %v738
      %1538 = vmatprep.subr.mxu0 0.0
      %1539 = vmatpush2.msra.mxu0 0.0
      %1540 = vmatprep.subr.mxu0 0.0
      %1541 = vmatpush2.msra.mxu0 0.0
      %1542 = vmatprep.subr.mxu0 0.0
      %1543 = vmatpush2.msra.mxu0 0.0
      %1544 = vmatprep.subr.mxu0 0.0
      %1545 = vmatpush2.msra.mxu0 0.0
      %1546 = vmatprep.subr.mxu0 0.0
      %1547 = vmatpush2.msra.mxu0 0.0
      %1548 = vmatprep.subr.mxu0 0.0
      %1549 = vmatpush2.msra.mxu0 0.0
      %1550 = vmatprep.subr.mxu0 0.0
      %1551 = vmatpush2.msra.mxu0 0.0
      %1552 = vmatprep.subr.mxu0 0.0
      %1553 = vmatpush2.msra.mxu0 0.0
      %1554 = vmatprep.subr.mxu0 0.0
      %1555 = vmatpush2.msra.mxu0 0.0
      %1556 = vmatprep.subr.mxu0 0.0
      %1557 = vmatpush2.msra.mxu0 0.0
      %1558 = vmatprep.subr.mxu0 0.0
      %1559 = vmatpush2.msra.mxu0 0.0
      %1560 = vmatprep.subr.mxu0 0.0
      %1561 = vmatpush2.msra.mxu0 0.0
      %1562 = vmatprep.subr.mxu0 0.0
      %1563 = vmatpush2.msra.mxu0 0.0
      %1564 = vmatprep.subr.mxu0 0.0
      %1565 = vmatpush2.msra.mxu0 0.0
      %1566 = vmatprep.subr.mxu0 0.0
      %1567 = vmatpush2.msra.mxu0 0.0
      %1568 = vmatprep.subr.mxu0 0.0
      %1569 = vmatpush2.msra.mxu0 0.0
      %1570 = vmatprep.mubr.f32.mxu0 0.0
      %1571 = vmatmul.mubr.f32.gmra.mxu0 %v1504
      %v1572 = vpop.f32.mrf.mxu0
      %v1573 = vadd.f32 0.0, %v1572
      %v1574 = vpop.f32.mrf.mxu0
      %1575 = vdwg.mxu0
      %v1576 = vadd.f32 %v1502, %v1573
      %v1577 = vtanh.pop %v1576
      %v1578 = vxor.u32 %v1576, 2147483648
      %v1579 = vmul.f32 %v1578, 1.442695
      %v1580 = vpow.pop %v1579
      %v1581 = vadd.f32 %v1580, 1.0
      %v1582 = vrcp.pop %v1581
      %v1583 = vmul.f32 1.0, %v1582
      %v1584 = vsel %vm827, %v1577, %v1583
      %1586 = vrot.lane.b32.xlu0 %v1484, 32
      %v1587 = vpop.permute.xlu0 %1586
      %v1589 = vmul.f32 %v1584, %v1587
      %1591 = vrot.lane.b32.xlu0 %v1584, 64
      %v1592 = vpop.permute.xlu0 %1591
      %v1594 = vmul.f32 %v1584, %v1592
      %1596 = vrot.lane.b32.xlu0 %v1594, 32
      %v1597 = vpop.permute.xlu0 %1596
      %v1599 = vadd.f32 %v1589, %v1597
      %v1600 = vtanh.pop %v1599
      %1602 = vrot.lane.b32.xlu0 %v1600, 64
      %v1603 = vpop.permute.xlu0 %1602
      %v1605 = vmul.f32 %v1584, %v1603
      %v1606 = vsub.f32 %v1599, %v1587
      %1608 = vrot.lane.b32.xlu0 %v1606, 96
      %v1609 = vpop.permute.xlu0 %1608
      %v1611 = vmul.f32 %v587, %v1609
      %v1612 = vadd.f32 %v1484, %v1611
      %1613 = vrot.lane.b32.xlu0 %v1494, 96
      %v1614 = vpop.permute.xlu0 %1613
      %v1616 = vsub.f32 %v1605, %v1614
      %1618 = vrot.lane.b32.xlu0 %v1616, 32
      %v1619 = vpop.permute.xlu0 %1618
      %v1621 = vmul.f32 %v587, %v1619
      %v1622 = vadd.f32 %v1494, %v1621
      %1624 = vrot.lane.b32.xlu0 %v1605, 32
      %v1625 = vpop.permute.xlu0 %1624
      %v1627 = vmul.f32 %v587, %v1625
      %1628 = vst.msk [vmem:[#allocation2 + $0x30] sm:$0xff] %vm858, %v1627
      %1629 = vst.msk [vmem:[#allocation2 + $0x8] sm:$0xff] %vm860, %v1627
      %v1630 = vsel %vm743, %v735, %v700
      %v1632 = vsel %vm608, %v1622, 0
      %1634 = vmatprep.subr.mxu0 0.0
      %1635 = vmatpush1.msra.mxu0 0.0
      %1636 = vmatprep.subr.mxu0 0.0
      %1637 = vmatpush1.msra.mxu0 0.0
      %1638 = vmatprep.subr.mxu0 0.0
      %1639 = vmatpush1.msra.mxu0 0.0
      %1640 = vmatprep.subr.mxu0 0.0
      %1641 = vmatpush1.msra.mxu0 0.0
      %1642 = vmatprep.subr.mxu0 0.0
      %1643 = vmatpush1.msra.mxu0 0.0
      %1644 = vmatprep.subr.mxu0 0.0
      %1645 = vmatpush1.msra.mxu0 0.0
      %1646 = vmatprep.subr.mxu0 0.0
      %1647 = vmatpush1.msra.mxu0 0.0
      %1648 = vmatprep.subr.mxu0 0.0
      %1649 = vmatpush1.msra.mxu0 0.0
      %1650 = vmatprep.subr.mxu0 0.0
      %1651 = vmatpush1.msra.mxu0 0.0
      %1652 = vmatprep.subr.mxu0 0.0
      %1653 = vmatpush1.msra.mxu0 0.0
      %1654 = vmatprep.subr.mxu0 0.0
      %1655 = vmatpush1.msra.mxu0 0.0
      %1656 = vmatprep.subr.mxu0 0.0
      %1657 = vmatpush1.msra.mxu0 0.0
      %1658 = vmatprep.subr.mxu0 0.0
      %1659 = vmatpush1.msra.mxu0 %v741
      %1660 = vmatprep.subr.mxu0 0.0
      %1661 = vmatpush1.msra.mxu0 %v740
      %1662 = vmatprep.subr.mxu0 0.0
      %1663 = vmatpush1.msra.mxu0 %v739
      %1664 = vmatprep.subr.mxu0 0.0
      %1665 = vmatpush1.msra.mxu0 %v738
      %1666 = vmatprep.subr.mxu0 0.0
      %1667 = vmatpush2.msra.mxu0 0.0
      %1668 = vmatprep.subr.mxu0 0.0
      %1669 = vmatpush2.msra.mxu0 0.0
      %1670 = vmatprep.subr.mxu0 0.0
      %1671 = vmatpush2.msra.mxu0 0.0
      %1672 = vmatprep.subr.mxu0 0.0
      %1673 = vmatpush2.msra.mxu0 0.0
      %1674 = vmatprep.subr.mxu0 0.0
      %1675 = vmatpush2.msra.mxu0 0.0
      %1676 = vmatprep.subr.mxu0 0.0
      %1677 = vmatpush2.msra.mxu0 0.0
      %1678 = vmatprep.subr.mxu0 0.0
      %1679 = vmatpush2.msra.mxu0 0.0
      %1680 = vmatprep.subr.mxu0 0.0
      %1681 = vmatpush2.msra.mxu0 0.0
      %1682 = vmatprep.subr.mxu0 0.0
      %1683 = vmatpush2.msra.mxu0 0.0
      %1684 = vmatprep.subr.mxu0 0.0
      %1685 = vmatpush2.msra.mxu0 0.0
      %1686 = vmatprep.subr.mxu0 0.0
      %1687 = vmatpush2.msra.mxu0 0.0
      %1688 = vmatprep.subr.mxu0 0.0
      %1689 = vmatpush2.msra.mxu0 0.0
      %1690 = vmatprep.subr.mxu0 0.0
      %1691 = vmatpush2.msra.mxu0 0.0
      %1692 = vmatprep.subr.mxu0 0.0
      %1693 = vmatpush2.msra.mxu0 0.0
      %1694 = vmatprep.subr.mxu0 0.0
      %1695 = vmatpush2.msra.mxu0 0.0
      %1696 = vmatprep.subr.mxu0 0.0
      %1697 = vmatpush2.msra.mxu0 0.0
      %1698 = vmatprep.mubr.f32.mxu0 0.0
      %1699 = vmatmul.mubr.f32.gmra.mxu0 %v1632
      %v1700 = vpop.f32.mrf.mxu0
      %v1701 = vadd.f32 0.0, %v1700
      %v1702 = vpop.f32.mrf.mxu0
      %1703 = vdwg.mxu0
      %v1704 = vadd.f32 %v1630, %v1701
      %v1705 = vtanh.pop %v1704
      %v1706 = vxor.u32 %v1704, 2147483648
      %v1707 = vmul.f32 %v1706, 1.442695
      %v1708 = vpow.pop %v1707
      %v1709 = vadd.f32 %v1708, 1.0
      %v1710 = vrcp.pop %v1709
      %v1711 = vmul.f32 1.0, %v1710
      %v1712 = vsel %vm827, %v1705, %v1711
      %1714 = vrot.lane.b32.xlu0 %v1612, 32
      %v1715 = vpop.permute.xlu0 %1714
      %v1717 = vmul.f32 %v1712, %v1715
      %1719 = vrot.lane.b32.xlu0 %v1712, 64
      %v1720 = vpop.permute.xlu0 %1719
      %v1722 = vmul.f32 %v1712, %v1720
      %1724 = vrot.lane.b32.xlu0 %v1722, 32
      %v1725 = vpop.permute.xlu0 %1724
      %v1727 = vadd.f32 %v1717, %v1725
      %v1728 = vtanh.pop %v1727
      %1730 = vrot.lane.b32.xlu0 %v1728, 64
      %v1731 = vpop.permute.xlu0 %1730
      %v1733 = vmul.f32 %v1712, %v1731
      %1735 = vrot.lane.b32.xlu0 %v1733, 32
      %v1736 = vpop.permute.xlu0 %1735
      %v1738 = vmul.f32 %v588, %v1736
      %1739 = vst.msk [vmem:[#allocation2 + $0x38] sm:$0xff] %vm858, %v1738
      %1740 = vst.msk [vmem:[#allocation2] sm:$0xff] %vm860, %v1738
      %v1741 = vld [vmem:[#allocation2] sm:$0xff]
      %v1742 = vld [vmem:[#allocation2 + $0x8] sm:$0xff]
      %v1743 = vld [vmem:[#allocation2 + $0x10] sm:$0xff]
      %v1744 = vld [vmem:[#allocation2 + $0x18] sm:$0xff]
      %v1745 = vld [vmem:[#allocation2 + $0x20] sm:$0xff]
      %v1746 = vld [vmem:[#allocation2 + $0x28] sm:$0xff]
      %v1747 = vld [vmem:[#allocation2 + $0x30] sm:$0xff]
      %v1748 = vld [vmem:[#allocation2 + $0x38] sm:$0xff]
      %v1749 = vld [vmem:[%s496] sm:$0xff]
      %v1750 = vld [vmem:[%s496 + $0x8] sm:$0xff]
      %v1751 = vld [vmem:[%s496 + $0x10] sm:$0xff]
      %v1752 = vld [vmem:[%s496 + $0x18] sm:$0xff]
      %v1753 = vld [vmem:[%s504] sm:$0x1]
      %v1755 = vlaneseq
      %v1756 = vshrl.u32 %v1755, 7
      %v1757 = vsub.s32 0, %v1756
      %v1758 = vrot.slane %v1753, %v1757
      %v1761 = vsel %vm608, %v1741, 0
      %v1764 = vsel %vm608, %v1742, 0
      %v1767 = vsel %vm608, %v1743, 0
      %v1770 = vsel %vm608, %v1744, 0
      %v1773 = vsel %vm608, %v1745, 0
      %v1776 = vsel %vm608, %v1746, 0
      %v1779 = vsel %vm608, %v1747, 0
      %v1782 = vsel %vm608, %v1748, 0
      %1784 = vmatprep.subr.mxu0 0.0
      %1785 = vmatpush1.msra.mxu0 0.0
      %1786 = vmatprep.subr.mxu0 0.0
      %1787 = vmatpush1.msra.mxu0 0.0
      %1788 = vmatprep.subr.mxu0 0.0
      %1789 = vmatpush1.msra.mxu0 0.0
      %1790 = vmatprep.subr.mxu0 0.0
      %1791 = vmatpush1.msra.mxu0 0.0
      %1792 = vmatprep.subr.mxu0 0.0
      %1793 = vmatpush1.msra.mxu0 0.0
      %1794 = vmatprep.subr.mxu0 0.0
      %1795 = vmatpush1.msra.mxu0 0.0
      %1796 = vmatprep.subr.mxu0 0.0
      %1797 = vmatpush1.msra.mxu0 0.0
      %1798 = vmatprep.subr.mxu0 0.0
      %1799 = vmatpush1.msra.mxu0 0.0
      %1800 = vmatprep.subr.mxu0 0.0
      %1801 = vmatpush1.msra.mxu0 0.0
      %1802 = vmatprep.subr.mxu0 0.0
      %1803 = vmatpush1.msra.mxu0 0.0
      %1804 = vmatprep.subr.mxu0 0.0
      %1805 = vmatpush1.msra.mxu0 0.0
      %1806 = vmatprep.subr.mxu0 0.0
      %1807 = vmatpush1.msra.mxu0 0.0
      %1808 = vmatprep.subr.mxu0 0.0
      %1809 = vmatpush1.msra.mxu0 %v1752
      %1810 = vmatprep.subr.mxu0 0.0
      %1811 = vmatpush1.msra.mxu0 %v1751
      %1812 = vmatprep.subr.mxu0 0.0
      %1813 = vmatpush1.msra.mxu0 %v1750
      %1814 = vmatprep.subr.mxu0 0.0
      %1815 = vmatpush1.msra.mxu0 %v1749
      %1816 = vmatprep.subr.mxu0 0.0
      %1817 = vmatpush2.msra.mxu0 0.0
      %1818 = vmatprep.subr.mxu0 0.0
      %1819 = vmatpush2.msra.mxu0 0.0
      %1820 = vmatprep.subr.mxu0 0.0
      %1821 = vmatpush2.msra.mxu0 0.0
      %1822 = vmatprep.subr.mxu0 0.0
      %1823 = vmatpush2.msra.mxu0 0.0
      %1824 = vmatprep.subr.mxu0 0.0
      %1825 = vmatpush2.msra.mxu0 0.0
      %1826 = vmatprep.subr.mxu0 0.0
      %1827 = vmatpush2.msra.mxu0 0.0
      %1828 = vmatprep.subr.mxu0 0.0
      %1829 = vmatpush2.msra.mxu0 0.0
      %1830 = vmatprep.subr.mxu0 0.0
      %1831 = vmatpush2.msra.mxu0 0.0
      %1832 = vmatprep.subr.mxu0 0.0
      %1833 = vmatpush2.msra.mxu0 0.0
      %1834 = vmatprep.subr.mxu0 0.0
      %1835 = vmatpush2.msra.mxu0 0.0
      %1836 = vmatprep.subr.mxu0 0.0
      %1837 = vmatpush2.msra.mxu0 0.0
      %1838 = vmatprep.subr.mxu0 0.0
      %1839 = vmatpush2.msra.mxu0 0.0
      %1840 = vmatprep.subr.mxu0 0.0
      %1841 = vmatpush2.msra.mxu0 0.0
      %1842 = vmatprep.subr.mxu0 0.0
      %1843 = vmatpush2.msra.mxu0 0.0
      %1844 = vmatprep.subr.mxu0 0.0
      %1845 = vmatpush2.msra.mxu0 0.0
      %1846 = vmatprep.subr.mxu0 0.0
      %1847 = vmatpush2.msra.mxu0 0.0
      %1848 = vmatprep.mubr.f32.mxu0 0.0
      %1849 = vmatmul.mubr.f32.gmra.mxu0 %v1761
      %v1850 = vpop.f32.mrf.mxu0
      %v1851 = vadd.f32 %v1758, %v1850
      %v1852 = vpop.f32.mrf.mxu0
      %1853 = vmatprep.mubr.f32.mxu0 0.0
      %1854 = vmatmul.mubr.f32.gmra.mxu0 %v1764
      %v1855 = vpop.f32.mrf.mxu0
      %v1856 = vadd.f32 %v1758, %v1855
      %v1857 = vpop.f32.mrf.mxu0
      %1858 = vmatprep.mubr.f32.mxu0 0.0
      %1859 = vmatmul.mubr.f32.gmra.mxu0 %v1767
      %v1860 = vpop.f32.mrf.mxu0
      %v1861 = vadd.f32 %v1758, %v1860
      %v1862 = vpop.f32.mrf.mxu0
      %1863 = vmatprep.mubr.f32.mxu0 0.0
      %1864 = vmatmul.mubr.f32.gmra.mxu0 %v1770
      %v1865 = vpop.f32.mrf.mxu0
      %v1866 = vadd.f32 %v1758, %v1865
      %v1867 = vpop.f32.mrf.mxu0
      %1868 = vmatprep.mubr.f32.mxu0 0.0
      %1869 = vmatmul.mubr.f32.gmra.mxu0 %v1773
      %v1870 = vpop.f32.mrf.mxu0
      %v1871 = vadd.f32 %v1758, %v1870
      %v1872 = vpop.f32.mrf.mxu0
      %1873 = vmatprep.mubr.f32.mxu0 0.0
      %1874 = vmatmul.mubr.f32.gmra.mxu0 %v1776
      %v1875 = vpop.f32.mrf.mxu0
      %v1876 = vadd.f32 %v1758, %v1875
      %v1877 = vpop.f32.mrf.mxu0
      %1878 = vmatprep.mubr.f32.mxu0 0.0
      %1879 = vmatmul.mubr.f32.gmra.mxu0 %v1779
      %v1880 = vpop.f32.mrf.mxu0
      %v1881 = vadd.f32 %v1758, %v1880
      %v1882 = vpop.f32.mrf.mxu0
      %1883 = vmatprep.mubr.f32.mxu0 0.0
      %1884 = vmatmul.mubr.f32.gmra.mxu0 %v1782
      %v1885 = vpop.f32.mrf.mxu0
      %v1886 = vadd.f32 %v1758, %v1885
      %v1887 = vpop.f32.mrf.mxu0
      %1888 = vdwg.mxu0
      %v1889 = vld [vmem:[%s501] sm:$0xff]
      %v1890 = vld [vmem:[%s501 + $0x8] sm:$0xff]
      %v1891 = vld [vmem:[%s501 + $0x10] sm:$0xff]
      %v1892 = vld [vmem:[%s501 + $0x18] sm:$0xff]
      %v1893 = vsel %vm743, %v1851, %v1886
      %1894 = vmatprep.subr.mxu0 0.0
      %1895 = vmatpush1.msra.mxu0 0.0
      %1896 = vmatprep.subr.mxu0 0.0
      %1897 = vmatpush1.msra.mxu0 0.0
      %1898 = vmatprep.subr.mxu0 0.0
      %1899 = vmatpush1.msra.mxu0 0.0
      %1900 = vmatprep.subr.mxu0 0.0
      %1901 = vmatpush1.msra.mxu0 0.0
      %1902 = vmatprep.subr.mxu0 0.0
      %1903 = vmatpush1.msra.mxu0 0.0
      %1904 = vmatprep.subr.mxu0 0.0
      %1905 = vmatpush1.msra.mxu0 0.0
      %1906 = vmatprep.subr.mxu0 0.0
      %1907 = vmatpush1.msra.mxu0 0.0
      %1908 = vmatprep.subr.mxu0 0.0
      %1909 = vmatpush1.msra.mxu0 0.0
      %1910 = vmatprep.subr.mxu0 0.0
      %1911 = vmatpush1.msra.mxu0 0.0
      %1912 = vmatprep.subr.mxu0 0.0
      %1913 = vmatpush1.msra.mxu0 0.0
      %1914 = vmatprep.subr.mxu0 0.0
      %1915 = vmatpush1.msra.mxu0 0.0
      %1916 = vmatprep.subr.mxu0 0.0
      %1917 = vmatpush1.msra.mxu0 0.0
      %1918 = vmatprep.subr.mxu0 0.0
      %1919 = vmatpush1.msra.mxu0 %v1892
      %1920 = vmatprep.subr.mxu0 0.0
      %1921 = vmatpush1.msra.mxu0 %v1891
      %1922 = vmatprep.subr.mxu0 0.0
      %1923 = vmatpush1.msra.mxu0 %v1890
      %1924 = vmatprep.subr.mxu0 0.0
      %1925 = vmatpush1.msra.mxu0 %v1889
      %1926 = vmatprep.subr.mxu0 0.0
      %1927 = vmatpush2.msra.mxu0 0.0
      %1928 = vmatprep.subr.mxu0 0.0
      %1929 = vmatpush2.msra.mxu0 0.0
      %1930 = vmatprep.subr.mxu0 0.0
      %1931 = vmatpush2.msra.mxu0 0.0
      %1932 = vmatprep.subr.mxu0 0.0
      %1933 = vmatpush2.msra.mxu0 0.0
      %1934 = vmatprep.subr.mxu0 0.0
      %1935 = vmatpush2.msra.mxu0 0.0
      %1936 = vmatprep.subr.mxu0 0.0
      %1937 = vmatpush2.msra.mxu0 0.0
      %1938 = vmatprep.subr.mxu0 0.0
      %1939 = vmatpush2.msra.mxu0 0.0
      %1940 = vmatprep.subr.mxu0 0.0
      %1941 = vmatpush2.msra.mxu0 0.0
      %1942 = vmatprep.subr.mxu0 0.0
      %1943 = vmatpush2.msra.mxu0 0.0
      %1944 = vmatprep.subr.mxu0 0.0
      %1945 = vmatpush2.msra.mxu0 0.0
      %1946 = vmatprep.subr.mxu0 0.0
      %1947 = vmatpush2.msra.mxu0 0.0
      %1948 = vmatprep.subr.mxu0 0.0
      %1949 = vmatpush2.msra.mxu0 0.0
      %1950 = vmatprep.subr.mxu0 0.0
      %1951 = vmatpush2.msra.mxu0 0.0
      %1952 = vmatprep.subr.mxu0 0.0
      %1953 = vmatpush2.msra.mxu0 0.0
      %1954 = vmatprep.subr.mxu0 0.0
      %1955 = vmatpush2.msra.mxu0 0.0
      %1956 = vmatprep.subr.mxu0 0.0
      %1957 = vmatpush2.msra.mxu0 0.0
      %1958 = vmatprep.mubr.f32.mxu0 0.0
      %1959 = vmatmul.mubr.f32.gmra.mxu0 %v746
      %v1960 = vpop.f32.mrf.mxu0
      %v1961 = vadd.f32 0.0, %v1960
      %v1962 = vpop.f32.mrf.mxu0
      %1963 = vdwg.mxu0
      %v1964 = vadd.f32 %v1893, %v1961
      %v1965 = vtanh.pop %v1964
      %v1966 = vxor.u32 %v1964, 2147483648
      %v1967 = vmul.f32 %v1966, 1.442695
      %v1968 = vpow.pop %v1967
      %v1969 = vadd.f32 %v1968, 1.0
      %v1970 = vrcp.pop %v1969
      %v1971 = vmul.f32 1.0, %v1970
      %v1972 = vsel %vm827, %v1965, %v1971
      %v1973 = vmul.f32 %v1972, 0.0
      %1975 = vrot.lane.b32.xlu0 %v1972, 64
      %v1976 = vpop.permute.xlu0 %1975
      %v1978 = vmul.f32 %v1972, %v1976
      %1980 = vrot.lane.b32.xlu0 %v1978, 32
      %v1981 = vpop.permute.xlu0 %1980
      %v1983 = vadd.f32 %v1973, %v1981
      %v1984 = vtanh.pop %v1983
      %1986 = vrot.lane.b32.xlu0 %v1984, 64
      %v1987 = vpop.permute.xlu0 %1986
      %v1989 = vmul.f32 %v1972, %v1987
      %1991 = vrot.lane.b32.xlu0 %v1983, 96
      %v1992 = vpop.permute.xlu0 %1991
      %v1994 = vmul.f32 %v557, %v1992
      %v1995 = vadd.f32 %v1994, 0.0
      %1997 = vrot.lane.b32.xlu0 %v1989, 32
      %v1998 = vpop.permute.xlu0 %1997
      %v2000 = vmul.f32 %v557, %v1998
      %v2001 = vadd.f32 %v2000, 0.0
      %2002 = vst.msk [vmem:[#allocation2] sm:$0xff] %vm858, %v2000
      %2003 = vst.msk [vmem:[#allocation2 + $0x38] sm:$0xff] %vm860, %v2000
      %v2004 = vsel %vm743, %v1856, %v1881
      %v2006 = vsel %vm608, %v2001, 0
      %2008 = vmatprep.subr.mxu0 0.0
      %2009 = vmatpush1.msra.mxu0 0.0
      %2010 = vmatprep.subr.mxu0 0.0
      %2011 = vmatpush1.msra.mxu0 0.0
      %2012 = vmatprep.subr.mxu0 0.0
      %2013 = vmatpush1.msra.mxu0 0.0
      %2014 = vmatprep.subr.mxu0 0.0
      %2015 = vmatpush1.msra.mxu0 0.0
      %2016 = vmatprep.subr.mxu0 0.0
      %2017 = vmatpush1.msra.mxu0 0.0
      %2018 = vmatprep.subr.mxu0 0.0
      %2019 = vmatpush1.msra.mxu0 0.0
      %2020 = vmatprep.subr.mxu0 0.0
      %2021 = vmatpush1.msra.mxu0 0.0
      %2022 = vmatprep.subr.mxu0 0.0
      %2023 = vmatpush1.msra.mxu0 0.0
      %2024 = vmatprep.subr.mxu0 0.0
      %2025 = vmatpush1.msra.mxu0 0.0
      %2026 = vmatprep.subr.mxu0 0.0
      %2027 = vmatpush1.msra.mxu0 0.0
      %2028 = vmatprep.subr.mxu0 0.0
      %2029 = vmatpush1.msra.mxu0 0.0
      %2030 = vmatprep.subr.mxu0 0.0
      %2031 = vmatpush1.msra.mxu0 0.0
      %2032 = vmatprep.subr.mxu0 0.0
      %2033 = vmatpush1.msra.mxu0 %v1892
      %2034 = vmatprep.subr.mxu0 0.0
      %2035 = vmatpush1.msra.mxu0 %v1891
      %2036 = vmatprep.subr.mxu0 0.0
      %2037 = vmatpush1.msra.mxu0 %v1890
      %2038 = vmatprep.subr.mxu0 0.0
      %2039 = vmatpush1.msra.mxu0 %v1889
      %2040 = vmatprep.subr.mxu0 0.0
      %2041 = vmatpush2.msra.mxu0 0.0
      %2042 = vmatprep.subr.mxu0 0.0
      %2043 = vmatpush2.msra.mxu0 0.0
      %2044 = vmatprep.subr.mxu0 0.0
      %2045 = vmatpush2.msra.mxu0 0.0
      %2046 = vmatprep.subr.mxu0 0.0
      %2047 = vmatpush2.msra.mxu0 0.0
      %2048 = vmatprep.subr.mxu0 0.0
      %2049 = vmatpush2.msra.mxu0 0.0
      %2050 = vmatprep.subr.mxu0 0.0
      %2051 = vmatpush2.msra.mxu0 0.0
      %2052 = vmatprep.subr.mxu0 0.0
      %2053 = vmatpush2.msra.mxu0 0.0
      %2054 = vmatprep.subr.mxu0 0.0
      %2055 = vmatpush2.msra.mxu0 0.0
      %2056 = vmatprep.subr.mxu0 0.0
      %2057 = vmatpush2.msra.mxu0 0.0
      %2058 = vmatprep.subr.mxu0 0.0
      %2059 = vmatpush2.msra.mxu0 0.0
      %2060 = vmatprep.subr.mxu0 0.0
      %2061 = vmatpush2.msra.mxu0 0.0
      %2062 = vmatprep.subr.mxu0 0.0
      %2063 = vmatpush2.msra.mxu0 0.0
      %2064 = vmatprep.subr.mxu0 0.0
      %2065 = vmatpush2.msra.mxu0 0.0
      %2066 = vmatprep.subr.mxu0 0.0
      %2067 = vmatpush2.msra.mxu0 0.0
      %2068 = vmatprep.subr.mxu0 0.0
      %2069 = vmatpush2.msra.mxu0 0.0
      %2070 = vmatprep.subr.mxu0 0.0
      %2071 = vmatpush2.msra.mxu0 0.0
      %2072 = vmatprep.mubr.f32.mxu0 0.0
      %2073 = vmatmul.mubr.f32.gmra.mxu0 %v2006
      %v2074 = vpop.f32.mrf.mxu0
      %v2075 = vadd.f32 0.0, %v2074
      %v2076 = vpop.f32.mrf.mxu0
      %2077 = vdwg.mxu0
      %v2078 = vadd.f32 %v2004, %v2075
      %v2079 = vtanh.pop %v2078
      %v2080 = vxor.u32 %v2078, 2147483648
      %v2081 = vmul.f32 %v2080, 1.442695
      %v2082 = vpow.pop %v2081
      %v2083 = vadd.f32 %v2082, 1.0
      %v2084 = vrcp.pop %v2083
      %v2085 = vmul.f32 1.0, %v2084
      %v2086 = vsel %vm827, %v2079, %v2085
      %2088 = vrot.lane.b32.xlu0 %v1995, 32
      %v2089 = vpop.permute.xlu0 %2088
      %v2091 = vmul.f32 %v2086, %v2089
      %2093 = vrot.lane.b32.xlu0 %v2086, 64
      %v2094 = vpop.permute.xlu0 %2093
      %v2096 = vmul.f32 %v2086, %v2094
      %2098 = vrot.lane.b32.xlu0 %v2096, 32
      %v2099 = vpop.permute.xlu0 %2098
      %v2101 = vadd.f32 %v2091, %v2099
      %v2102 = vtanh.pop %v2101
      %2104 = vrot.lane.b32.xlu0 %v2102, 64
      %v2105 = vpop.permute.xlu0 %2104
      %v2107 = vmul.f32 %v2086, %v2105
      %v2108 = vsub.f32 %v2101, %v2089
      %2110 = vrot.lane.b32.xlu0 %v2108, 96
      %v2111 = vpop.permute.xlu0 %2110
      %v2113 = vmul.f32 %v566, %v2111
      %v2114 = vadd.f32 %v1995, %v2113
      %2115 = vrot.lane.b32.xlu0 %v2001, 96
      %v2116 = vpop.permute.xlu0 %2115
      %v2118 = vsub.f32 %v2107, %v2116
      %2120 = vrot.lane.b32.xlu0 %v2118, 32
      %v2121 = vpop.permute.xlu0 %2120
      %v2123 = vmul.f32 %v566, %v2121
      %v2124 = vadd.f32 %v2001, %v2123
      %2126 = vrot.lane.b32.xlu0 %v2107, 32
      %v2127 = vpop.permute.xlu0 %2126
      %v2129 = vmul.f32 %v566, %v2127
      %2130 = vst.msk [vmem:[#allocation2 + $0x8] sm:$0xff] %vm858, %v2129
      %2131 = vst.msk [vmem:[#allocation2 + $0x30] sm:$0xff] %vm860, %v2129
      %v2132 = vsel %vm743, %v1861, %v1876
      %v2134 = vsel %vm608, %v2124, 0
      %2136 = vmatprep.subr.mxu0 0.0
      %2137 = vmatpush1.msra.mxu0 0.0
      %2138 = vmatprep.subr.mxu0 0.0
      %2139 = vmatpush1.msra.mxu0 0.0
      %2140 = vmatprep.subr.mxu0 0.0
      %2141 = vmatpush1.msra.mxu0 0.0
      %2142 = vmatprep.subr.mxu0 0.0
      %2143 = vmatpush1.msra.mxu0 0.0
      %2144 = vmatprep.subr.mxu0 0.0
      %2145 = vmatpush1.msra.mxu0 0.0
      %2146 = vmatprep.subr.mxu0 0.0
      %2147 = vmatpush1.msra.mxu0 0.0
      %2148 = vmatprep.subr.mxu0 0.0
      %2149 = vmatpush1.msra.mxu0 0.0
      %2150 = vmatprep.subr.mxu0 0.0
      %2151 = vmatpush1.msra.mxu0 0.0
      %2152 = vmatprep.subr.mxu0 0.0
      %2153 = vmatpush1.msra.mxu0 0.0
      %2154 = vmatprep.subr.mxu0 0.0
      %2155 = vmatpush1.msra.mxu0 0.0
      %2156 = vmatprep.subr.mxu0 0.0
      %2157 = vmatpush1.msra.mxu0 0.0
      %2158 = vmatprep.subr.mxu0 0.0
      %2159 = vmatpush1.msra.mxu0 0.0
      %2160 = vmatprep.subr.mxu0 0.0
      %2161 = vmatpush1.msra.mxu0 %v1892
      %2162 = vmatprep.subr.mxu0 0.0
      %2163 = vmatpush1.msra.mxu0 %v1891
      %2164 = vmatprep.subr.mxu0 0.0
      %2165 = vmatpush1.msra.mxu0 %v1890
      %2166 = vmatprep.subr.mxu0 0.0
      %2167 = vmatpush1.msra.mxu0 %v1889
      %2168 = vmatprep.subr.mxu0 0.0
      %2169 = vmatpush2.msra.mxu0 0.0
      %2170 = vmatprep.subr.mxu0 0.0
      %2171 = vmatpush2.msra.mxu0 0.0
      %2172 = vmatprep.subr.mxu0 0.0
      %2173 = vmatpush2.msra.mxu0 0.0
      %2174 = vmatprep.subr.mxu0 0.0
      %2175 = vmatpush2.msra.mxu0 0.0
      %2176 = vmatprep.subr.mxu0 0.0
      %2177 = vmatpush2.msra.mxu0 0.0
      %2178 = vmatprep.subr.mxu0 0.0
      %2179 = vmatpush2.msra.mxu0 0.0
      %2180 = vmatprep.subr.mxu0 0.0
      %2181 = vmatpush2.msra.mxu0 0.0
      %2182 = vmatprep.subr.mxu0 0.0
      %2183 = vmatpush2.msra.mxu0 0.0
      %2184 = vmatprep.subr.mxu0 0.0
      %2185 = vmatpush2.msra.mxu0 0.0
      %2186 = vmatprep.subr.mxu0 0.0
      %2187 = vmatpush2.msra.mxu0 0.0
      %2188 = vmatprep.subr.mxu0 0.0
      %2189 = vmatpush2.msra.mxu0 0.0
      %2190 = vmatprep.subr.mxu0 0.0
      %2191 = vmatpush2.msra.mxu0 0.0
      %2192 = vmatprep.subr.mxu0 0.0
      %2193 = vmatpush2.msra.mxu0 0.0
      %2194 = vmatprep.subr.mxu0 0.0
      %2195 = vmatpush2.msra.mxu0 0.0
      %2196 = vmatprep.subr.mxu0 0.0
      %2197 = vmatpush2.msra.mxu0 0.0
      %2198 = vmatprep.subr.mxu0 0.0
      %2199 = vmatpush2.msra.mxu0 0.0
      %2200 = vmatprep.mubr.f32.mxu0 0.0
      %2201 = vmatmul.mubr.f32.gmra.mxu0 %v2134
      %v2202 = vpop.f32.mrf.mxu0
      %v2203 = vadd.f32 0.0, %v2202
      %v2204 = vpop.f32.mrf.mxu0
      %2205 = vdwg.mxu0
      %v2206 = vadd.f32 %v2132, %v2203
      %v2207 = vtanh.pop %v2206
      %v2208 = vxor.u32 %v2206, 2147483648
      %v2209 = vmul.f32 %v2208, 1.442695
      %v2210 = vpow.pop %v2209
      %v2211 = vadd.f32 %v2210, 1.0
      %v2212 = vrcp.pop %v2211
      %v2213 = vmul.f32 1.0, %v2212
      %v2214 = vsel %vm827, %v2207, %v2213
      %2216 = vrot.lane.b32.xlu0 %v2114, 32
      %v2217 = vpop.permute.xlu0 %2216
      %v2219 = vmul.f32 %v2214, %v2217
      %2221 = vrot.lane.b32.xlu0 %v2214, 64
      %v2222 = vpop.permute.xlu0 %2221
      %v2224 = vmul.f32 %v2214, %v2222
      %2226 = vrot.lane.b32.xlu0 %v2224, 32
      %v2227 = vpop.permute.xlu0 %2226
      %v2229 = vadd.f32 %v2219, %v2227
      %v2230 = vtanh.pop %v2229
      %2232 = vrot.lane.b32.xlu0 %v2230, 64
      %v2233 = vpop.permute.xlu0 %2232
      %v2235 = vmul.f32 %v2214, %v2233
      %v2236 = vsub.f32 %v2229, %v2217
      %2238 = vrot.lane.b32.xlu0 %v2236, 96
      %v2239 = vpop.permute.xlu0 %2238
      %v2241 = vmul.f32 %v575, %v2239
      %v2242 = vadd.f32 %v2114, %v2241
      %2243 = vrot.lane.b32.xlu0 %v2124, 96
      %v2244 = vpop.permute.xlu0 %2243
      %v2246 = vsub.f32 %v2235, %v2244
      %2248 = vrot.lane.b32.xlu0 %v2246, 32
      %v2249 = vpop.permute.xlu0 %2248
      %v2251 = vmul.f32 %v575, %v2249
      %v2252 = vadd.f32 %v2124, %v2251
      %2254 = vrot.lane.b32.xlu0 %v2235, 32
      %v2255 = vpop.permute.xlu0 %2254
      %v2257 = vmul.f32 %v575, %v2255
      %2258 = vst.msk [vmem:[#allocation2 + $0x10] sm:$0xff] %vm858, %v2257
      %2259 = vst.msk [vmem:[#allocation2 + $0x28] sm:$0xff] %vm860, %v2257
      %v2260 = vsel %vm743, %v1866, %v1871
      %v2262 = vsel %vm608, %v2252, 0
      %2264 = vmatprep.subr.mxu0 0.0
      %2265 = vmatpush1.msra.mxu0 0.0
      %2266 = vmatprep.subr.mxu0 0.0
      %2267 = vmatpush1.msra.mxu0 0.0
      %2268 = vmatprep.subr.mxu0 0.0
      %2269 = vmatpush1.msra.mxu0 0.0
      %2270 = vmatprep.subr.mxu0 0.0
      %2271 = vmatpush1.msra.mxu0 0.0
      %2272 = vmatprep.subr.mxu0 0.0
      %2273 = vmatpush1.msra.mxu0 0.0
      %2274 = vmatprep.subr.mxu0 0.0
      %2275 = vmatpush1.msra.mxu0 0.0
      %2276 = vmatprep.subr.mxu0 0.0
      %2277 = vmatpush1.msra.mxu0 0.0
      %2278 = vmatprep.subr.mxu0 0.0
      %2279 = vmatpush1.msra.mxu0 0.0
      %2280 = vmatprep.subr.mxu0 0.0
      %2281 = vmatpush1.msra.mxu0 0.0
      %2282 = vmatprep.subr.mxu0 0.0
      %2283 = vmatpush1.msra.mxu0 0.0
      %2284 = vmatprep.subr.mxu0 0.0
      %2285 = vmatpush1.msra.mxu0 0.0
      %2286 = vmatprep.subr.mxu0 0.0
      %2287 = vmatpush1.msra.mxu0 0.0
      %2288 = vmatprep.subr.mxu0 0.0
      %2289 = vmatpush1.msra.mxu0 %v1892
      %2290 = vmatprep.subr.mxu0 0.0
      %2291 = vmatpush1.msra.mxu0 %v1891
      %2292 = vmatprep.subr.mxu0 0.0
      %2293 = vmatpush1.msra.mxu0 %v1890
      %2294 = vmatprep.subr.mxu0 0.0
      %2295 = vmatpush1.msra.mxu0 %v1889
      %2296 = vmatprep.subr.mxu0 0.0
      %2297 = vmatpush2.msra.mxu0 0.0
      %2298 = vmatprep.subr.mxu0 0.0
      %2299 = vmatpush2.msra.mxu0 0.0
      %2300 = vmatprep.subr.mxu0 0.0
      %2301 = vmatpush2.msra.mxu0 0.0
      %2302 = vmatprep.subr.mxu0 0.0
      %2303 = vmatpush2.msra.mxu0 0.0
      %2304 = vmatprep.subr.mxu0 0.0
      %2305 = vmatpush2.msra.mxu0 0.0
      %2306 = vmatprep.subr.mxu0 0.0
      %2307 = vmatpush2.msra.mxu0 0.0
      %2308 = vmatprep.subr.mxu0 0.0
      %2309 = vmatpush2.msra.mxu0 0.0
      %2310 = vmatprep.subr.mxu0 0.0
      %2311 = vmatpush2.msra.mxu0 0.0
      %2312 = vmatprep.subr.mxu0 0.0
      %2313 = vmatpush2.msra.mxu0 0.0
      %2314 = vmatprep.subr.mxu0 0.0
      %2315 = vmatpush2.msra.mxu0 0.0
      %2316 = vmatprep.subr.mxu0 0.0
      %2317 = vmatpush2.msra.mxu0 0.0
      %2318 = vmatprep.subr.mxu0 0.0
      %2319 = vmatpush2.msra.mxu0 0.0
      %2320 = vmatprep.subr.mxu0 0.0
      %2321 = vmatpush2.msra.mxu0 0.0
      %2322 = vmatprep.subr.mxu0 0.0
      %2323 = vmatpush2.msra.mxu0 0.0
      %2324 = vmatprep.subr.mxu0 0.0
      %2325 = vmatpush2.msra.mxu0 0.0
      %2326 = vmatprep.subr.mxu0 0.0
      %2327 = vmatpush2.msra.mxu0 0.0
      %2328 = vmatprep.mubr.f32.mxu0 0.0
      %2329 = vmatmul.mubr.f32.gmra.mxu0 %v2262
      %v2330 = vpop.f32.mrf.mxu0
      %v2331 = vadd.f32 0.0, %v2330
      %v2332 = vpop.f32.mrf.mxu0
      %2333 = vdwg.mxu0
      %v2334 = vadd.f32 %v2260, %v2331
      %v2335 = vtanh.pop %v2334
      %v2336 = vxor.u32 %v2334, 2147483648
      %v2337 = vmul.f32 %v2336, 1.442695
      %v2338 = vpow.pop %v2337
      %v2339 = vadd.f32 %v2338, 1.0
      %v2340 = vrcp.pop %v2339
      %v2341 = vmul.f32 1.0, %v2340
      %v2342 = vsel %vm827, %v2335, %v2341
      %2344 = vrot.lane.b32.xlu0 %v2242, 32
      %v2345 = vpop.permute.xlu0 %2344
      %v2347 = vmul.f32 %v2342, %v2345
      %2349 = vrot.lane.b32.xlu0 %v2342, 64
      %v2350 = vpop.permute.xlu0 %2349
      %v2352 = vmul.f32 %v2342, %v2350
      %2354 = vrot.lane.b32.xlu0 %v2352, 32
      %v2355 = vpop.permute.xlu0 %2354
      %v2357 = vadd.f32 %v2347, %v2355
      %v2358 = vtanh.pop %v2357
      %2360 = vrot.lane.b32.xlu0 %v2358, 64
      %v2361 = vpop.permute.xlu0 %2360
      %v2363 = vmul.f32 %v2342, %v2361
      %v2364 = vsub.f32 %v2357, %v2345
      %2366 = vrot.lane.b32.xlu0 %v2364, 96
      %v2367 = vpop.permute.xlu0 %2366
      %v2369 = vmul.f32 %v584, %v2367
      %v2370 = vadd.f32 %v2242, %v2369
      %2371 = vrot.lane.b32.xlu0 %v2252, 96
      %v2372 = vpop.permute.xlu0 %2371
      %v2374 = vsub.f32 %v2363, %v2372
      %2376 = vrot.lane.b32.xlu0 %v2374, 32
      %v2377 = vpop.permute.xlu0 %2376
      %v2379 = vmul.f32 %v584, %v2377
      %v2380 = vadd.f32 %v2252, %v2379
      %2382 = vrot.lane.b32.xlu0 %v2363, 32
      %v2383 = vpop.permute.xlu0 %2382
      %v2385 = vmul.f32 %v584, %v2383
      %2386 = vst.msk [vmem:[#allocation2 + $0x18] sm:$0xff] %vm858, %v2385
      %2387 = vst.msk [vmem:[#allocation2 + $0x20] sm:$0xff] %vm860, %v2385
      %v2388 = vsel %vm743, %v1871, %v1866
      %v2390 = vsel %vm608, %v2380, 0
      %2392 = vmatprep.subr.mxu0 0.0
      %2393 = vmatpush1.msra.mxu0 0.0
      %2394 = vmatprep.subr.mxu0 0.0
      %2395 = vmatpush1.msra.mxu0 0.0
      %2396 = vmatprep.subr.mxu0 0.0
      %2397 = vmatpush1.msra.mxu0 0.0
      %2398 = vmatprep.subr.mxu0 0.0
      %2399 = vmatpush1.msra.mxu0 0.0
      %2400 = vmatprep.subr.mxu0 0.0
      %2401 = vmatpush1.msra.mxu0 0.0
      %2402 = vmatprep.subr.mxu0 0.0
      %2403 = vmatpush1.msra.mxu0 0.0
      %2404 = vmatprep.subr.mxu0 0.0
      %2405 = vmatpush1.msra.mxu0 0.0
      %2406 = vmatprep.subr.mxu0 0.0
      %2407 = vmatpush1.msra.mxu0 0.0
      %2408 = vmatprep.subr.mxu0 0.0
      %2409 = vmatpush1.msra.mxu0 0.0
      %2410 = vmatprep.subr.mxu0 0.0
      %2411 = vmatpush1.msra.mxu0 0.0
      %2412 = vmatprep.subr.mxu0 0.0
      %2413 = vmatpush1.msra.mxu0 0.0
      %2414 = vmatprep.subr.mxu0 0.0
      %2415 = vmatpush1.msra.mxu0 0.0
      %2416 = vmatprep.subr.mxu0 0.0
      %2417 = vmatpush1.msra.mxu0 %v1892
      %2418 = vmatprep.subr.mxu0 0.0
      %2419 = vmatpush1.msra.mxu0 %v1891
      %2420 = vmatprep.subr.mxu0 0.0
      %2421 = vmatpush1.msra.mxu0 %v1890
      %2422 = vmatprep.subr.mxu0 0.0
      %2423 = vmatpush1.msra.mxu0 %v1889
      %2424 = vmatprep.subr.mxu0 0.0
      %2425 = vmatpush2.msra.mxu0 0.0
      %2426 = vmatprep.subr.mxu0 0.0
      %2427 = vmatpush2.msra.mxu0 0.0
      %2428 = vmatprep.subr.mxu0 0.0
      %2429 = vmatpush2.msra.mxu0 0.0
      %2430 = vmatprep.subr.mxu0 0.0
      %2431 = vmatpush2.msra.mxu0 0.0
      %2432 = vmatprep.subr.mxu0 0.0
      %2433 = vmatpush2.msra.mxu0 0.0
      %2434 = vmatprep.subr.mxu0 0.0
      %2435 = vmatpush2.msra.mxu0 0.0
      %2436 = vmatprep.subr.mxu0 0.0
      %2437 = vmatpush2.msra.mxu0 0.0
      %2438 = vmatprep.subr.mxu0 0.0
      %2439 = vmatpush2.msra.mxu0 0.0
      %2440 = vmatprep.subr.mxu0 0.0
      %2441 = vmatpush2.msra.mxu0 0.0
      %2442 = vmatprep.subr.mxu0 0.0
      %2443 = vmatpush2.msra.mxu0 0.0
      %2444 = vmatprep.subr.mxu0 0.0
      %2445 = vmatpush2.msra.mxu0 0.0
      %2446 = vmatprep.subr.mxu0 0.0
      %2447 = vmatpush2.msra.mxu0 0.0
      %2448 = vmatprep.subr.mxu0 0.0
      %2449 = vmatpush2.msra.mxu0 0.0
      %2450 = vmatprep.subr.mxu0 0.0
      %2451 = vmatpush2.msra.mxu0 0.0
      %2452 = vmatprep.subr.mxu0 0.0
      %2453 = vmatpush2.msra.mxu0 0.0
      %2454 = vmatprep.subr.mxu0 0.0
      %2455 = vmatpush2.msra.mxu0 0.0
      %2456 = vmatprep.mubr.f32.mxu0 0.0
      %2457 = vmatmul.mubr.f32.gmra.mxu0 %v2390
      %v2458 = vpop.f32.mrf.mxu0
      %v2459 = vadd.f32 0.0, %v2458
      %v2460 = vpop.f32.mrf.mxu0
      %2461 = vdwg.mxu0
      %v2462 = vadd.f32 %v2388, %v2459
      %v2463 = vtanh.pop %v2462
      %v2464 = vxor.u32 %v2462, 2147483648
      %v2465 = vmul.f32 %v2464, 1.442695
      %v2466 = vpow.pop %v2465
      %v2467 = vadd.f32 %v2466, 1.0
      %v2468 = vrcp.pop %v2467
      %v2469 = vmul.f32 1.0, %v2468
      %v2470 = vsel %vm827, %v2463, %v2469
      %2472 = vrot.lane.b32.xlu0 %v2370, 32
      %v2473 = vpop.permute.xlu0 %2472
      %v2475 = vmul.f32 %v2470, %v2473
      %2477 = vrot.lane.b32.xlu0 %v2470, 64
      %v2478 = vpop.permute.xlu0 %2477
      %v2480 = vmul.f32 %v2470, %v2478
      %2482 = vrot.lane.b32.xlu0 %v2480, 32
      %v2483 = vpop.permute.xlu0 %2482
      %v2485 = vadd.f32 %v2475, %v2483
      %v2486 = vtanh.pop %v2485
      %2488 = vrot.lane.b32.xlu0 %v2486, 64
      %v2489 = vpop.permute.xlu0 %2488
      %v2491 = vmul.f32 %v2470, %v2489
      %v2492 = vsub.f32 %v2485, %v2473
      %2494 = vrot.lane.b32.xlu0 %v2492, 96
      %v2495 = vpop.permute.xlu0 %2494
      %v2497 = vmul.f32 %v585, %v2495
      %v2498 = vadd.f32 %v2370, %v2497
      %2499 = vrot.lane.b32.xlu0 %v2380, 96
      %v2500 = vpop.permute.xlu0 %2499
      %v2502 = vsub.f32 %v2491, %v2500
      %2504 = vrot.lane.b32.xlu0 %v2502, 32
      %v2505 = vpop.permute.xlu0 %2504
      %v2507 = vmul.f32 %v585, %v2505
      %v2508 = vadd.f32 %v2380, %v2507
      %2510 = vrot.lane.b32.xlu0 %v2491, 32
      %v2511 = vpop.permute.xlu0 %2510
      %v2513 = vmul.f32 %v585, %v2511
      %2514 = vst.msk [vmem:[#allocation2 + $0x20] sm:$0xff] %vm858, %v2513
      %2515 = vst.msk [vmem:[#allocation2 + $0x18] sm:$0xff] %vm860, %v2513
      %v2516 = vsel %vm743, %v1876, %v1861
      %v2518 = vsel %vm608, %v2508, 0
      %2520 = vmatprep.subr.mxu0 0.0
      %2521 = vmatpush1.msra.mxu0 0.0
      %2522 = vmatprep.subr.mxu0 0.0
      %2523 = vmatpush1.msra.mxu0 0.0
      %2524 = vmatprep.subr.mxu0 0.0
      %2525 = vmatpush1.msra.mxu0 0.0
      %2526 = vmatprep.subr.mxu0 0.0
      %2527 = vmatpush1.msra.mxu0 0.0
      %2528 = vmatprep.subr.mxu0 0.0
      %2529 = vmatpush1.msra.mxu0 0.0
      %2530 = vmatprep.subr.mxu0 0.0
      %2531 = vmatpush1.msra.mxu0 0.0
      %2532 = vmatprep.subr.mxu0 0.0
      %2533 = vmatpush1.msra.mxu0 0.0
      %2534 = vmatprep.subr.mxu0 0.0
      %2535 = vmatpush1.msra.mxu0 0.0
      %2536 = vmatprep.subr.mxu0 0.0
      %2537 = vmatpush1.msra.mxu0 0.0
      %2538 = vmatprep.subr.mxu0 0.0
      %2539 = vmatpush1.msra.mxu0 0.0
      %2540 = vmatprep.subr.mxu0 0.0
      %2541 = vmatpush1.msra.mxu0 0.0
      %2542 = vmatprep.subr.mxu0 0.0
      %2543 = vmatpush1.msra.mxu0 0.0
      %2544 = vmatprep.subr.mxu0 0.0
      %2545 = vmatpush1.msra.mxu0 %v1892
      %2546 = vmatprep.subr.mxu0 0.0
      %2547 = vmatpush1.msra.mxu0 %v1891
      %2548 = vmatprep.subr.mxu0 0.0
      %2549 = vmatpush1.msra.mxu0 %v1890
      %2550 = vmatprep.subr.mxu0 0.0
      %2551 = vmatpush1.msra.mxu0 %v1889
      %2552 = vmatprep.subr.mxu0 0.0
      %2553 = vmatpush2.msra.mxu0 0.0
      %2554 = vmatprep.subr.mxu0 0.0
      %2555 = vmatpush2.msra.mxu0 0.0
      %2556 = vmatprep.subr.mxu0 0.0
      %2557 = vmatpush2.msra.mxu0 0.0
      %2558 = vmatprep.subr.mxu0 0.0
      %2559 = vmatpush2.msra.mxu0 0.0
      %2560 = vmatprep.subr.mxu0 0.0
      %2561 = vmatpush2.msra.mxu0 0.0
      %2562 = vmatprep.subr.mxu0 0.0
      %2563 = vmatpush2.msra.mxu0 0.0
      %2564 = vmatprep.subr.mxu0 0.0
      %2565 = vmatpush2.msra.mxu0 0.0
      %2566 = vmatprep.subr.mxu0 0.0
      %2567 = vmatpush2.msra.mxu0 0.0
      %2568 = vmatprep.subr.mxu0 0.0
      %2569 = vmatpush2.msra.mxu0 0.0
      %2570 = vmatprep.subr.mxu0 0.0
      %2571 = vmatpush2.msra.mxu0 0.0
      %2572 = vmatprep.subr.mxu0 0.0
      %2573 = vmatpush2.msra.mxu0 0.0
      %2574 = vmatprep.subr.mxu0 0.0
      %2575 = vmatpush2.msra.mxu0 0.0
      %2576 = vmatprep.subr.mxu0 0.0
      %2577 = vmatpush2.msra.mxu0 0.0
      %2578 = vmatprep.subr.mxu0 0.0
      %2579 = vmatpush2.msra.mxu0 0.0
      %2580 = vmatprep.subr.mxu0 0.0
      %2581 = vmatpush2.msra.mxu0 0.0
      %2582 = vmatprep.subr.mxu0 0.0
      %2583 = vmatpush2.msra.mxu0 0.0
      %2584 = vmatprep.mubr.f32.mxu0 0.0
      %2585 = vmatmul.mubr.f32.gmra.mxu0 %v2518
      %v2586 = vpop.f32.mrf.mxu0
      %v2587 = vadd.f32 0.0, %v2586
      %v2588 = vpop.f32.mrf.mxu0
      %2589 = vdwg.mxu0
      %v2590 = vadd.f32 %v2516, %v2587
      %v2591 = vtanh.pop %v2590
      %v2592 = vxor.u32 %v2590, 2147483648
      %v2593 = vmul.f32 %v2592, 1.442695
      %v2594 = vpow.pop %v2593
      %v2595 = vadd.f32 %v2594, 1.0
      %v2596 = vrcp.pop %v2595
      %v2597 = vmul.f32 1.0, %v2596
      %v2598 = vsel %vm827, %v2591, %v2597
      %2600 = vrot.lane.b32.xlu0 %v2498, 32
      %v2601 = vpop.permute.xlu0 %2600
      %v2603 = vmul.f32 %v2598, %v2601
      %2605 = vrot.lane.b32.xlu0 %v2598, 64
      %v2606 = vpop.permute.xlu0 %2605
      %v2608 = vmul.f32 %v2598, %v2606
      %2610 = vrot.lane.b32.xlu0 %v2608, 32
      %v2611 = vpop.permute.xlu0 %2610
      %v2613 = vadd.f32 %v2603, %v2611
      %v2614 = vtanh.pop %v2613
      %2616 = vrot.lane.b32.xlu0 %v2614, 64
      %v2617 = vpop.permute.xlu0 %2616
      %v2619 = vmul.f32 %v2598, %v2617
      %v2620 = vsub.f32 %v2613, %v2601
      %2622 = vrot.lane.b32.xlu0 %v2620, 96
      %v2623 = vpop.permute.xlu0 %2622
      %v2625 = vmul.f32 %v586, %v2623
      %v2626 = vadd.f32 %v2498, %v2625
      %2627 = vrot.lane.b32.xlu0 %v2508, 96
      %v2628 = vpop.permute.xlu0 %2627
      %v2630 = vsub.f32 %v2619, %v2628
      %2632 = vrot.lane.b32.xlu0 %v2630, 32
      %v2633 = vpop.permute.xlu0 %2632
      %v2635 = vmul.f32 %v586, %v2633
      %v2636 = vadd.f32 %v2508, %v2635
      %2638 = vrot.lane.b32.xlu0 %v2619, 32
      %v2639 = vpop.permute.xlu0 %2638
      %v2641 = vmul.f32 %v586, %v2639
      %2642 = vst.msk [vmem:[#allocation2 + $0x28] sm:$0xff] %vm858, %v2641
      %2643 = vst.msk [vmem:[#allocation2 + $0x10] sm:$0xff] %vm860, %v2641
      %v2644 = vsel %vm743, %v1881, %v1856
      %v2646 = vsel %vm608, %v2636, 0
      %2648 = vmatprep.subr.mxu0 0.0
      %2649 = vmatpush1.msra.mxu0 0.0
      %2650 = vmatprep.subr.mxu0 0.0
      %2651 = vmatpush1.msra.mxu0 0.0
      %2652 = vmatprep.subr.mxu0 0.0
      %2653 = vmatpush1.msra.mxu0 0.0
      %2654 = vmatprep.subr.mxu0 0.0
      %2655 = vmatpush1.msra.mxu0 0.0
      %2656 = vmatprep.subr.mxu0 0.0
      %2657 = vmatpush1.msra.mxu0 0.0
      %2658 = vmatprep.subr.mxu0 0.0
      %2659 = vmatpush1.msra.mxu0 0.0
      %2660 = vmatprep.subr.mxu0 0.0
      %2661 = vmatpush1.msra.mxu0 0.0
      %2662 = vmatprep.subr.mxu0 0.0
      %2663 = vmatpush1.msra.mxu0 0.0
      %2664 = vmatprep.subr.mxu0 0.0
      %2665 = vmatpush1.msra.mxu0 0.0
      %2666 = vmatprep.subr.mxu0 0.0
      %2667 = vmatpush1.msra.mxu0 0.0
      %2668 = vmatprep.subr.mxu0 0.0
      %2669 = vmatpush1.msra.mxu0 0.0
      %2670 = vmatprep.subr.mxu0 0.0
      %2671 = vmatpush1.msra.mxu0 0.0
      %2672 = vmatprep.subr.mxu0 0.0
      %2673 = vmatpush1.msra.mxu0 %v1892
      %2674 = vmatprep.subr.mxu0 0.0
      %2675 = vmatpush1.msra.mxu0 %v1891
      %2676 = vmatprep.subr.mxu0 0.0
      %2677 = vmatpush1.msra.mxu0 %v1890
      %2678 = vmatprep.subr.mxu0 0.0
      %2679 = vmatpush1.msra.mxu0 %v1889
      %2680 = vmatprep.subr.mxu0 0.0
      %2681 = vmatpush2.msra.mxu0 0.0
      %2682 = vmatprep.subr.mxu0 0.0
      %2683 = vmatpush2.msra.mxu0 0.0
      %2684 = vmatprep.subr.mxu0 0.0
      %2685 = vmatpush2.msra.mxu0 0.0
      %2686 = vmatprep.subr.mxu0 0.0
      %2687 = vmatpush2.msra.mxu0 0.0
      %2688 = vmatprep.subr.mxu0 0.0
      %2689 = vmatpush2.msra.mxu0 0.0
      %2690 = vmatprep.subr.mxu0 0.0
      %2691 = vmatpush2.msra.mxu0 0.0
      %2692 = vmatprep.subr.mxu0 0.0
      %2693 = vmatpush2.msra.mxu0 0.0
      %2694 = vmatprep.subr.mxu0 0.0
      %2695 = vmatpush2.msra.mxu0 0.0
      %2696 = vmatprep.subr.mxu0 0.0
      %2697 = vmatpush2.msra.mxu0 0.0
      %2698 = vmatprep.subr.mxu0 0.0
      %2699 = vmatpush2.msra.mxu0 0.0
      %2700 = vmatprep.subr.mxu0 0.0
      %2701 = vmatpush2.msra.mxu0 0.0
      %2702 = vmatprep.subr.mxu0 0.0
      %2703 = vmatpush2.msra.mxu0 0.0
      %2704 = vmatprep.subr.mxu0 0.0
      %2705 = vmatpush2.msra.mxu0 0.0
      %2706 = vmatprep.subr.mxu0 0.0
      %2707 = vmatpush2.msra.mxu0 0.0
      %2708 = vmatprep.subr.mxu0 0.0
      %2709 = vmatpush2.msra.mxu0 0.0
      %2710 = vmatprep.subr.mxu0 0.0
      %2711 = vmatpush2.msra.mxu0 0.0
      %2712 = vmatprep.mubr.f32.mxu0 0.0
      %2713 = vmatmul.mubr.f32.gmra.mxu0 %v2646
      %v2714 = vpop.f32.mrf.mxu0
      %v2715 = vadd.f32 0.0, %v2714
      %v2716 = vpop.f32.mrf.mxu0
      %2717 = vdwg.mxu0
      %v2718 = vadd.f32 %v2644, %v2715
      %v2719 = vtanh.pop %v2718
      %v2720 = vxor.u32 %v2718, 2147483648
      %v2721 = vmul.f32 %v2720, 1.442695
      %v2722 = vpow.pop %v2721
      %v2723 = vadd.f32 %v2722, 1.0
      %v2724 = vrcp.pop %v2723
      %v2725 = vmul.f32 1.0, %v2724
      %v2726 = vsel %vm827, %v2719, %v2725
      %2728 = vrot.lane.b32.xlu0 %v2626, 32
      %v2729 = vpop.permute.xlu0 %2728
      %v2731 = vmul.f32 %v2726, %v2729
      %2733 = vrot.lane.b32.xlu0 %v2726, 64
      %v2734 = vpop.permute.xlu0 %2733
      %v2736 = vmul.f32 %v2726, %v2734
      %2738 = vrot.lane.b32.xlu0 %v2736, 32
      %v2739 = vpop.permute.xlu0 %2738
      %v2741 = vadd.f32 %v2731, %v2739
      %v2742 = vtanh.pop %v2741
      %2744 = vrot.lane.b32.xlu0 %v2742, 64
      %v2745 = vpop.permute.xlu0 %2744
      %v2747 = vmul.f32 %v2726, %v2745
      %v2748 = vsub.f32 %v2741, %v2729
      %2750 = vrot.lane.b32.xlu0 %v2748, 96
      %v2751 = vpop.permute.xlu0 %2750
      %v2753 = vmul.f32 %v587, %v2751
      %v2754 = vadd.f32 %v2626, %v2753
      %2755 = vrot.lane.b32.xlu0 %v2636, 96
      %v2756 = vpop.permute.xlu0 %2755
      %v2758 = vsub.f32 %v2747, %v2756
      %2760 = vrot.lane.b32.xlu0 %v2758, 32
      %v2761 = vpop.permute.xlu0 %2760
      %v2763 = vmul.f32 %v587, %v2761
      %v2764 = vadd.f32 %v2636, %v2763
      %2766 = vrot.lane.b32.xlu0 %v2747, 32
      %v2767 = vpop.permute.xlu0 %2766
      %v2769 = vmul.f32 %v587, %v2767
      %2770 = vst.msk [vmem:[#allocation2 + $0x30] sm:$0xff] %vm858, %v2769
      %2771 = vst.msk [vmem:[#allocation2 + $0x8] sm:$0xff] %vm860, %v2769
      %v2772 = vsel %vm743, %v1886, %v1851
      %v2774 = vsel %vm608, %v2764, 0
      %2776 = vmatprep.subr.mxu0 0.0
      %2777 = vmatpush1.msra.mxu0 0.0
      %2778 = vmatprep.subr.mxu0 0.0
      %2779 = vmatpush1.msra.mxu0 0.0
      %2780 = vmatprep.subr.mxu0 0.0
      %2781 = vmatpush1.msra.mxu0 0.0
      %2782 = vmatprep.subr.mxu0 0.0
      %2783 = vmatpush1.msra.mxu0 0.0
      %2784 = vmatprep.subr.mxu0 0.0
      %2785 = vmatpush1.msra.mxu0 0.0
      %2786 = vmatprep.subr.mxu0 0.0
      %2787 = vmatpush1.msra.mxu0 0.0
      %2788 = vmatprep.subr.mxu0 0.0
      %2789 = vmatpush1.msra.mxu0 0.0
      %2790 = vmatprep.subr.mxu0 0.0
      %2791 = vmatpush1.msra.mxu0 0.0
      %2792 = vmatprep.subr.mxu0 0.0
      %2793 = vmatpush1.msra.mxu0 0.0
      %2794 = vmatprep.subr.mxu0 0.0
      %2795 = vmatpush1.msra.mxu0 0.0
      %2796 = vmatprep.subr.mxu0 0.0
      %2797 = vmatpush1.msra.mxu0 0.0
      %2798 = vmatprep.subr.mxu0 0.0
      %2799 = vmatpush1.msra.mxu0 0.0
      %2800 = vmatprep.subr.mxu0 0.0
      %2801 = vmatpush1.msra.mxu0 %v1892
      %2802 = vmatprep.subr.mxu0 0.0
      %2803 = vmatpush1.msra.mxu0 %v1891
      %2804 = vmatprep.subr.mxu0 0.0
      %2805 = vmatpush1.msra.mxu0 %v1890
      %2806 = vmatprep.subr.mxu0 0.0
      %2807 = vmatpush1.msra.mxu0 %v1889
      %2808 = vmatprep.subr.mxu0 0.0
      %2809 = vmatpush2.msra.mxu0 0.0
      %2810 = vmatprep.subr.mxu0 0.0
      %2811 = vmatpush2.msra.mxu0 0.0
      %2812 = vmatprep.subr.mxu0 0.0
      %2813 = vmatpush2.msra.mxu0 0.0
      %2814 = vmatprep.subr.mxu0 0.0
      %2815 = vmatpush2.msra.mxu0 0.0
      %2816 = vmatprep.subr.mxu0 0.0
      %2817 = vmatpush2.msra.mxu0 0.0
      %2818 = vmatprep.subr.mxu0 0.0
      %2819 = vmatpush2.msra.mxu0 0.0
      %2820 = vmatprep.subr.mxu0 0.0
      %2821 = vmatpush2.msra.mxu0 0.0
      %2822 = vmatprep.subr.mxu0 0.0
      %2823 = vmatpush2.msra.mxu0 0.0
      %2824 = vmatprep.subr.mxu0 0.0
      %2825 = vmatpush2.msra.mxu0 0.0
      %2826 = vmatprep.subr.mxu0 0.0
      %2827 = vmatpush2.msra.mxu0 0.0
      %2828 = vmatprep.subr.mxu0 0.0
      %2829 = vmatpush2.msra.mxu0 0.0
      %2830 = vmatprep.subr.mxu0 0.0
      %2831 = vmatpush2.msra.mxu0 0.0
      %2832 = vmatprep.subr.mxu0 0.0
      %2833 = vmatpush2.msra.mxu0 0.0
      %2834 = vmatprep.subr.mxu0 0.0
      %2835 = vmatpush2.msra.mxu0 0.0
      %2836 = vmatprep.subr.mxu0 0.0
      %2837 = vmatpush2.msra.mxu0 0.0
      %2838 = vmatprep.subr.mxu0 0.0
      %2839 = vmatpush2.msra.mxu0 0.0
      %2840 = vmatprep.mubr.f32.mxu0 0.0
      %2841 = vmatmul.mubr.f32.gmra.mxu0 %v2774
      %v2842 = vpop.f32.mrf.mxu0
      %v2843 = vadd.f32 0.0, %v2842
      %v2844 = vpop.f32.mrf.mxu0
      %2845 = vdwg.mxu0
      %v2846 = vadd.f32 %v2772, %v2843
      %v2847 = vtanh.pop %v2846
      %v2848 = vxor.u32 %v2846, 2147483648
      %v2849 = vmul.f32 %v2848, 1.442695
      %v2850 = vpow.pop %v2849
      %v2851 = vadd.f32 %v2850, 1.0
      %v2852 = vrcp.pop %v2851
      %v2853 = vmul.f32 1.0, %v2852
      %v2854 = vsel %vm827, %v2847, %v2853
      %2856 = vrot.lane.b32.xlu0 %v2754, 32
      %v2857 = vpop.permute.xlu0 %2856
      %v2859 = vmul.f32 %v2854, %v2857
      %2861 = vrot.lane.b32.xlu0 %v2854, 64
      %v2862 = vpop.permute.xlu0 %2861
      %v2864 = vmul.f32 %v2854, %v2862
      %2866 = vrot.lane.b32.xlu0 %v2864, 32
      %v2867 = vpop.permute.xlu0 %2866
      %v2869 = vadd.f32 %v2859, %v2867
      %v2870 = vtanh.pop %v2869
      %2872 = vrot.lane.b32.xlu0 %v2870, 64
      %v2873 = vpop.permute.xlu0 %2872
      %v2875 = vmul.f32 %v2854, %v2873
      %2877 = vrot.lane.b32.xlu0 %v2875, 32
      %v2878 = vpop.permute.xlu0 %2877
      %v2880 = vmul.f32 %v588, %v2878
      %2881 = vst.msk [vmem:[#allocation2 + $0x38] sm:$0xff] %vm858, %v2880
      %2882 = vst.msk [vmem:[#allocation2] sm:$0xff] %vm860, %v2880
      %v2883 = vsel %vm543, 1.0, -100.0
      %vm2884 = vcmask 64512
      %v2885 = vsel %vm2884, %v2883, -inf
      %2886 = vmax.xlane.f32.xlu0 %v2885
      %v2887 = vpop.xlane.xlu0 %2886
      %v2888 = vsub.f32 %v2883, %v2887
      %v2889 = vmul.f32 %v2888, 1.442695
      %v2890 = vpow.pop %v2889
      %v2891 = vsel %vm2884, %v2890, 0.0
      %2892 = vadd.xlane.f32.xlu0 %v2891
      %v2893 = vpop.xlane.xlu0 %2892
      %v2894 = vrcp.pop %v2893
      %v2895 = vmul.f32 %v2890, %v2894
      %v2896 = vld [vmem:[#allocation2] sm:$0xff]
      %2898 = vset.pattern.permute.xlu0 0
      %2899 = vperm.xlu0 %2898, %v2895
      %v2900 = vpop.permute.xlu0 %2899
      %v2902 = vmul.f32 %v2900, %v2896
      %v2903 = vadd.f32 %v2902, 0.0
      %v2904 = vld [vmem:[#allocation2 + $0x8] sm:$0xff]
      %2905 = vset.pattern.permute.xlu0 1
      %2906 = vperm.xlu0 %2905, %v2895
      %v2907 = vpop.permute.xlu0 %2906
      %v2909 = vmul.f32 %v2907, %v2904
      %v2910 = vadd.f32 %v2903, %v2909
      %v2911 = vld [vmem:[#allocation2 + $0x10] sm:$0xff]
      %2912 = vset.pattern.permute.xlu0 2
      %2913 = vperm.xlu0 %2912, %v2895
      %v2914 = vpop.permute.xlu0 %2913
      %v2916 = vmul.f32 %v2914, %v2911
      %v2917 = vadd.f32 %v2910, %v2916
      %v2918 = vld [vmem:[#allocation2 + $0x18] sm:$0xff]
      %2919 = vset.pattern.permute.xlu0 3
      %2920 = vperm.xlu0 %2919, %v2895
      %v2921 = vpop.permute.xlu0 %2920
      %v2923 = vmul.f32 %v2921, %v2918
      %v2924 = vadd.f32 %v2917, %v2923
      %v2925 = vld [vmem:[#allocation2 + $0x20] sm:$0xff]
      %2926 = vset.pattern.permute.xlu0 4
      %2927 = vperm.xlu0 %2926, %v2895
      %v2928 = vpop.permute.xlu0 %2927
      %v2930 = vmul.f32 %v2928, %v2925
      %v2931 = vadd.f32 %v2924, %v2930
      %v2932 = vld [vmem:[#allocation2 + $0x28] sm:$0xff]
      %2933 = vset.pattern.permute.xlu0 5
      %2934 = vperm.xlu0 %2933, %v2895
      %v2935 = vpop.permute.xlu0 %2934
      %v2937 = vmul.f32 %v2935, %v2932
      %v2938 = vadd.f32 %v2931, %v2937
      %v2939 = vld [vmem:[#allocation2 + $0x30] sm:$0xff]
      %2940 = vset.pattern.permute.xlu0 6
      %2941 = vperm.xlu0 %2940, %v2895
      %v2942 = vpop.permute.xlu0 %2941
      %v2944 = vmul.f32 %v2942, %v2939
      %v2945 = vadd.f32 %v2938, %v2944
      %v2946 = vld [vmem:[#allocation2 + $0x38] sm:$0xff]
      %2947 = vset.pattern.permute.xlu0 7
      %2948 = vperm.xlu0 %2947, %v2895
      %v2949 = vpop.permute.xlu0 %2948
      %v2951 = vmul.f32 %v2949, %v2946
      %v2952 = vadd.f32 %v2945, %v2951
      %v2953 = vld [vmem:[%s509] sm:$0xff]
      %v2954 = vld [vmem:[%s509 + $0x8] sm:$0xff]
      %v2955 = vld [vmem:[%s509 + $0x10] sm:$0xff]
      %v2956 = vld [vmem:[%s509 + $0x18] sm:$0xff]
      %v2957 = vld [vmem:[%s512] sm:$0x1]
      %v2959 = vlaneseq
      %v2960 = vshrl.u32 %v2959, 7
      %v2961 = vsub.s32 0, %v2960
      %v2962 = vrot.slane %v2957, %v2961
      %v2965 = vsel %vm608, %v2952, 0
      %2967 = vmatprep.subr.mxu0 0.0
      %2968 = vmatpush1.msra.mxu0 0.0
      %2969 = vmatprep.subr.mxu0 0.0
      %2970 = vmatpush1.msra.mxu0 0.0
      %2971 = vmatprep.subr.mxu0 0.0
      %2972 = vmatpush1.msra.mxu0 0.0
      %2973 = vmatprep.subr.mxu0 0.0
      %2974 = vmatpush1.msra.mxu0 0.0
      %2975 = vmatprep.subr.mxu0 0.0
      %2976 = vmatpush1.msra.mxu0 0.0
      %2977 = vmatprep.subr.mxu0 0.0
      %2978 = vmatpush1.msra.mxu0 0.0
      %2979 = vmatprep.subr.mxu0 0.0
      %2980 = vmatpush1.msra.mxu0 0.0
      %2981 = vmatprep.subr.mxu0 0.0
      %2982 = vmatpush1.msra.mxu0 0.0
      %2983 = vmatprep.subr.mxu0 0.0
      %2984 = vmatpush1.msra.mxu0 0.0
      %2985 = vmatprep.subr.mxu0 0.0
      %2986 = vmatpush1.msra.mxu0 0.0
      %2987 = vmatprep.subr.mxu0 0.0
      %2988 = vmatpush1.msra.mxu0 0.0
      %2989 = vmatprep.subr.mxu0 0.0
      %2990 = vmatpush1.msra.mxu0 0.0
      %2991 = vmatprep.subr.mxu0 0.0
      %2992 = vmatpush1.msra.mxu0 %v2956
      %2993 = vmatprep.subr.mxu0 0.0
      %2994 = vmatpush1.msra.mxu0 %v2955
      %2995 = vmatprep.subr.mxu0 0.0
      %2996 = vmatpush1.msra.mxu0 %v2954
      %2997 = vmatprep.subr.mxu0 0.0
      %2998 = vmatpush1.msra.mxu0 %v2953
      %2999 = vmatprep.subr.mxu0 0.0
      %3000 = vmatpush2.msra.mxu0 0.0
      %3001 = vmatprep.subr.mxu0 0.0
      %3002 = vmatpush2.msra.mxu0 0.0
      %3003 = vmatprep.subr.mxu0 0.0
      %3004 = vmatpush2.msra.mxu0 0.0
      %3005 = vmatprep.subr.mxu0 0.0
      %3006 = vmatpush2.msra.mxu0 0.0
      %3007 = vmatprep.subr.mxu0 0.0
      %3008 = vmatpush2.msra.mxu0 0.0
      %3009 = vmatprep.subr.mxu0 0.0
      %3010 = vmatpush2.msra.mxu0 0.0
      %3011 = vmatprep.subr.mxu0 0.0
      %3012 = vmatpush2.msra.mxu0 0.0
      %3013 = vmatprep.subr.mxu0 0.0
      %3014 = vmatpush2.msra.mxu0 0.0
      %3015 = vmatprep.subr.mxu0 0.0
      %3016 = vmatpush2.msra.mxu0 0.0
      %3017 = vmatprep.subr.mxu0 0.0
      %3018 = vmatpush2.msra.mxu0 0.0
      %3019 = vmatprep.subr.mxu0 0.0
      %3020 = vmatpush2.msra.mxu0 0.0
      %3021 = vmatprep.subr.mxu0 0.0
      %3022 = vmatpush2.msra.mxu0 0.0
      %3023 = vmatprep.subr.mxu0 0.0
      %3024 = vmatpush2.msra.mxu0 0.0
      %3025 = vmatprep.subr.mxu0 0.0
      %3026 = vmatpush2.msra.mxu0 0.0
      %3027 = vmatprep.subr.mxu0 0.0
      %3028 = vmatpush2.msra.mxu0 0.0
      %3029 = vmatprep.subr.mxu0 0.0
      %3030 = vmatpush2.msra.mxu0 0.0
      %3031 = vmatprep.mubr.f32.mxu0 0.0
      %3032 = vmatmul.mubr.f32.gmra.mxu0 %v2965
      %v3033 = vpop.f32.mrf.mxu0
      %v3034 = vadd.f32 %v2962, %v3033
      %v3035 = vpop.f32.mrf.mxu0
      %3036 = vdwg.mxu0
      %3037 = vst.msk [vmem:[%s516] sm:$0xff] %vm608, %v3034
      %p3038 = scmp.lt.s32.totalorder %s21, 1
      %s3039 = scalar_select %p3038, %s21, 1
      %s3040 = smul.addr %s3039, 8
      %s3041 = scalar_lea.vmem %s10, %s3040
      // Predicated region
      $region61: #{_andor_forward_impl.1} parent=59 // pred_check
        %p3042 = pneg %p299
      $region62: #{_andor_forward_impl.1} parent=59 // pred_check_branch
        %3044 = sbr.rel (%p3042) target = $region64
      $region63: #{_andor_forward_impl.1} parent=59 // pred_region
        _
      $region64: #{_andor_forward_impl.1} parent=59 // pred_fallthru
        _
    $region60: #{_andor_forward_impl.1} parent=5 // pred_fallthru
      _
    %p3045 = scmp.le.s32.totalorder 2, %s16
    // Predicated region
    $region65: #{_andor_forward_impl.1} parent=5 // pred_check
      %p3046 = pneg %p3045
    $region66: #{_andor_forward_impl.1} parent=5 // pred_check_branch
      %3048 = sbr.rel (%p3046) target = $region68
    $region67: #{_andor_forward_impl.1} parent=5 // pred_region
      %s3049 = ssub.s32 %s16, 2
      // Predicated region
      $region69: #{_andor_forward_impl.1} parent=67 // pred_check
        %p3050 = pneg %p305
      $region70: #{_andor_forward_impl.1} parent=67 // pred_check_branch
        %3052 = sbr.rel (%p3050) target = $region72
      $region71: #{_andor_forward_impl.1} parent=67 // pred_region
        %p3053 = scmp.lt.s32.totalorder %s22, 1
        %s3054 = scalar_select %p3053, %s22, 1
        %s3055 = smul.addr %s3054, 8
        %s3056 = scalar_lea.vmem %s10, %s3055
      $region72: #{_andor_forward_impl.1} parent=67 // pred_fallthru
        _
    $region68: #{_andor_forward_impl.1} parent=5 // pred_fallthru
      _
  $region6: #{_andor_forward_impl.1} parent=0 // loop_footer
    %s20 = sadd.s32 1, %s16
  $region7: #{_andor_forward_impl.1} parent=0 // loop_footer_branch
    %15 = sbr.rel target = $region3
  $region8: #{_andor_forward_impl.1} parent=0 // loop_exit
    _

</llo_original>
